<compile_context>
chip_gen: v7x
topology: tpu7x:2x2x1
jax: 0.10.0
libtpu: 0.0.40
codegen_flags: <defaults>
</compile_context>

<pallas_src>
import functools

import jax
import jax.numpy as jnp
import numpy as np
from jax import lax
from jax.experimental import pallas as pl
from jax.experimental.pallas import tpu as pltpu


# ---------------------------------------------------------------------------
# Tile choosers
# ---------------------------------------------------------------------------
def _largest_tile(n: int, cap: int) -> int:
    """Largest 128-multiple divisor of n that is <= cap; else n (full axis)."""
    if n <= cap:
        return n
    if n % 128 == 0:
        t = (cap // 128) * 128
        while t >= 128:
            if n % t == 0:
                return t
            t -= 128
    # TODO(synk): mask a partial last tile instead of falling back to a full-N
    # block when N is large and has no 128-multiple divisor (e.g. N=784).
    return n


def _choose_encoding_tile(N: int, D: int, *, compute_e: bool,
                          cap: int = 512,
                          vmem_budget: int = 24 * 2**20) -> int:
    # Double-buffered X input (+ E output when compute_e) blocks dominate VMEM.
    bytes_per_lane = (4 if compute_e else 2) * D * 4
    vmem_cap = max(128, (vmem_budget // bytes_per_lane) // 128 * 128)
    return _largest_tile(N, min(cap, vmem_cap))


def _choose_gate_tile(N: int, D: int, *, cap: int = 2048,
                      vmem_budget: int = 24 * 2**20) -> int:
    bytes_per_lane = 4 * D * 4           # in + out, double buffered
    vmem_cap = max(128, (vmem_budget // bytes_per_lane) // 128 * 128)
    return _largest_tile(N, min(cap, vmem_cap))


def _pick_lane_chunk(n_tile: int) -> int:
    return 128 if n_tile % 128 == 0 else n_tile


def _pick_sub_rows(lane_chunk: int) -> int:
    for s in (64, 32, 16, 8, 4, 2, 1):
        if lane_chunk % s == 0:
            return s
    return lane_chunk


# ---------------------------------------------------------------------------
# Kernel 1: per-(batch, N-tile) encoding.
#   diff[n,k,d] = I[n,d] - C[k,d]
#   A           = softmax_k( scale[k,d] * diff^2 )
#   E[n,d]      = sum_k A*diff        (only when compute_e)
#   EK[k,d]     = sum_n A*diff        (VMEM-resident block across N steps)
# ---------------------------------------------------------------------------
def _make_encoding_kernel(K: int, D: int, n_tile: int, compute_e: bool):
    lane_chunk = _pick_lane_chunk(n_tile)   # aligned lane slice of the tile
    sub_rows = _pick_sub_rows(lane_chunk)   # register working-set rows
    n_chunks = n_tile // lane_chunk
    n_sub = lane_chunk // sub_rows

    def kernel(x_ref, c_ref, s_ref, *out_refs):
        if compute_e:
            e_ref, ek_ref = out_refs
        else:
            (ek_ref,) = out_refs

        n_idx = pl.program_id(1)

        # EK output block has the same index for every N step -> it stays
        # VMEM-resident across the reduction.  Zero it on the first step.
        @pl.when(n_idx == 0)
        def _():
            ek_ref[...] = jnp.zeros_like(ek_ref)

        c_all = c_ref[...]                      # (K, D) -- 1 vreg for K=8,D=128
        s_all = s_ref[...]                      # (K, D)

        def chunk_body(c, ek_tile):
            off = c * lane_chunk
            # Aligned lane slice of the NCHW tile, transposed once per chunk
            # (canonical 128x128 XLU transpose when D = lane_chunk = 128).
            it = x_ref[:, pl.ds(off, lane_chunk)].T          # (lane_chunk, D)

            e_parts = []
            for h in range(n_sub):
                I = it[h * sub_rows:(h + 1) * sub_rows, :]   # (sub_rows, D)

                # ---- pass 1: running max over codewords (VPU only) ---------
                m = jnp.full((sub_rows, D), -jnp.inf, dtype=jnp.float32)
                for k in range(K):
                    d = I - c_all[k:k + 1, :]
                    m = jnp.maximum(m, s_all[k:k + 1, :] * (d * d))

                # ---- pass 2: softmax denominator (recompute logits) --------
                l = jnp.zeros((sub_rows, D), dtype=jnp.float32)
                for k in range(K):
                    d = I - c_all[k:k + 1, :]
                    t = s_all[k:k + 1, :] * (d * d)
                    l = l + jnp.exp(t - m)
                inv_l = 1.0 / l                 # exact divide (off the hot slot)

                # ---- pass 3: weighted residuals; accumulate E and EK -------
                e_h = (jnp.zeros((sub_rows, D), dtype=jnp.float32)
                       if compute_e else None)
                ek_rows = []
                for k in range(K):
                    d = I - c_all[k:k + 1, :]
                    t = s_all[k:k + 1, :] * (d * d)
                    w = jnp.exp(t - m) * inv_l
                    ad = w * d
                    if compute_e:
                        e_h = e_h + ad
                    # TODO(synk): route this sublane reduction through the MXU
                    # (ones(1,sub_rows) @ ad) once M=1 f32 matmul lowering is
                    # confirmed on the target Mosaic version.
                    ek_rows.append(jnp.sum(ad, axis=0, keepdims=True))
                ek_tile = ek_tile + jnp.concatenate(ek_rows, axis=0)
                if compute_e:
                    e_parts.append(e_h)

            if compute_e:
                e_blk = (e_parts[0] if n_sub == 1
                         else jnp.concatenate(e_parts, axis=0))  # (lane_chunk, D)
                # back to NCHW orientation; lane-aligned store into the tile
                e_ref[:, pl.ds(off, lane_chunk)] = e_blk.T
            return ek_tile

        ek_tile = lax.fori_loop(0, n_chunks, chunk_body,
                                jnp.zeros((K, D), dtype=jnp.float32))
        # Single RMW of the VMEM-resident EK block per tile.
        ek_ref[...] += ek_tile

    return kernel


# ---------------------------------------------------------------------------
# Kernel 2: fused channel gate + ReLU in (B, D, N) layout.
#   relu(E + E*gamma) == relu(E * (1+gamma));  (1+gamma) precomputed in wrapper.
# ---------------------------------------------------------------------------
def _gate_relu_kernel(e_ref, g_ref, o_ref):
    o_ref[...] = jnp.maximum(e_ref[...] * g_ref[...], 0.0)


def _run_encoding_core(Xr, codewords, scale, *, compute_e: bool, n_tile: int):
    B, D, N = Xr.shape
    K = codewords.shape[0]
    nN = N // n_tile

    out_shapes = []
    out_specs = []
    if compute_e:
        out_shapes.append(jax.ShapeDtypeStruct((B, D, N), jnp.float32))
        out_specs.append(pl.BlockSpec((None, D, n_tile), lambda b, n: (b, 0, n)))
    out_shapes.append(jax.ShapeDtypeStruct((B, K, D), jnp.float32))
    # EK: same block for every n -> VMEM-resident accumulator across N steps.
    out_specs.append(pl.BlockSpec((None, K, D), lambda b, n: (b, 0, 0)))

    cost = pl.CostEstimate(
        flops=16 * B * N * K * D,
        transcendentals=2 * B * N * K * D,
        bytes_accessed=4 * (B * D * N * (2 if compute_e else 1)
                            + B * K * D + 2 * K * D),
    )

    # TODO(synk): for v7x with B == 1, add an explicit 2-way core split over
    # the N axis (per-core partial EK + tiny combine epilogue) so both
    # TensorCores are used; with B >= 2 the "parallel" batch axis suffices.
    outs = pl.pallas_call(
        _make_encoding_kernel(K, D, n_tile, compute_e),
        out_shape=tuple(out_shapes),
        grid=(B, nN),
        in_specs=[
            pl.BlockSpec((None, D, n_tile), lambda b, n: (b, 0, n)),
            pl.BlockSpec((K, D), lambda b, n: (0, 0)),
            pl.BlockSpec((K, D), lambda b, n: (0, 0)),
        ],
        out_specs=tuple(out_specs),
        compiler_params=pltpu.CompilerParams(
            dimension_semantics=("parallel", "arbitrary"),
            vmem_limit_bytes=32 * 1024 * 1024,
        ),
        cost_estimate=cost,
    )(Xr, codewords, scale)

    if compute_e:
        E, EK = outs
        return E, EK
    (EK,) = outs
    return None, EK


def _run_gate_relu(E, gate):
    B, D, N = E.shape
    n_tile = _choose_gate_tile(N, D)
    nN = N // n_tile
    return pl.pallas_call(
        _gate_relu_kernel,
        out_shape=jax.ShapeDtypeStruct((B, D, N), jnp.float32),
        grid=(B, nN),
        in_specs=[
            pl.BlockSpec((None, D, n_tile), lambda b, n: (b, 0, n)),
            pl.BlockSpec((None, D, 1), lambda b, n: (b, 0, 0)),
        ],
        out_specs=pl.BlockSpec((None, D, n_tile), lambda b, n: (b, 0, n)),
        compiler_params=pltpu.CompilerParams(
            dimension_semantics=("parallel", "parallel"),
            vmem_limit_bytes=32 * 1024 * 1024,
        ),
    )(E, gate)


@functools.partial(jax.jit, static_argnames=("encoding",))
def encoding_forward(X, codewords, scale, fc_w, fc_b, *, encoding: bool):
    """Forward pass of the Encoding module.

    X: (B, D, H, W) float32 (NCHW, like PyTorch).
    Returns:
      encoding=True  -> (B, K, D)
      encoding=False -> (B, D, H, W)
    """
    B, D, H, W = X.shape
    N = H * W
    Xr = X.reshape(B, D, N).astype(jnp.float32)   # free reshape, stays NCHW order
    compute_e = not encoding
    n_tile = _choose_encoding_tile(N, D, compute_e=compute_e)

    E, EK = _run_encoding_core(Xr, codewords.astype(jnp.float32),
                               scale.astype(jnp.float32),
                               compute_e=compute_e, n_tile=n_tile)

    if encoding:
        return EK

    # EM = mean over K of EK -> (B, D); fc is a tiny DxD linear + sigmoid (glue).
    EM = jnp.mean(EK, axis=1)                     # (B, D)
    gamma = jax.nn.sigmoid(EM @ fc_w.T + fc_b)    # (B, D)
    gate = (1.0 + gamma)[:, :, None]              # relu(E + E*gamma) = relu(E*(1+gamma))

    Eg = _run_gate_relu(E, gate)                  # (B, D, N)
    return Eg.reshape(B, D, H, W)                 # free reshape to NCHW


# ---------------------------------------------------------------------------
# Pure-JAX reference (mirrors the PyTorch forward exactly) for verification.
# ---------------------------------------------------------------------------
def reference_forward(X, codewords, scale, fc_w, fc_b, *, encoding: bool):
    B, D, H, W = X.shape
    N = H * W
    I = jnp.transpose(X.reshape(B, D, N), (0, 2, 1))     # (B, N, D)
    diff = I[:, :, None, :] - codewords[None, None]      # (B, N, K, D)
    A = jax.nn.softmax(scale[None, None] * diff**2, axis=2)
    if encoding:
        return (A * diff).sum(axis=1)
    EM = (A * diff).sum(axis=1).mean(axis=1)             # (B, D)
    gamma = jax.nn.sigmoid(EM @ fc_w.T + fc_b)
    E = (A * diff).sum(axis=2)                           # (B, N, D)
    E = jnp.transpose(E, (0, 2, 1)).reshape(B, D, H, W)
    y = gamma[:, :, None, None]
    return jnp.maximum(E + E * y, 0.0)


if __name__ == "__main__":
    # D=128 / K=8 keep all tiles (8,128)-aligned; N=1024 with the 512-wide tile
    # exercises the multi-step (nN=2) VMEM-resident EK accumulation path.
    B, D, H, W, K = 2, 128, 32, 32, 8

    key = jax.random.PRNGKey(0)
    kx, kc, ks, kw, kb = jax.random.split(key, 5)

    X = jax.random.normal(kx, (B, D, H, W), dtype=jnp.float32)

    # Deterministic parameter init mirroring reset_params() / nn.Linear defaults.
    std1 = 1.0 / (K * D) ** 0.5
    codewords = jax.random.uniform(kc, (K, D), minval=-std1, maxval=std1,
                                   dtype=jnp.float32)
    scale = jax.random.uniform(ks, (K, D), minval=-1.0, maxval=0.0,
                               dtype=jnp.float32)
    lim = 1.0 / D ** 0.5
    fc_w = jax.random.uniform(kw, (D, D), minval=-lim, maxval=lim,
                              dtype=jnp.float32)
    fc_b = jax.random.uniform(kb, (D,), minval=-lim, maxval=lim,
                              dtype=jnp.float32)

    # Tolerance note: EK sums A*diff over N=1024 points; the kernel's tiled /
    # chunked accumulation order and its exp/divide rounding differ from the
    # dense reference by up to ~1e-4 in f32, so 5e-4 is a meaningful bound.
    RTOL = 5e-4
    ATOL = 5e-4

    # encoding=False path (softmax attention, EM, fc gate, relu).
    out_full = encoding_forward(X, codewords, scale, fc_w, fc_b, encoding=False)
    out_full = jax.block_until_ready(out_full)
    ref_full = reference_forward(X, codewords, scale, fc_w, fc_b, encoding=False)
    np.testing.assert_allclose(np.asarray(out_full), np.asarray(ref_full),
                               rtol=RTOL, atol=ATOL)
    assert out_full.shape == (B, D, H, W)

    # encoding=True path (returns aggregated residual encoding).
    out_enc = encoding_forward(X, codewords, scale, fc_w, fc_b, encoding=True)
    out_enc = jax.block_until_ready(out_enc)
    ref_enc = reference_forward(X, codewords, scale, fc_w, fc_b, encoding=True)
    np.testing.assert_allclose(np.asarray(out_enc), np.asarray(ref_enc),
                               rtol=RTOL, atol=ATOL)
    assert out_enc.shape == (B, K, D)

    print("KERNEL_OK")
</pallas_src>

<mosaic_0001>
module attributes {stable_mosaic.version = 11 : i64} {
  func.func @kernel(%arg0: i32, %arg1: i32, %arg2: memref<1x128x512xf32, #tpu.memory_space<vmem>>, %arg3: memref<8x128xf32, #tpu.memory_space<vmem>>, %arg4: memref<8x128xf32, #tpu.memory_space<vmem>>, %arg5: memref<1x128x512xf32, #tpu.memory_space<vmem>>, %arg6: memref<1x8x128xf32, #tpu.memory_space<vmem>>) attributes {dimension_semantics = [#tpu.dimension_semantics<parallel>, #tpu.dimension_semantics<arbitrary>], iteration_bounds = array<i64: 2, 2>, scalar_prefetch = 0 : i64, scratch_operands = 0 : i64, tpu.core_type = #tpu.core_type<tc>, window_params = [{transform_indices = @transform_0, window_bounds = array<i64: 1, 128, 512>}, {pipeline_mode = #tpu.pipeline_mode<synchronous>, transform_indices = @transform_1, window_bounds = array<i64: 8, 128>}, {pipeline_mode = #tpu.pipeline_mode<synchronous>, transform_indices = @transform_2, window_bounds = array<i64: 8, 128>}, {transform_indices = @transform_3, window_bounds = array<i64: 1, 128, 512>}, {transform_indices = @transform_4, window_bounds = array<i64: 1, 8, 128>}]} {
    %c0_i32 = arith.constant 0 : i32
    %0 = arith.cmpi eq, %arg1, %c0_i32 : i32
    %1 = arith.extui %0 : i1 to i32
    %c0_i32_0 = arith.constant 0 : i32
    %2 = arith.cmpi ne, %1, %c0_i32_0 : i32
    scf.if %2 {
      %cst_12 = arith.constant 0.000000e+00 : f32
      %14 = vector.broadcast %cst_12 : f32 to vector<8x128xf32>
      %c0_13 = arith.constant 0 : index
      %c0_14 = arith.constant 0 : index
      %c0_15 = arith.constant 0 : index
      %15 = vector.load %arg6[%c0_13, %c0_14, %c0_15] : memref<1x8x128xf32, #tpu.memory_space<vmem>>, vector<1x8x128xf32>
      %16 = vector.shape_cast %15 : vector<1x8x128xf32> to vector<8x128xf32>
      %17 = vector.shape_cast %14 : vector<8x128xf32> to vector<1x8x128xf32>
      tpu.vector_store %arg6[%c0_13, %c0_14, %c0_15], %17 {strides = array<i32>} : memref<1x8x128xf32, #tpu.memory_space<vmem>>, vector<1x8x128xf32>,
    } else {
    }
    %c0 = arith.constant 0 : index
    %c0_1 = arith.constant 0 : index
    %3 = vector.load %arg3[%c0, %c0_1] : memref<8x128xf32, #tpu.memory_space<vmem>>, vector<8x128xf32>
    %c0_2 = arith.constant 0 : index
    %c0_3 = arith.constant 0 : index
    %4 = vector.load %arg4[%c0_2, %c0_3] : memref<8x128xf32, #tpu.memory_space<vmem>>, vector<8x128xf32>
    %cst = arith.constant 0.000000e+00 : f32
    %5 = vector.broadcast %cst : f32 to vector<8x128xf32>
    %c0_i32_4 = arith.constant 0 : i32
    %c4_i32 = arith.constant 4 : i32
    %6 = arith.addi %c0_i32_4, %c4_i32 : i32
    %c1_i32 = arith.constant 1 : i32
    %7 = scf.for %arg7 = %c0_i32_4 to %6 step %c1_i32 iter_args(%arg8 = %5) -> (vector<8x128xf32>)  : i32 {
      %c128_i32 = arith.constant 128 : i32
      %14 = arith.muli %arg7, %c128_i32 : i32
      %c0_12 = arith.constant 0 : index
      %c0_13 = arith.constant 0 : index
      %15 = arith.index_cast %14 : i32 to index
      %16 = vector.load %arg2[%c0_12, %c0_13, %15] : memref<1x128x512xf32, #tpu.memory_space<vmem>>, vector<1x128x128xf32>
      %17 = vector.shape_cast %16 : vector<1x128x128xf32> to vector<128x128xf32>
      %18 = tpu.transpose %17, [1, 0] : vector<128x128xf32> -> vector<128x128xf32>
      %19 = vector.extract_strided_slice %18 {offsets = [0, 0], sizes = [64, 128], strides = [1, 1]} : vector<128x128xf32> to vector<64x128xf32>
      %cst_14 = arith.constant 0xFF800000 : f32
      %20 = vector.broadcast %cst_14 : f32 to vector<64x128xf32>
      %21 = vector.extract_strided_slice %3 {offsets = [0, 0], sizes = [1, 128], strides = [1, 1]} : vector<8x128xf32> to vector<1x128xf32>
      %22 = vector.broadcast %21 : vector<1x128xf32> to vector<64x128xf32>
      %23 = arith.subf %19, %22 : vector<64x128xf32>
      %24 = vector.extract_strided_slice %4 {offsets = [0, 0], sizes = [1, 128], strides = [1, 1]} : vector<8x128xf32> to vector<1x128xf32>
      %25 = arith.mulf %23, %23 : vector<64x128xf32>
      %26 = vector.broadcast %24 : vector<1x128xf32> to vector<64x128xf32>
      %27 = arith.mulf %26, %25 : vector<64x128xf32>
      %28 = arith.maximumf %20, %27 : vector<64x128xf32>
      %29 = vector.extract_strided_slice %3 {offsets = [1, 0], sizes = [1, 128], strides = [1, 1]} : vector<8x128xf32> to vector<1x128xf32>
      %30 = vector.broadcast %29 : vector<1x128xf32> to vector<64x128xf32>
      %31 = arith.subf %19, %30 : vector<64x128xf32>
      %32 = vector.extract_strided_slice %4 {offsets = [1, 0], sizes = [1, 128], strides = [1, 1]} : vector<8x128xf32> to vector<1x128xf32>
      %33 = arith.mulf %31, %31 : vector<64x128xf32>
      %34 = vector.broadcast %32 : vector<1x128xf32> to vector<64x128xf32>
      %35 = arith.mulf %34, %33 : vector<64x128xf32>
      %36 = arith.maximumf %28, %35 : vector<64x128xf32>
      %37 = vector.extract_strided_slice %3 {offsets = [2, 0], sizes = [1, 128], strides = [1, 1]} : vector<8x128xf32> to vector<1x128xf32>
      %38 = vector.broadcast %37 : vector<1x128xf32> to vector<64x128xf32>
      %39 = arith.subf %19, %38 : vector<64x128xf32>
      %40 = vector.extract_strided_slice %4 {offsets = [2, 0], sizes = [1, 128], strides = [1, 1]} : vector<8x128xf32> to vector<1x128xf32>
      %41 = arith.mulf %39, %39 : vector<64x128xf32>
      %42 = vector.broadcast %40 : vector<1x128xf32> to vector<64x128xf32>
      %43 = arith.mulf %42, %41 : vector<64x128xf32>
      %44 = arith.maximumf %36, %43 : vector<64x128xf32>
      %45 = vector.extract_strided_slice %3 {offsets = [3, 0], sizes = [1, 128], strides = [1, 1]} : vector<8x128xf32> to vector<1x128xf32>
      %46 = vector.broadcast %45 : vector<1x128xf32> to vector<64x128xf32>
      %47 = arith.subf %19, %46 : vector<64x128xf32>
      %48 = vector.extract_strided_slice %4 {offsets = [3, 0], sizes = [1, 128], strides = [1, 1]} : vector<8x128xf32> to vector<1x128xf32>
      %49 = arith.mulf %47, %47 : vector<64x128xf32>
      %50 = vector.broadcast %48 : vector<1x128xf32> to vector<64x128xf32>
      %51 = arith.mulf %50, %49 : vector<64x128xf32>
      %52 = arith.maximumf %44, %51 : vector<64x128xf32>
      %53 = vector.extract_strided_slice %3 {offsets = [4, 0], sizes = [1, 128], strides = [1, 1]} : vector<8x128xf32> to vector<1x128xf32>
      %54 = vector.broadcast %53 : vector<1x128xf32> to vector<64x128xf32>
      %55 = arith.subf %19, %54 : vector<64x128xf32>
      %56 = vector.extract_strided_slice %4 {offsets = [4, 0], sizes = [1, 128], strides = [1, 1]} : vector<8x128xf32> to vector<1x128xf32>
      %57 = arith.mulf %55, %55 : vector<64x128xf32>
      %58 = vector.broadcast %56 : vector<1x128xf32> to vector<64x128xf32>
      %59 = arith.mulf %58, %57 : vector<64x128xf32>
      %60 = arith.maximumf %52, %59 : vector<64x128xf32>
      %61 = vector.extract_strided_slice %3 {offsets = [5, 0], sizes = [1, 128], strides = [1, 1]} : vector<8x128xf32> to vector<1x128xf32>
      %62 = vector.broadcast %61 : vector<1x128xf32> to vector<64x128xf32>
      %63 = arith.subf %19, %62 : vector<64x128xf32>
      %64 = vector.extract_strided_slice %4 {offsets = [5, 0], sizes = [1, 128], strides = [1, 1]} : vector<8x128xf32> to vector<1x128xf32>
      %65 = arith.mulf %63, %63 : vector<64x128xf32>
      %66 = vector.broadcast %64 : vector<1x128xf32> to vector<64x128xf32>
      %67 = arith.mulf %66, %65 : vector<64x128xf32>
      %68 = arith.maximumf %60, %67 : vector<64x128xf32>
      %69 = vector.extract_strided_slice %3 {offsets = [6, 0], sizes = [1, 128], strides = [1, 1]} : vector<8x128xf32> to vector<1x128xf32>
      %70 = vector.broadcast %69 : vector<1x128xf32> to vector<64x128xf32>
      %71 = arith.subf %19, %70 : vector<64x128xf32>
      %72 = vector.extract_strided_slice %4 {offsets = [6, 0], sizes = [1, 128], strides = [1, 1]} : vector<8x128xf32> to vector<1x128xf32>
      %73 = arith.mulf %71, %71 : vector<64x128xf32>
      %74 = vector.broadcast %72 : vector<1x128xf32> to vector<64x128xf32>
      %75 = arith.mulf %74, %73 : vector<64x128xf32>
      %76 = arith.maximumf %68, %75 : vector<64x128xf32>
      %77 = vector.extract_strided_slice %3 {offsets = [7, 0], sizes = [1, 128], strides = [1, 1]} : vector<8x128xf32> to vector<1x128xf32>
      %78 = vector.broadcast %77 : vector<1x128xf32> to vector<64x128xf32>
      %79 = arith.subf %19, %78 : vector<64x128xf32>
      %80 = vector.extract_strided_slice %4 {offsets = [7, 0], sizes = [1, 128], strides = [1, 1]} : vector<8x128xf32> to vector<1x128xf32>
      %81 = arith.mulf %79, %79 : vector<64x128xf32>
      %82 = vector.broadcast %80 : vector<1x128xf32> to vector<64x128xf32>
      %83 = arith.mulf %82, %81 : vector<64x128xf32>
      %84 = arith.maximumf %76, %83 : vector<64x128xf32>
      %cst_15 = arith.constant 0.000000e+00 : f32
      %85 = vector.broadcast %cst_15 : f32 to vector<64x128xf32>
      %86 = vector.extract_strided_slice %3 {offsets = [0, 0], sizes = [1, 128], strides = [1, 1]} : vector<8x128xf32> to vector<1x128xf32>
      %87 = vector.broadcast %86 : vector<1x128xf32> to vector<64x128xf32>
      %88 = arith.subf %19, %87 : vector<64x128xf32>
      %89 = vector.extract_strided_slice %4 {offsets = [0, 0], sizes = [1, 128], strides = [1, 1]} : vector<8x128xf32> to vector<1x128xf32>
      %90 = arith.mulf %88, %88 : vector<64x128xf32>
      %91 = vector.broadcast %89 : vector<1x128xf32> to vector<64x128xf32>
      %92 = arith.mulf %91, %90 : vector<64x128xf32>
      %93 = arith.subf %92, %84 : vector<64x128xf32>
      %94 = math.exp %93 : vector<64x128xf32>
      %95 = arith.addf %85, %94 : vector<64x128xf32>
      %96 = vector.extract_strided_slice %3 {offsets = [1, 0], sizes = [1, 128], strides = [1, 1]} : vector<8x128xf32> to vector<1x128xf32>
      %97 = vector.broadcast %96 : vector<1x128xf32> to vector<64x128xf32>
      %98 = arith.subf %19, %97 : vector<64x128xf32>
      %99 = vector.extract_strided_slice %4 {offsets = [1, 0], sizes = [1, 128], strides = [1, 1]} : vector<8x128xf32> to vector<1x128xf32>
      %100 = arith.mulf %98, %98 : vector<64x128xf32>
      %101 = vector.broadcast %99 : vector<1x128xf32> to vector<64x128xf32>
      %102 = arith.mulf %101, %100 : vector<64x128xf32>
      %103 = arith.subf %102, %84 : vector<64x128xf32>
      %104 = math.exp %103 : vector<64x128xf32>
      %105 = arith.addf %95, %104 : vector<64x128xf32>
      %106 = vector.extract_strided_slice %3 {offsets = [2, 0], sizes = [1, 128], strides = [1, 1]} : vector<8x128xf32> to vector<1x128xf32>
      %107 = vector.broadcast %106 : vector<1x128xf32> to vector<64x128xf32>
      %108 = arith.subf %19, %107 : vector<64x128xf32>
      %109 = vector.extract_strided_slice %4 {offsets = [2, 0], sizes = [1, 128], strides = [1, 1]} : vector<8x128xf32> to vector<1x128xf32>
      %110 = arith.mulf %108, %108 : vector<64x128xf32>
      %111 = vector.broadcast %109 : vector<1x128xf32> to vector<64x128xf32>
      %112 = arith.mulf %111, %110 : vector<64x128xf32>
      %113 = arith.subf %112, %84 : vector<64x128xf32>
      %114 = math.exp %113 : vector<64x128xf32>
      %115 = arith.addf %105, %114 : vector<64x128xf32>
      %116 = vector.extract_strided_slice %3 {offsets = [3, 0], sizes = [1, 128], strides = [1, 1]} : vector<8x128xf32> to vector<1x128xf32>
      %117 = vector.broadcast %116 : vector<1x128xf32> to vector<64x128xf32>
      %118 = arith.subf %19, %117 : vector<64x128xf32>
      %119 = vector.extract_strided_slice %4 {offsets = [3, 0], sizes = [1, 128], strides = [1, 1]} : vector<8x128xf32> to vector<1x128xf32>
      %120 = arith.mulf %118, %118 : vector<64x128xf32>
      %121 = vector.broadcast %119 : vector<1x128xf32> to vector<64x128xf32>
      %122 = arith.mulf %121, %120 : vector<64x128xf32>
      %123 = arith.subf %122, %84 : vector<64x128xf32>
      %124 = math.exp %123 : vector<64x128xf32>
      %125 = arith.addf %115, %124 : vector<64x128xf32>
      %126 = vector.extract_strided_slice %3 {offsets = [4, 0], sizes = [1, 128], strides = [1, 1]} : vector<8x128xf32> to vector<1x128xf32>
      %127 = vector.broadcast %126 : vector<1x128xf32> to vector<64x128xf32>
      %128 = arith.subf %19, %127 : vector<64x128xf32>
      %129 = vector.extract_strided_slice %4 {offsets = [4, 0], sizes = [1, 128], strides = [1, 1]} : vector<8x128xf32> to vector<1x128xf32>
      %130 = arith.mulf %128, %128 : vector<64x128xf32>
      %131 = vector.broadcast %129 : vector<1x128xf32> to vector<64x128xf32>
      %132 = arith.mulf %131, %130 : vector<64x128xf32>
      %133 = arith.subf %132, %84 : vector<64x128xf32>
      %134 = math.exp %133 : vector<64x128xf32>
      %135 = arith.addf %125, %134 : vector<64x128xf32>
      %136 = vector.extract_strided_slice %3 {offsets = [5, 0], sizes = [1, 128], strides = [1, 1]} : vector<8x128xf32> to vector<1x128xf32>
      %137 = vector.broadcast %136 : vector<1x128xf32> to vector<64x128xf32>
      %138 = arith.subf %19, %137 : vector<64x128xf32>
      %139 = vector.extract_strided_slice %4 {offsets = [5, 0], sizes = [1, 128], strides = [1, 1]} : vector<8x128xf32> to vector<1x128xf32>
      %140 = arith.mulf %138, %138 : vector<64x128xf32>
      %141 = vector.broadcast %139 : vector<1x128xf32> to vector<64x128xf32>
      %142 = arith.mulf %141, %140 : vector<64x128xf32>
      %143 = arith.subf %142, %84 : vector<64x128xf32>
      %144 = math.exp %143 : vector<64x128xf32>
      %145 = arith.addf %135, %144 : vector<64x128xf32>
      %146 = vector.extract_strided_slice %3 {offsets = [6, 0], sizes = [1, 128], strides = [1, 1]} : vector<8x128xf32> to vector<1x128xf32>
      %147 = vector.broadcast %146 : vector<1x128xf32> to vector<64x128xf32>
      %148 = arith.subf %19, %147 : vector<64x128xf32>
      %149 = vector.extract_strided_slice %4 {offsets = [6, 0], sizes = [1, 128], strides = [1, 1]} : vector<8x128xf32> to vector<1x128xf32>
      %150 = arith.mulf %148, %148 : vector<64x128xf32>
      %151 = vector.broadcast %149 : vector<1x128xf32> to vector<64x128xf32>
      %152 = arith.mulf %151, %150 : vector<64x128xf32>
      %153 = arith.subf %152, %84 : vector<64x128xf32>
      %154 = math.exp %153 : vector<64x128xf32>
      %155 = arith.addf %145, %154 : vector<64x128xf32>
      %156 = vector.extract_strided_slice %3 {offsets = [7, 0], sizes = [1, 128], strides = [1, 1]} : vector<8x128xf32> to vector<1x128xf32>
      %157 = vector.broadcast %156 : vector<1x128xf32> to vector<64x128xf32>
      %158 = arith.subf %19, %157 : vector<64x128xf32>
      %159 = vector.extract_strided_slice %4 {offsets = [7, 0], sizes = [1, 128], strides = [1, 1]} : vector<8x128xf32> to vector<1x128xf32>
      %160 = arith.mulf %158, %158 : vector<64x128xf32>
      %161 = vector.broadcast %159 : vector<1x128xf32> to vector<64x128xf32>
      %162 = arith.mulf %161, %160 : vector<64x128xf32>
      %163 = arith.subf %162, %84 : vector<64x128xf32>
      %164 = math.exp %163 : vector<64x128xf32>
      %165 = arith.addf %155, %164 : vector<64x128xf32>
      %cst_16 = arith.constant 1.000000e+00 : f32
      %166 = vector.broadcast %cst_16 : f32 to vector<64x128xf32>
      %167 = arith.divf %166, %165 : vector<64x128xf32>
      %cst_17 = arith.constant 0.000000e+00 : f32
      %168 = vector.broadcast %cst_17 : f32 to vector<64x128xf32>
      %169 = vector.extract_strided_slice %3 {offsets = [0, 0], sizes = [1, 128], strides = [1, 1]} : vector<8x128xf32> to vector<1x128xf32>
      %170 = vector.broadcast %169 : vector<1x128xf32> to vector<64x128xf32>
      %171 = arith.subf %19, %170 : vector<64x128xf32>
      %172 = vector.extract_strided_slice %4 {offsets = [0, 0], sizes = [1, 128], strides = [1, 1]} : vector<8x128xf32> to vector<1x128xf32>
      %173 = arith.mulf %171, %171 : vector<64x128xf32>
      %174 = vector.broadcast %172 : vector<1x128xf32> to vector<64x128xf32>
      %175 = arith.mulf %174, %173 : vector<64x128xf32>
      %176 = arith.subf %175, %84 : vector<64x128xf32>
      %177 = math.exp %176 : vector<64x128xf32>
      %178 = arith.mulf %177, %167 : vector<64x128xf32>
      %179 = arith.mulf %178, %171 : vector<64x128xf32>
      %180 = arith.addf %168, %179 : vector<64x128xf32>
      %cst_18 = arith.constant dense<0.000000e+00> : vector<128xf32>
      %181 = vector.multi_reduction <add>, %179, %cst_18 [0] : vector<64x128xf32> to vector<128xf32>
      %182 = vector.shape_cast %181 : vector<128xf32> to vector<1x128xf32>
      %183 = vector.extract_strided_slice %3 {offsets = [1, 0], sizes = [1, 128], strides = [1, 1]} : vector<8x128xf32> to vector<1x128xf32>
      %184 = vector.broadcast %183 : vector<1x128xf32> to vector<64x128xf32>
      %185 = arith.subf %19, %184 : vector<64x128xf32>
      %186 = vector.extract_strided_slice %4 {offsets = [1, 0], sizes = [1, 128], strides = [1, 1]} : vector<8x128xf32> to vector<1x128xf32>
      %187 = arith.mulf %185, %185 : vector<64x128xf32>
      %188 = vector.broadcast %186 : vector<1x128xf32> to vector<64x128xf32>
      %189 = arith.mulf %188, %187 : vector<64x128xf32>
      %190 = arith.subf %189, %84 : vector<64x128xf32>
      %191 = math.exp %190 : vector<64x128xf32>
      %192 = arith.mulf %191, %167 : vector<64x128xf32>
      %193 = arith.mulf %192, %185 : vector<64x128xf32>
      %194 = arith.addf %180, %193 : vector<64x128xf32>
      %cst_19 = arith.constant dense<0.000000e+00> : vector<128xf32>
      %195 = vector.multi_reduction <add>, %193, %cst_19 [0] : vector<64x128xf32> to vector<128xf32>
      %196 = vector.shape_cast %195 : vector<128xf32> to vector<1x128xf32>
      %197 = vector.extract_strided_slice %3 {offsets = [2, 0], sizes = [1, 128], strides = [1, 1]} : vector<8x128xf32> to vector<1x128xf32>
      %198 = vector.broadcast %197 : vector<1x128xf32> to vector<64x128xf32>
      %199 = arith.subf %19, %198 : vector<64x128xf32>
      %200 = vector.extract_strided_slice %4 {offsets = [2, 0], sizes = [1, 128], strides = [1, 1]} : vector<8x128xf32> to vector<1x128xf32>
      %201 = arith.mulf %199, %199 : vector<64x128xf32>
      %202 = vector.broadcast %200 : vector<1x128xf32> to vector<64x128xf32>
      %203 = arith.mulf %202, %201 : vector<64x128xf32>
      %204 = arith.subf %203, %84 : vector<64x128xf32>
      %205 = math.exp %204 : vector<64x128xf32>
      %206 = arith.mulf %205, %167 : vector<64x128xf32>
      %207 = arith.mulf %206, %199 : vector<64x128xf32>
      %208 = arith.addf %194, %207 : vector<64x128xf32>
      %cst_20 = arith.constant dense<0.000000e+00> : vector<128xf32>
      %209 = vector.multi_reduction <add>, %207, %cst_20 [0] : vector<64x128xf32> to vector<128xf32>
      %210 = vector.shape_cast %209 : vector<128xf32> to vector<1x128xf32>
      %211 = vector.extract_strided_slice %3 {offsets = [3, 0], sizes = [1, 128], strides = [1, 1]} : vector<8x128xf32> to vector<1x128xf32>
      %212 = vector.broadcast %211 : vector<1x128xf32> to vector<64x128xf32>
      %213 = arith.subf %19, %212 : vector<64x128xf32>
      %214 = vector.extract_strided_slice %4 {offsets = [3, 0], sizes = [1, 128], strides = [1, 1]} : vector<8x128xf32> to vector<1x128xf32>
      %215 = arith.mulf %213, %213 : vector<64x128xf32>
      %216 = vector.broadcast %214 : vector<1x128xf32> to vector<64x128xf32>
      %217 = arith.mulf %216, %215 : vector<64x128xf32>
      %218 = arith.subf %217, %84 : vector<64x128xf32>
      %219 = math.exp %218 : vector<64x128xf32>
      %220 = arith.mulf %219, %167 : vector<64x128xf32>
      %221 = arith.mulf %220, %213 : vector<64x128xf32>
      %222 = arith.addf %208, %221 : vector<64x128xf32>
      %cst_21 = arith.constant dense<0.000000e+00> : vector<128xf32>
      %223 = vector.multi_reduction <add>, %221, %cst_21 [0] : vector<64x128xf32> to vector<128xf32>
      %224 = vector.shape_cast %223 : vector<128xf32> to vector<1x128xf32>
      %225 = vector.extract_strided_slice %3 {offsets = [4, 0], sizes = [1, 128], strides = [1, 1]} : vector<8x128xf32> to vector<1x128xf32>
      %226 = vector.broadcast %225 : vector<1x128xf32> to vector<64x128xf32>
      %227 = arith.subf %19, %226 : vector<64x128xf32>
      %228 = vector.extract_strided_slice %4 {offsets = [4, 0], sizes = [1, 128], strides = [1, 1]} : vector<8x128xf32> to vector<1x128xf32>
      %229 = arith.mulf %227, %227 : vector<64x128xf32>
      %230 = vector.broadcast %228 : vector<1x128xf32> to vector<64x128xf32>
      %231 = arith.mulf %230, %229 : vector<64x128xf32>
      %232 = arith.subf %231, %84 : vector<64x128xf32>
      %233 = math.exp %232 : vector<64x128xf32>
      %234 = arith.mulf %233, %167 : vector<64x128xf32>
      %235 = arith.mulf %234, %227 : vector<64x128xf32>
      %236 = arith.addf %222, %235 : vector<64x128xf32>
      %cst_22 = arith.constant dense<0.000000e+00> : vector<128xf32>
      %237 = vector.multi_reduction <add>, %235, %cst_22 [0] : vector<64x128xf32> to vector<128xf32>
      %238 = vector.shape_cast %237 : vector<128xf32> to vector<1x128xf32>
      %239 = vector.extract_strided_slice %3 {offsets = [5, 0], sizes = [1, 128], strides = [1, 1]} : vector<8x128xf32> to vector<1x128xf32>
      %240 = vector.broadcast %239 : vector<1x128xf32> to vector<64x128xf32>
      %241 = arith.subf %19, %240 : vector<64x128xf32>
      %242 = vector.extract_strided_slice %4 {offsets = [5, 0], sizes = [1, 128], strides = [1, 1]} : vector<8x128xf32> to vector<1x128xf32>
      %243 = arith.mulf %241, %241 : vector<64x128xf32>
      %244 = vector.broadcast %242 : vector<1x128xf32> to vector<64x128xf32>
      %245 = arith.mulf %244, %243 : vector<64x128xf32>
      %246 = arith.subf %245, %84 : vector<64x128xf32>
      %247 = math.exp %246 : vector<64x128xf32>
      %248 = arith.mulf %247, %167 : vector<64x128xf32>
      %249 = arith.mulf %248, %241 : vector<64x128xf32>
      %250 = arith.addf %236, %249 : vector<64x128xf32>
      %cst_23 = arith.constant dense<0.000000e+00> : vector<128xf32>
      %251 = vector.multi_reduction <add>, %249, %cst_23 [0] : vector<64x128xf32> to vector<128xf32>
      %252 = vector.shape_cast %251 : vector<128xf32> to vector<1x128xf32>
      %253 = vector.extract_strided_slice %3 {offsets = [6, 0], sizes = [1, 128], strides = [1, 1]} : vector<8x128xf32> to vector<1x128xf32>
      %254 = vector.broadcast %253 : vector<1x128xf32> to vector<64x128xf32>
      %255 = arith.subf %19, %254 : vector<64x128xf32>
      %256 = vector.extract_strided_slice %4 {offsets = [6, 0], sizes = [1, 128], strides = [1, 1]} : vector<8x128xf32> to vector<1x128xf32>
      %257 = arith.mulf %255, %255 : vector<64x128xf32>
      %258 = vector.broadcast %256 : vector<1x128xf32> to vector<64x128xf32>
      %259 = arith.mulf %258, %257 : vector<64x128xf32>
      %260 = arith.subf %259, %84 : vector<64x128xf32>
      %261 = math.exp %260 : vector<64x128xf32>
      %262 = arith.mulf %261, %167 : vector<64x128xf32>
      %263 = arith.mulf %262, %255 : vector<64x128xf32>
      %264 = arith.addf %250, %263 : vector<64x128xf32>
      %cst_24 = arith.constant dense<0.000000e+00> : vector<128xf32>
      %265 = vector.multi_reduction <add>, %263, %cst_24 [0] : vector<64x128xf32> to vector<128xf32>
      %266 = vector.shape_cast %265 : vector<128xf32> to vector<1x128xf32>
      %267 = vector.extract_strided_slice %3 {offsets = [7, 0], sizes = [1, 128], strides = [1, 1]} : vector<8x128xf32> to vector<1x128xf32>
      %268 = vector.broadcast %267 : vector<1x128xf32> to vector<64x128xf32>
      %269 = arith.subf %19, %268 : vector<64x128xf32>
      %270 = vector.extract_strided_slice %4 {offsets = [7, 0], sizes = [1, 128], strides = [1, 1]} : vector<8x128xf32> to vector<1x128xf32>
      %271 = arith.mulf %269, %269 : vector<64x128xf32>
      %272 = vector.broadcast %270 : vector<1x128xf32> to vector<64x128xf32>
      %273 = arith.mulf %272, %271 : vector<64x128xf32>
      %274 = arith.subf %273, %84 : vector<64x128xf32>
      %275 = math.exp %274 : vector<64x128xf32>
      %276 = arith.mulf %275, %167 : vector<64x128xf32>
      %277 = arith.mulf %276, %269 : vector<64x128xf32>
      %278 = arith.addf %264, %277 : vector<64x128xf32>
      %cst_25 = arith.constant dense<0.000000e+00> : vector<128xf32>
      %279 = vector.multi_reduction <add>, %277, %cst_25 [0] : vector<64x128xf32> to vector<128xf32>
      %280 = vector.shape_cast %279 : vector<128xf32> to vector<1x128xf32>
      %281 = tpu.concatenate %182, %196, %210, %224, %238, %252, %266, %280 in 0 : vector<1x128xf32>, vector<1x128xf32>, vector<1x128xf32>, vector<1x128xf32>, vector<1x128xf32>, vector<1x128xf32>, vector<1x128xf32>, vector<1x128xf32> -> vector<8x128xf32>
      %282 = arith.addf %arg8, %281 : vector<8x128xf32>
      %283 = vector.extract_strided_slice %18 {offsets = [64, 0], sizes = [64, 128], strides = [1, 1]} : vector<128x128xf32> to vector<64x128xf32>
      %cst_26 = arith.constant 0xFF800000 : f32
      %284 = vector.broadcast %cst_26 : f32 to vector<64x128xf32>
      %285 = vector.extract_strided_slice %3 {offsets = [0, 0], sizes = [1, 128], strides = [1, 1]} : vector<8x128xf32> to vector<1x128xf32>
      %286 = vector.broadcast %285 : vector<1x128xf32> to vector<64x128xf32>
      %287 = arith.subf %283, %286 : vector<64x128xf32>
      %288 = vector.extract_strided_slice %4 {offsets = [0, 0], sizes = [1, 128], strides = [1, 1]} : vector<8x128xf32> to vector<1x128xf32>
      %289 = arith.mulf %287, %287 : vector<64x128xf32>
      %290 = vector.broadcast %288 : vector<1x128xf32> to vector<64x128xf32>
      %291 = arith.mulf %290, %289 : vector<64x128xf32>
      %292 = arith.maximumf %284, %291 : vector<64x128xf32>
      %293 = vector.extract_strided_slice %3 {offsets = [1, 0], sizes = [1, 128], strides = [1, 1]} : vector<8x128xf32> to vector<1x128xf32>
      %294 = vector.broadcast %293 : vector<1x128xf32> to vector<64x128xf32>
      %295 = arith.subf %283, %294 : vector<64x128xf32>
      %296 = vector.extract_strided_slice %4 {offsets = [1, 0], sizes = [1, 128], strides = [1, 1]} : vector<8x128xf32> to vector<1x128xf32>
      %297 = arith.mulf %295, %295 : vector<64x128xf32>
      %298 = vector.broadcast %296 : vector<1x128xf32> to vector<64x128xf32>
      %299 = arith.mulf %298, %297 : vector<64x128xf32>
      %300 = arith.maximumf %292, %299 : vector<64x128xf32>
      %301 = vector.extract_strided_slice %3 {offsets = [2, 0], sizes = [1, 128], strides = [1, 1]} : vector<8x128xf32> to vector<1x128xf32>
      %302 = vector.broadcast %301 : vector<1x128xf32> to vector<64x128xf32>
      %303 = arith.subf %283, %302 : vector<64x128xf32>
      %304 = vector.extract_strided_slice %4 {offsets = [2, 0], sizes = [1, 128], strides = [1, 1]} : vector<8x128xf32> to vector<1x128xf32>
      %305 = arith.mulf %303, %303 : vector<64x128xf32>
      %306 = vector.broadcast %304 : vector<1x128xf32> to vector<64x128xf32>
      %307 = arith.mulf %306, %305 : vector<64x128xf32>
      %308 = arith.maximumf %300, %307 : vector<64x128xf32>
      %309 = vector.extract_strided_slice %3 {offsets = [3, 0], sizes = [1, 128], strides = [1, 1]} : vector<8x128xf32> to vector<1x128xf32>
      %310 = vector.broadcast %309 : vector<1x128xf32> to vector<64x128xf32>
      %311 = arith.subf %283, %310 : vector<64x128xf32>
      %312 = vector.extract_strided_slice %4 {offsets = [3, 0], sizes = [1, 128], strides = [1, 1]} : vector<8x128xf32> to vector<1x128xf32>
      %313 = arith.mulf %311, %311 : vector<64x128xf32>
      %314 = vector.broadcast %312 : vector<1x128xf32> to vector<64x128xf32>
      %315 = arith.mulf %314, %313 : vector<64x128xf32>
      %316 = arith.maximumf %308, %315 : vector<64x128xf32>
      %317 = vector.extract_strided_slice %3 {offsets = [4, 0], sizes = [1, 128], strides = [1, 1]} : vector<8x128xf32> to vector<1x128xf32>
      %318 = vector.broadcast %317 : vector<1x128xf32> to vector<64x128xf32>
      %319 = arith.subf %283, %318 : vector<64x128xf32>
      %320 = vector.extract_strided_slice %4 {offsets = [4, 0], sizes = [1, 128], strides = [1, 1]} : vector<8x128xf32> to vector<1x128xf32>
      %321 = arith.mulf %319, %319 : vector<64x128xf32>
      %322 = vector.broadcast %320 : vector<1x128xf32> to vector<64x128xf32>
      %323 = arith.mulf %322, %321 : vector<64x128xf32>
      %324 = arith.maximumf %316, %323 : vector<64x128xf32>
      %325 = vector.extract_strided_slice %3 {offsets = [5, 0], sizes = [1, 128], strides = [1, 1]} : vector<8x128xf32> to vector<1x128xf32>
      %326 = vector.broadcast %325 : vector<1x128xf32> to vector<64x128xf32>
      %327 = arith.subf %283, %326 : vector<64x128xf32>
      %328 = vector.extract_strided_slice %4 {offsets = [5, 0], sizes = [1, 128], strides = [1, 1]} : vector<8x128xf32> to vector<1x128xf32>
      %329 = arith.mulf %327, %327 : vector<64x128xf32>
      %330 = vector.broadcast %328 : vector<1x128xf32> to vector<64x128xf32>
      %331 = arith.mulf %330, %329 : vector<64x128xf32>
      %332 = arith.maximumf %324, %331 : vector<64x128xf32>
      %333 = vector.extract_strided_slice %3 {offsets = [6, 0], sizes = [1, 128], strides = [1, 1]} : vector<8x128xf32> to vector<1x128xf32>
      %334 = vector.broadcast %333 : vector<1x128xf32> to vector<64x128xf32>
      %335 = arith.subf %283, %334 : vector<64x128xf32>
      %336 = vector.extract_strided_slice %4 {offsets = [6, 0], sizes = [1, 128], strides = [1, 1]} : vector<8x128xf32> to vector<1x128xf32>
      %337 = arith.mulf %335, %335 : vector<64x128xf32>
      %338 = vector.broadcast %336 : vector<1x128xf32> to vector<64x128xf32>
      %339 = arith.mulf %338, %337 : vector<64x128xf32>
      %340 = arith.maximumf %332, %339 : vector<64x128xf32>
      %341 = vector.extract_strided_slice %3 {offsets = [7, 0], sizes = [1, 128], strides = [1, 1]} : vector<8x128xf32> to vector<1x128xf32>
      %342 = vector.broadcast %341 : vector<1x128xf32> to vector<64x128xf32>
      %343 = arith.subf %283, %342 : vector<64x128xf32>
      %344 = vector.extract_strided_slice %4 {offsets = [7, 0], sizes = [1, 128], strides = [1, 1]} : vector<8x128xf32> to vector<1x128xf32>
      %345 = arith.mulf %343, %343 : vector<64x128xf32>
      %346 = vector.broadcast %344 : vector<1x128xf32> to vector<64x128xf32>
      %347 = arith.mulf %346, %345 : vector<64x128xf32>
      %348 = arith.maximumf %340, %347 : vector<64x128xf32>
      %cst_27 = arith.constant 0.000000e+00 : f32
      %349 = vector.broadcast %cst_27 : f32 to vector<64x128xf32>
      %350 = vector.extract_strided_slice %3 {offsets = [0, 0], sizes = [1, 128], strides = [1, 1]} : vector<8x128xf32> to vector<1x128xf32>
      %351 = vector.broadcast %350 : vector<1x128xf32> to vector<64x128xf32>
      %352 = arith.subf %283, %351 : vector<64x128xf32>
      %353 = vector.extract_strided_slice %4 {offsets = [0, 0], sizes = [1, 128], strides = [1, 1]} : vector<8x128xf32> to vector<1x128xf32>
      %354 = arith.mulf %352, %352 : vector<64x128xf32>
      %355 = vector.broadcast %353 : vector<1x128xf32> to vector<64x128xf32>
      %356 = arith.mulf %355, %354 : vector<64x128xf32>
      %357 = arith.subf %356, %348 : vector<64x128xf32>
      %358 = math.exp %357 : vector<64x128xf32>
      %359 = arith.addf %349, %358 : vector<64x128xf32>
      %360 = vector.extract_strided_slice %3 {offsets = [1, 0], sizes = [1, 128], strides = [1, 1]} : vector<8x128xf32> to vector<1x128xf32>
      %361 = vector.broadcast %360 : vector<1x128xf32> to vector<64x128xf32>
      %362 = arith.subf %283, %361 : vector<64x128xf32>
      %363 = vector.extract_strided_slice %4 {offsets = [1, 0], sizes = [1, 128], strides = [1, 1]} : vector<8x128xf32> to vector<1x128xf32>
      %364 = arith.mulf %362, %362 : vector<64x128xf32>
      %365 = vector.broadcast %363 : vector<1x128xf32> to vector<64x128xf32>
      %366 = arith.mulf %365, %364 : vector<64x128xf32>
      %367 = arith.subf %366, %348 : vector<64x128xf32>
      %368 = math.exp %367 : vector<64x128xf32>
      %369 = arith.addf %359, %368 : vector<64x128xf32>
      %370 = vector.extract_strided_slice %3 {offsets = [2, 0], sizes = [1, 128], strides = [1, 1]} : vector<8x128xf32> to vector<1x128xf32>
      %371 = vector.broadcast %370 : vector<1x128xf32> to vector<64x128xf32>
      %372 = arith.subf %283, %371 : vector<64x128xf32>
      %373 = vector.extract_strided_slice %4 {offsets = [2, 0], sizes = [1, 128], strides = [1, 1]} : vector<8x128xf32> to vector<1x128xf32>
      %374 = arith.mulf %372, %372 : vector<64x128xf32>
      %375 = vector.broadcast %373 : vector<1x128xf32> to vector<64x128xf32>
      %376 = arith.mulf %375, %374 : vector<64x128xf32>
      %377 = arith.subf %376, %348 : vector<64x128xf32>
      %378 = math.exp %377 : vector<64x128xf32>
      %379 = arith.addf %369, %378 : vector<64x128xf32>
      %380 = vector.extract_strided_slice %3 {offsets = [3, 0], sizes = [1, 128], strides = [1, 1]} : vector<8x128xf32> to vector<1x128xf32>
      %381 = vector.broadcast %380 : vector<1x128xf32> to vector<64x128xf32>
      %382 = arith.subf %283, %381 : vector<64x128xf32>
      %383 = vector.extract_strided_slice %4 {offsets = [3, 0], sizes = [1, 128], strides = [1, 1]} : vector<8x128xf32> to vector<1x128xf32>
      %384 = arith.mulf %382, %382 : vector<64x128xf32>
      %385 = vector.broadcast %383 : vector<1x128xf32> to vector<64x128xf32>
      %386 = arith.mulf %385, %384 : vector<64x128xf32>
      %387 = arith.subf %386, %348 : vector<64x128xf32>
      %388 = math.exp %387 : vector<64x128xf32>
      %389 = arith.addf %379, %388 : vector<64x128xf32>
      %390 = vector.extract_strided_slice %3 {offsets = [4, 0], sizes = [1, 128], strides = [1, 1]} : vector<8x128xf32> to vector<1x128xf32>
      %391 = vector.broadcast %390 : vector<1x128xf32> to vector<64x128xf32>
      %392 = arith.subf %283, %391 : vector<64x128xf32>
      %393 = vector.extract_strided_slice %4 {offsets = [4, 0], sizes = [1, 128], strides = [1, 1]} : vector<8x128xf32> to vector<1x128xf32>
      %394 = arith.mulf %392, %392 : vector<64x128xf32>
      %395 = vector.broadcast %393 : vector<1x128xf32> to vector<64x128xf32>
      %396 = arith.mulf %395, %394 : vector<64x128xf32>
      %397 = arith.subf %396, %348 : vector<64x128xf32>
      %398 = math.exp %397 : vector<64x128xf32>
      %399 = arith.addf %389, %398 : vector<64x128xf32>
      %400 = vector.extract_strided_slice %3 {offsets = [5, 0], sizes = [1, 128], strides = [1, 1]} : vector<8x128xf32> to vector<1x128xf32>
      %401 = vector.broadcast %400 : vector<1x128xf32> to vector<64x128xf32>
      %402 = arith.subf %283, %401 : vector<64x128xf32>
      %403 = vector.extract_strided_slice %4 {offsets = [5, 0], sizes = [1, 128], strides = [1, 1]} : vector<8x128xf32> to vector<1x128xf32>
      %404 = arith.mulf %402, %402 : vector<64x128xf32>
      %405 = vector.broadcast %403 : vector<1x128xf32> to vector<64x128xf32>
      %406 = arith.mulf %405, %404 : vector<64x128xf32>
      %407 = arith.subf %406, %348 : vector<64x128xf32>
      %408 = math.exp %407 : vector<64x128xf32>
      %409 = arith.addf %399, %408 : vector<64x128xf32>
      %410 = vector.extract_strided_slice %3 {offsets = [6, 0], sizes = [1, 128], strides = [1, 1]} : vector<8x128xf32> to vector<1x128xf32>
      %411 = vector.broadcast %410 : vector<1x128xf32> to vector<64x128xf32>
      %412 = arith.subf %283, %411 : vector<64x128xf32>
      %413 = vector.extract_strided_slice %4 {offsets = [6, 0], sizes = [1, 128], strides = [1, 1]} : vector<8x128xf32> to vector<1x128xf32>
      %414 = arith.mulf %412, %412 : vector<64x128xf32>
      %415 = vector.broadcast %413 : vector<1x128xf32> to vector<64x128xf32>
      %416 = arith.mulf %415, %414 : vector<64x128xf32>
      %417 = arith.subf %416, %348 : vector<64x128xf32>
      %418 = math.exp %417 : vector<64x128xf32>
      %419 = arith.addf %409, %418 : vector<64x128xf32>
      %420 = vector.extract_strided_slice %3 {offsets = [7, 0], sizes = [1, 128], strides = [1, 1]} : vector<8x128xf32> to vector<1x128xf32>
      %421 = vector.broadcast %420 : vector<1x128xf32> to vector<64x128xf32>
      %422 = arith.subf %283, %421 : vector<64x128xf32>
      %423 = vector.extract_strided_slice %4 {offsets = [7, 0], sizes = [1, 128], strides = [1, 1]} : vector<8x128xf32> to vector<1x128xf32>
      %424 = arith.mulf %422, %422 : vector<64x128xf32>
      %425 = vector.broadcast %423 : vector<1x128xf32> to vector<64x128xf32>
      %426 = arith.mulf %425, %424 : vector<64x128xf32>
      %427 = arith.subf %426, %348 : vector<64x128xf32>
      %428 = math.exp %427 : vector<64x128xf32>
      %429 = arith.addf %419, %428 : vector<64x128xf32>
      %cst_28 = arith.constant 1.000000e+00 : f32
      %430 = vector.broadcast %cst_28 : f32 to vector<64x128xf32>
      %431 = arith.divf %430, %429 : vector<64x128xf32>
      %cst_29 = arith.constant 0.000000e+00 : f32
      %432 = vector.broadcast %cst_29 : f32 to vector<64x128xf32>
      %433 = vector.extract_strided_slice %3 {offsets = [0, 0], sizes = [1, 128], strides = [1, 1]} : vector<8x128xf32> to vector<1x128xf32>
      %434 = vector.broadcast %433 : vector<1x128xf32> to vector<64x128xf32>
      %435 = arith.subf %283, %434 : vector<64x128xf32>
      %436 = vector.extract_strided_slice %4 {offsets = [0, 0], sizes = [1, 128], strides = [1, 1]} : vector<8x128xf32> to vector<1x128xf32>
      %437 = arith.mulf %435, %435 : vector<64x128xf32>
      %438 = vector.broadcast %436 : vector<1x128xf32> to vector<64x128xf32>
      %439 = arith.mulf %438, %437 : vector<64x128xf32>
      %440 = arith.subf %439, %348 : vector<64x128xf32>
      %441 = math.exp %440 : vector<64x128xf32>
      %442 = arith.mulf %441, %431 : vector<64x128xf32>
      %443 = arith.mulf %442, %435 : vector<64x128xf32>
      %444 = arith.addf %432, %443 : vector<64x128xf32>
      %cst_30 = arith.constant dense<0.000000e+00> : vector<128xf32>
      %445 = vector.multi_reduction <add>, %443, %cst_30 [0] : vector<64x128xf32> to vector<128xf32>
      %446 = vector.shape_cast %445 : vector<128xf32> to vector<1x128xf32>
      %447 = vector.extract_strided_slice %3 {offsets = [1, 0], sizes = [1, 128], strides = [1, 1]} : vector<8x128xf32> to vector<1x128xf32>
      %448 = vector.broadcast %447 : vector<1x128xf32> to vector<64x128xf32>
      %449 = arith.subf %283, %448 : vector<64x128xf32>
      %450 = vector.extract_strided_slice %4 {offsets = [1, 0], sizes = [1, 128], strides = [1, 1]} : vector<8x128xf32> to vector<1x128xf32>
      %451 = arith.mulf %449, %449 : vector<64x128xf32>
      %452 = vector.broadcast %450 : vector<1x128xf32> to vector<64x128xf32>
      %453 = arith.mulf %452, %451 : vector<64x128xf32>
      %454 = arith.subf %453, %348 : vector<64x128xf32>
      %455 = math.exp %454 : vector<64x128xf32>
      %456 = arith.mulf %455, %431 : vector<64x128xf32>
      %457 = arith.mulf %456, %449 : vector<64x128xf32>
      %458 = arith.addf %444, %457 : vector<64x128xf32>
      %cst_31 = arith.constant dense<0.000000e+00> : vector<128xf32>
      %459 = vector.multi_reduction <add>, %457, %cst_31 [0] : vector<64x128xf32> to vector<128xf32>
      %460 = vector.shape_cast %459 : vector<128xf32> to vector<1x128xf32>
      %461 = vector.extract_strided_slice %3 {offsets = [2, 0], sizes = [1, 128], strides = [1, 1]} : vector<8x128xf32> to vector<1x128xf32>
      %462 = vector.broadcast %461 : vector<1x128xf32> to vector<64x128xf32>
      %463 = arith.subf %283, %462 : vector<64x128xf32>
      %464 = vector.extract_strided_slice %4 {offsets = [2, 0], sizes = [1, 128], strides = [1, 1]} : vector<8x128xf32> to vector<1x128xf32>
      %465 = arith.mulf %463, %463 : vector<64x128xf32>
      %466 = vector.broadcast %464 : vector<1x128xf32> to vector<64x128xf32>
      %467 = arith.mulf %466, %465 : vector<64x128xf32>
      %468 = arith.subf %467, %348 : vector<64x128xf32>
      %469 = math.exp %468 : vector<64x128xf32>
      %470 = arith.mulf %469, %431 : vector<64x128xf32>
      %471 = arith.mulf %470, %463 : vector<64x128xf32>
      %472 = arith.addf %458, %471 : vector<64x128xf32>
      %cst_32 = arith.constant dense<0.000000e+00> : vector<128xf32>
      %473 = vector.multi_reduction <add>, %471, %cst_32 [0] : vector<64x128xf32> to vector<128xf32>
      %474 = vector.shape_cast %473 : vector<128xf32> to vector<1x128xf32>
      %475 = vector.extract_strided_slice %3 {offsets = [3, 0], sizes = [1, 128], strides = [1, 1]} : vector<8x128xf32> to vector<1x128xf32>
      %476 = vector.broadcast %475 : vector<1x128xf32> to vector<64x128xf32>
      %477 = arith.subf %283, %476 : vector<64x128xf32>
      %478 = vector.extract_strided_slice %4 {offsets = [3, 0], sizes = [1, 128], strides = [1, 1]} : vector<8x128xf32> to vector<1x128xf32>
      %479 = arith.mulf %477, %477 : vector<64x128xf32>
      %480 = vector.broadcast %478 : vector<1x128xf32> to vector<64x128xf32>
      %481 = arith.mulf %480, %479 : vector<64x128xf32>
      %482 = arith.subf %481, %348 : vector<64x128xf32>
      %483 = math.exp %482 : vector<64x128xf32>
      %484 = arith.mulf %483, %431 : vector<64x128xf32>
      %485 = arith.mulf %484, %477 : vector<64x128xf32>
      %486 = arith.addf %472, %485 : vector<64x128xf32>
      %cst_33 = arith.constant dense<0.000000e+00> : vector<128xf32>
      %487 = vector.multi_reduction <add>, %485, %cst_33 [0] : vector<64x128xf32> to vector<128xf32>
      %488 = vector.shape_cast %487 : vector<128xf32> to vector<1x128xf32>
      %489 = vector.extract_strided_slice %3 {offsets = [4, 0], sizes = [1, 128], strides = [1, 1]} : vector<8x128xf32> to vector<1x128xf32>
      %490 = vector.broadcast %489 : vector<1x128xf32> to vector<64x128xf32>
      %491 = arith.subf %283, %490 : vector<64x128xf32>
      %492 = vector.extract_strided_slice %4 {offsets = [4, 0], sizes = [1, 128], strides = [1, 1]} : vector<8x128xf32> to vector<1x128xf32>
      %493 = arith.mulf %491, %491 : vector<64x128xf32>
      %494 = vector.broadcast %492 : vector<1x128xf32> to vector<64x128xf32>
      %495 = arith.mulf %494, %493 : vector<64x128xf32>
      %496 = arith.subf %495, %348 : vector<64x128xf32>
      %497 = math.exp %496 : vector<64x128xf32>
      %498 = arith.mulf %497, %431 : vector<64x128xf32>
      %499 = arith.mulf %498, %491 : vector<64x128xf32>
      %500 = arith.addf %486, %499 : vector<64x128xf32>
      %cst_34 = arith.constant dense<0.000000e+00> : vector<128xf32>
      %501 = vector.multi_reduction <add>, %499, %cst_34 [0] : vector<64x128xf32> to vector<128xf32>
      %502 = vector.shape_cast %501 : vector<128xf32> to vector<1x128xf32>
      %503 = vector.extract_strided_slice %3 {offsets = [5, 0], sizes = [1, 128], strides = [1, 1]} : vector<8x128xf32> to vector<1x128xf32>
      %504 = vector.broadcast %503 : vector<1x128xf32> to vector<64x128xf32>
      %505 = arith.subf %283, %504 : vector<64x128xf32>
      %506 = vector.extract_strided_slice %4 {offsets = [5, 0], sizes = [1, 128], strides = [1, 1]} : vector<8x128xf32> to vector<1x128xf32>
      %507 = arith.mulf %505, %505 : vector<64x128xf32>
      %508 = vector.broadcast %506 : vector<1x128xf32> to vector<64x128xf32>
      %509 = arith.mulf %508, %507 : vector<64x128xf32>
      %510 = arith.subf %509, %348 : vector<64x128xf32>
      %511 = math.exp %510 : vector<64x128xf32>
      %512 = arith.mulf %511, %431 : vector<64x128xf32>
      %513 = arith.mulf %512, %505 : vector<64x128xf32>
      %514 = arith.addf %500, %513 : vector<64x128xf32>
      %cst_35 = arith.constant dense<0.000000e+00> : vector<128xf32>
      %515 = vector.multi_reduction <add>, %513, %cst_35 [0] : vector<64x128xf32> to vector<128xf32>
      %516 = vector.shape_cast %515 : vector<128xf32> to vector<1x128xf32>
      %517 = vector.extract_strided_slice %3 {offsets = [6, 0], sizes = [1, 128], strides = [1, 1]} : vector<8x128xf32> to vector<1x128xf32>
      %518 = vector.broadcast %517 : vector<1x128xf32> to vector<64x128xf32>
      %519 = arith.subf %283, %518 : vector<64x128xf32>
      %520 = vector.extract_strided_slice %4 {offsets = [6, 0], sizes = [1, 128], strides = [1, 1]} : vector<8x128xf32> to vector<1x128xf32>
      %521 = arith.mulf %519, %519 : vector<64x128xf32>
      %522 = vector.broadcast %520 : vector<1x128xf32> to vector<64x128xf32>
      %523 = arith.mulf %522, %521 : vector<64x128xf32>
      %524 = arith.subf %523, %348 : vector<64x128xf32>
      %525 = math.exp %524 : vector<64x128xf32>
      %526 = arith.mulf %525, %431 : vector<64x128xf32>
      %527 = arith.mulf %526, %519 : vector<64x128xf32>
      %528 = arith.addf %514, %527 : vector<64x128xf32>
      %cst_36 = arith.constant dense<0.000000e+00> : vector<128xf32>
      %529 = vector.multi_reduction <add>, %527, %cst_36 [0] : vector<64x128xf32> to vector<128xf32>
      %530 = vector.shape_cast %529 : vector<128xf32> to vector<1x128xf32>
      %531 = vector.extract_strided_slice %3 {offsets = [7, 0], sizes = [1, 128], strides = [1, 1]} : vector<8x128xf32> to vector<1x128xf32>
      %532 = vector.broadcast %531 : vector<1x128xf32> to vector<64x128xf32>
      %533 = arith.subf %283, %532 : vector<64x128xf32>
      %534 = vector.extract_strided_slice %4 {offsets = [7, 0], sizes = [1, 128], strides = [1, 1]} : vector<8x128xf32> to vector<1x128xf32>
      %535 = arith.mulf %533, %533 : vector<64x128xf32>
      %536 = vector.broadcast %534 : vector<1x128xf32> to vector<64x128xf32>
      %537 = arith.mulf %536, %535 : vector<64x128xf32>
      %538 = arith.subf %537, %348 : vector<64x128xf32>
      %539 = math.exp %538 : vector<64x128xf32>
      %540 = arith.mulf %539, %431 : vector<64x128xf32>
      %541 = arith.mulf %540, %533 : vector<64x128xf32>
      %542 = arith.addf %528, %541 : vector<64x128xf32>
      %cst_37 = arith.constant dense<0.000000e+00> : vector<128xf32>
      %543 = vector.multi_reduction <add>, %541, %cst_37 [0] : vector<64x128xf32> to vector<128xf32>
      %544 = vector.shape_cast %543 : vector<128xf32> to vector<1x128xf32>
      %545 = tpu.concatenate %446, %460, %474, %488, %502, %516, %530, %544 in 0 : vector<1x128xf32>, vector<1x128xf32>, vector<1x128xf32>, vector<1x128xf32>, vector<1x128xf32>, vector<1x128xf32>, vector<1x128xf32>, vector<1x128xf32> -> vector<8x128xf32>
      %546 = arith.addf %282, %545 : vector<8x128xf32>
      %547 = tpu.concatenate %278, %542 in 0 : vector<64x128xf32>, vector<64x128xf32> -> vector<128x128xf32>
      %548 = tpu.transpose %547, [1, 0] : vector<128x128xf32> -> vector<128x128xf32>
      %c0_38 = arith.constant 0 : index
      %c0_39 = arith.constant 0 : index
      %549 = arith.index_cast %14 : i32 to index
      %550 = vector.load %arg5[%c0_38, %c0_39, %549] : memref<1x128x512xf32, #tpu.memory_space<vmem>>, vector<1x128x128xf32>
      %551 = vector.shape_cast %550 : vector<1x128x128xf32> to vector<128x128xf32>
      %552 = vector.shape_cast %548 : vector<128x128xf32> to vector<1x128x128xf32>
      tpu.vector_store %arg5[%c0_38, %c0_39, %549], %552 {strides = array<i32>} : memref<1x128x512xf32, #tpu.memory_space<vmem>>, vector<1x128x128xf32>,
      scf.yield %546 : vector<8x128xf32>
    }
    %c4_i32_5 = arith.constant 4 : i32
    %c0_6 = arith.constant 0 : index
    %c0_7 = arith.constant 0 : index
    %c0_8 = arith.constant 0 : index
    %8 = vector.load %arg6[%c0_6, %c0_7, %c0_8] : memref<1x8x128xf32, #tpu.memory_space<vmem>>, vector<1x8x128xf32>
    %9 = vector.shape_cast %8 : vector<1x8x128xf32> to vector<8x128xf32>
    %10 = arith.addf %9, %7 : vector<8x128xf32>
    %c0_9 = arith.constant 0 : index
    %c0_10 = arith.constant 0 : index
    %c0_11 = arith.constant 0 : index
    %11 = vector.load %arg6[%c0_9, %c0_10, %c0_11] : memref<1x8x128xf32, #tpu.memory_space<vmem>>, vector<1x8x128xf32>
    %12 = vector.shape_cast %11 : vector<1x8x128xf32> to vector<8x128xf32>
    %13 = vector.shape_cast %10 : vector<8x128xf32> to vector<1x8x128xf32>
    tpu.vector_store %arg6[%c0_9, %c0_10, %c0_11], %13 {strides = array<i32>} : memref<1x8x128xf32, #tpu.memory_space<vmem>>, vector<1x8x128xf32>,
    return
  }
  func.func @transform_0(%arg0: i32, %arg1: i32) -> (i32, i32, i32) {
    %c0_i32 = arith.constant 0 : i32
    %c0_i32_0 = arith.constant 0 : i32
    return %arg0, %c0_i32, %arg1 : i32, i32, i32
  }
  func.func @transform_1(%arg0: i32, %arg1: i32) -> (i32, i32) {
    %c0_i32 = arith.constant 0 : i32
    %c0_i32_0 = arith.constant 0 : i32
    %c0_i32_1 = arith.constant 0 : i32
    return %c0_i32, %c0_i32_0 : i32, i32
  }
  func.func @transform_2(%arg0: i32, %arg1: i32) -> (i32, i32) {
    %c0_i32 = arith.constant 0 : i32
    %c0_i32_0 = arith.constant 0 : i32
    %c0_i32_1 = arith.constant 0 : i32
    return %c0_i32, %c0_i32_0 : i32, i32
  }
  func.func @transform_3(%arg0: i32, %arg1: i32) -> (i32, i32, i32) {
    %c0_i32 = arith.constant 0 : i32
    %c0_i32_0 = arith.constant 0 : i32
    return %arg0, %c0_i32, %arg1 : i32, i32, i32
  }
  func.func @transform_4(%arg0: i32, %arg1: i32) -> (i32, i32, i32) {
    %c0_i32 = arith.constant 0 : i32
    %c0_i32_0 = arith.constant 0 : i32
    %c0_i32_1 = arith.constant 0 : i32
    return %arg0, %c0_i32, %c0_i32_0 : i32, i32, i32
  }
}

module attributes {stable_mosaic.version = 11 : i64} {
  func.func @_gate_relu_kernel(%arg0: i32, %arg1: i32, %arg2: memref<1x128x1024xf32, #tpu.memory_space<vmem>>, %arg3: memref<1x128x1xf32, #tpu.memory_space<vmem>>, %arg4: memref<1x128x1024xf32, #tpu.memory_space<vmem>>) attributes {dimension_semantics = [#tpu.dimension_semantics<parallel>, #tpu.dimension_semantics<parallel>], iteration_bounds = array<i64: 2, 1>, scalar_prefetch = 0 : i64, scratch_operands = 0 : i64, tpu.core_type = #tpu.core_type<tc>, window_params = [{transform_indices = @transform_0, window_bounds = array<i64: 1, 128, 1024>}, {transform_indices = @transform_1, window_bounds = array<i64: 1, 128, 1>}, {transform_indices = @transform_2, window_bounds = array<i64: 1, 128, 1024>}]} {
    %c0 = arith.constant 0 : index
    %c0_0 = arith.constant 0 : index
    %c0_1 = arith.constant 0 : index
    %0 = vector.load %arg2[%c0, %c0_0, %c0_1] : memref<1x128x1024xf32, #tpu.memory_space<vmem>>, vector<1x128x1024xf32>
    %1 = vector.shape_cast %0 : vector<1x128x1024xf32> to vector<128x1024xf32>
    %c0_2 = arith.constant 0 : index
    %c0_3 = arith.constant 0 : index
    %c0_4 = arith.constant 0 : index
    %2 = vector.load %arg3[%c0_2, %c0_3, %c0_4] : memref<1x128x1xf32, #tpu.memory_space<vmem>>, vector<1x128x1xf32>
    %3 = vector.shape_cast %2 : vector<1x128x1xf32> to vector<128x1xf32>
    %4 = vector.broadcast %3 : vector<128x1xf32> to vector<128x1024xf32>
    %5 = arith.mulf %1, %4 : vector<128x1024xf32>
    %cst = arith.constant 0.000000e+00 : f32
    %6 = vector.broadcast %cst : f32 to vector<128x1024xf32>
    %7 = arith.maximumf %5, %6 : vector<128x1024xf32>
    %c0_5 = arith.constant 0 : index
    %c0_6 = arith.constant 0 : index
    %c0_7 = arith.constant 0 : index
    %8 = vector.load %arg4[%c0_5, %c0_6, %c0_7] : memref<1x128x1024xf32, #tpu.memory_space<vmem>>, vector<1x128x1024xf32>
    %9 = vector.shape_cast %8 : vector<1x128x1024xf32> to vector<128x1024xf32>
    %10 = vector.shape_cast %7 : vector<128x1024xf32> to vector<1x128x1024xf32>
    tpu.vector_store %arg4[%c0_5, %c0_6, %c0_7], %10 {strides = array<i32>} : memref<1x128x1024xf32, #tpu.memory_space<vmem>>, vector<1x128x1024xf32>,
    return
  }
  func.func @transform_0(%arg0: i32, %arg1: i32) -> (i32, i32, i32) {
    %c0_i32 = arith.constant 0 : i32
    %c0_i32_0 = arith.constant 0 : i32
    return %arg0, %c0_i32, %arg1 : i32, i32, i32
  }
  func.func @transform_1(%arg0: i32, %arg1: i32) -> (i32, i32, i32) {
    %c0_i32 = arith.constant 0 : i32
    %c0_i32_0 = arith.constant 0 : i32
    %c0_i32_1 = arith.constant 0 : i32
    return %arg0, %c0_i32, %c0_i32_0 : i32, i32, i32
  }
  func.func @transform_2(%arg0: i32, %arg1: i32) -> (i32, i32, i32) {
    %c0_i32 = arith.constant 0 : i32
    %c0_i32_0 = arith.constant 0 : i32
    return %arg0, %c0_i32, %arg1 : i32, i32, i32
  }
}

</mosaic_0001>

<llo_original>
// kernel: encoding_forward.2
$region0: #{encoding_forward.2}
  #allocation0 [shape = 'u32[]', space=smem, size = 0x4, offset = 0x4, fixed_abs, tag = 'smem constant byte address 0x4 - core index']
  #allocation1 [shape = 'u32[144,128]{1,0:T(1,128)}', space=vmem, size = 0x12000, scoped, tag = 'internal scratch']
  %s0 = inlined_call_operand.vmem [shape: f32[2,128,1024], index: 0, kind: input, shape index: {}]
  %s1 = inlined_call_operand.vmem [shape: f32[8,128], index: 1, kind: input, shape index: {}]
  %s2 = inlined_call_operand.vmem [shape: f32[8,128], index: 2, kind: input, shape index: {}]
  %s3 = inlined_call_operand.vmem [shape: f32[2,128,1024], index: 3, kind: output, shape index: {0}]
  %s4 = inlined_call_operand.vmem [shape: f32[2,8,128], index: 4, kind: output, shape index: {1}]
  %5 = xla_tuple %s3, %s4
  %s6 = sld [smem:[#allocation0]]
  $region106: #{encoding_forward.2} parent=0
    _
  %s8 = ssub.s32 1, %s6
  %s9 = scalar_select 0, %s8, %s6
  $region1: #{encoding_forward.2} parent=0
    #allocation2 [shape = 'u8[524288]{0}', space=vmem, size = 0x80000, scoped, tag = 'input window, operand 0']
    #allocation3 [shape = 'u8[524288]{0}', space=vmem, size = 0x80000, scoped, tag = 'output window, operand 0']
    loop: start=0, step=1, limit=6
    $region2: #{encoding_forward.2} parent=1 // loop_pre_header
      _
    $region3: #{encoding_forward.2} parent=1 // loop_header
      %s11 = sphi 0, %s15
      %p12 = scmp.ge.s32.totalorder %s11, 6
      %s18 = sphi 0, %s30
      %s19 = sphi 0, %s26
      %s20 = sphi 0, %s18
      %s21 = sphi 0, %s19
      %s22 = sphi 0, %s20
      %s23 = sphi 0, %s21
      %s35 = sphi 0, %s37
      %s38 = sphi 0, %s35
      %s39 = sphi 0, %s38
      %s55 = sphi 0, %s39
      %s59 = sphi 0, %s59
      %s61 = sphi 0, %s59
      %s62 = sphi 0, %s61
      %s76 = sphi 0, %s62
      %s80 = sphi 0, %s80
      %s82 = sphi 0, %s80
      %s83 = sphi 0, %s82
      %s97 = sphi 0, %s83
      %s105 = sphi 0, %s107
      %s108 = sphi 0, %s105
      %s109 = sphi 0, %s108
      %s125 = sphi 0, %s109
      %s131 = sphi 0, %s133
      %s134 = sphi 0, %s131
      %s135 = sphi 0, %s134
      %s151 = sphi 0, %s135
    $region4: #{encoding_forward.2} parent=1 // loop_header_branch
      %14 = sbr.rel (%p12) target = $region8
    $region5: #{encoding_forward.2} parent=1 // loop_body
      %s16 = ssub.s32 %s11, 1
      %s17 = ssub.s32 %s11, 2
      %s24 = sadd.s32 1, %s19
      %p25 = scmp.ge.s32.totalorder %s24, 2
      %s26 = scalar_select %p25, 0, %s24
      %s27 = sadd.s32 1, %s18
      %s28 = scalar_select %p25, %s27, %s18
      %p29 = scmp.ge.s32.totalorder %s28, 2
      %s30 = scalar_select %p29, 0, %s28
      %s31 = ssub.s32 %s18, %s30
      %s32 = ssub.s32 %s19, %s26
      %s33 = sor.u32 %s31, %s32
      %p34 = scmp.eq.s32.totalorder %s33, 0
      %s36 = sadd.s32 %s35, 1
      %s37 = scalar_select %p34, %s35, %s36
      %p40 = pneg %p34
      %p41 = scmp.eq.s32.totalorder %s11, 3
      %p42 = por %p40, %p41
      %p43 = scmp.ne.s32.totalorder %s35, %s38
      %p44 = scmp.eq.s32.totalorder %s11, 0
      %p45 = por %p43, %p44
      %p46 = scmp.ne.s32.totalorder %s35, %s38
      %p47 = scmp.eq.s32.totalorder %s16, 3
      %p48 = por %p46, %p47
      %p49 = scmp.ne.s32.totalorder %s38, %s39
      %p50 = scmp.eq.s32.totalorder %s16, 0
      %p51 = por %p49, %p50
      %p52 = scmp.ne.s32.totalorder %s38, %s39
      %p53 = scmp.eq.s32.totalorder %s17, 3
      %p54 = por %p52, %p53
      %p56 = scmp.ne.s32.totalorder %s39, %s55
      %p57 = scmp.eq.s32.totalorder %s17, 0
      %p58 = por %p56, %p57
      %s60 = sadd.s32 %s59, 1
      %p63 = scmp.eq.s32.totalorder %s11, 3
      %p64 = scmp.ne.s32.totalorder %s59, %s61
      %p65 = scmp.eq.s32.totalorder %s11, 0
      %p66 = por %p64, %p65
      %p67 = scmp.ne.s32.totalorder %s59, %s61
      %p68 = scmp.eq.s32.totalorder %s16, 3
      %p69 = por %p67, %p68
      %p70 = scmp.ne.s32.totalorder %s61, %s62
      %p71 = scmp.eq.s32.totalorder %s16, 0
      %p72 = por %p70, %p71
      %p73 = scmp.ne.s32.totalorder %s61, %s62
      %p74 = scmp.eq.s32.totalorder %s17, 3
      %p75 = por %p73, %p74
      %p77 = scmp.ne.s32.totalorder %s62, %s76
      %p78 = scmp.eq.s32.totalorder %s17, 0
      %p79 = por %p77, %p78
      %s81 = sadd.s32 %s80, 1
      %p84 = scmp.eq.s32.totalorder %s11, 3
      %p85 = scmp.ne.s32.totalorder %s80, %s82
      %p86 = scmp.eq.s32.totalorder %s11, 0
      %p87 = por %p85, %p86
      %p88 = scmp.ne.s32.totalorder %s80, %s82
      %p89 = scmp.eq.s32.totalorder %s16, 3
      %p90 = por %p88, %p89
      %p91 = scmp.ne.s32.totalorder %s82, %s83
      %p92 = scmp.eq.s32.totalorder %s16, 0
      %p93 = por %p91, %p92
      %p94 = scmp.ne.s32.totalorder %s82, %s83
      %p95 = scmp.eq.s32.totalorder %s17, 3
      %p96 = por %p94, %p95
      %p98 = scmp.ne.s32.totalorder %s83, %s97
      %p99 = scmp.eq.s32.totalorder %s17, 0
      %p100 = por %p98, %p99
      %s101 = ssub.s32 %s18, %s30
      %s102 = ssub.s32 %s19, %s26
      %s103 = sor.u32 %s101, %s102
      %p104 = scmp.eq.s32.totalorder %s103, 0
      %s106 = sadd.s32 %s105, 1
      %s107 = scalar_select %p104, %s105, %s106
      %p110 = pneg %p104
      %p111 = scmp.eq.s32.totalorder %s11, 3
      %p112 = por %p110, %p111
      %p113 = scmp.ne.s32.totalorder %s105, %s108
      %p114 = scmp.eq.s32.totalorder %s11, 0
      %p115 = por %p113, %p114
      %p116 = scmp.ne.s32.totalorder %s105, %s108
      %p117 = scmp.eq.s32.totalorder %s16, 3
      %p118 = por %p116, %p117
      %p119 = scmp.ne.s32.totalorder %s108, %s109
      %p120 = scmp.eq.s32.totalorder %s16, 0
      %p121 = por %p119, %p120
      %p122 = scmp.ne.s32.totalorder %s108, %s109
      %p123 = scmp.eq.s32.totalorder %s17, 3
      %p124 = por %p122, %p123
      %p126 = scmp.ne.s32.totalorder %s109, %s125
      %p127 = scmp.eq.s32.totalorder %s17, 0
      %p128 = por %p126, %p127
      %s129 = ssub.s32 %s18, %s30
      %p130 = scmp.eq.s32.totalorder %s129, 0
      %s132 = sadd.s32 %s131, 1
      %s133 = scalar_select %p130, %s131, %s132
      %p136 = pneg %p130
      %p137 = scmp.eq.s32.totalorder %s11, 3
      %p138 = por %p136, %p137
      %p139 = scmp.ne.s32.totalorder %s131, %s134
      %p140 = scmp.eq.s32.totalorder %s11, 0
      %p141 = por %p139, %p140
      %p142 = scmp.ne.s32.totalorder %s131, %s134
      %p143 = scmp.eq.s32.totalorder %s16, 3
      %p144 = por %p142, %p143
      %p145 = scmp.ne.s32.totalorder %s134, %s135
      %p146 = scmp.eq.s32.totalorder %s16, 0
      %p147 = por %p145, %p146
      %p148 = scmp.ne.s32.totalorder %s134, %s135
      %p149 = scmp.eq.s32.totalorder %s17, 3
      %p150 = por %p148, %p149
      %p152 = scmp.ne.s32.totalorder %s135, %s151
      %p153 = scmp.eq.s32.totalorder %s17, 0
      %p154 = por %p152, %p153
      %p155 = scmp.le.s32.totalorder 1, %s11
      %p156 = scmp.lt.s32.totalorder %s11, 5
      %p157 = pnand %p155, %p156
      %p158 = pneg %p157
      // Predicated region
      $region9: #{encoding_forward.2} parent=5 // pred_check
        _
      $region10: #{encoding_forward.2} parent=5 // pred_check_branch
        %160 = sbr.rel (%p157) target = $region12
      $region11: #{encoding_forward.2} parent=5 // pred_region
        %s161 = ssub.s32 %s11, 1
        // Predicated region
        $region13: #{encoding_forward.2} parent=11 // pred_check
          %p162 = pneg %p72
        $region14: #{encoding_forward.2} parent=11 // pred_check_branch
          %164 = sbr.rel (%p162) target = $region16
        $region15: #{encoding_forward.2} parent=11 // pred_region
          _
        $region16: #{encoding_forward.2} parent=11 // pred_fallthru
          _
        // Predicated region
        $region17: #{encoding_forward.2} parent=11 // pred_check
          %p165 = pneg %p93
        $region18: #{encoding_forward.2} parent=11 // pred_check_branch
          %167 = sbr.rel (%p165) target = $region20
        $region19: #{encoding_forward.2} parent=11 // pred_region
          _
        $region20: #{encoding_forward.2} parent=11 // pred_fallthru
          _
      $region12: #{encoding_forward.2} parent=5 // pred_fallthru
        _
      %p168 = scmp.lt.s32.totalorder %s11, 4
      // Predicated region
      $region21: #{encoding_forward.2} parent=5 // pred_check
        %p169 = pneg %p168
      $region22: #{encoding_forward.2} parent=5 // pred_check_branch
        %171 = sbr.rel (%p169) target = $region24
      $region23: #{encoding_forward.2} parent=5 // pred_region
        // Predicated region
        $region25: #{encoding_forward.2} parent=23 // pred_check
          %p172 = pneg %p45
        $region26: #{encoding_forward.2} parent=23 // pred_check_branch
          %174 = sbr.rel (%p172) target = $region28
        $region27: #{encoding_forward.2} parent=23 // pred_region
          %s175 = sand.u32 %s35, 1
          %s176 = sand.u32 %s35, 1
          %s177 = smul.addr %s176, 512
          %s178 = scalar_lea.vmem [#allocation2], %s177
          %s179 = smul.u32 4, %s19
          %s180 = smul.addr %s18, 128
          %s181 = sadd.s32 %s179, %s180
          %s182 = smul.addr %s181, 8
          %s183 = scalar_lea.vmem %s0, %s182
          // Predicated region
          $region29: #{encoding_forward.2} parent=27 // pred_check
            _
          $region30: #{encoding_forward.2} parent=27 // pred_check_branch
            %185 = sbr.rel (0) target = $region32
          $region31: #{encoding_forward.2} parent=27 // pred_region
            // Predicated region
            $region33: #{encoding_forward.2} parent=31 // pred_check
              _
            $region34: #{encoding_forward.2} parent=31 // pred_check_branch
              %187 = sbr.rel (0) target = $region36
            $region35: #{encoding_forward.2} parent=31 // pred_region
              loop: start=0, step=1, limit=1
              $region37: #{encoding_forward.2} parent=35 // loop_pre_header
                _
              $region38: #{encoding_forward.2} parent=35 // loop_header
                %s189 = sphi 0, %s193
                %p190 = scmp.ge.s32.totalorder %s189, 1
                %s194 = sphi %s183, %s183
                %s195 = sphi %s178, %s178
              $region39: #{encoding_forward.2} parent=35 // loop_header_branch
                %192 = sbr.rel (%p190) target = $region43
              $region40: #{encoding_forward.2} parent=35 // loop_body
                %v196 = vld [vmem:[%s194] sm:$0xff]
                %197 = vst [vmem:[%s195] sm:$0xff] %v196
                %v198 = vld [vmem:[%s194 + $0x8] sm:$0xff]
                %199 = vst [vmem:[%s195 + $0x8] sm:$0xff] %v198
                %v200 = vld [vmem:[%s194 + $0x10] sm:$0xff]
                %201 = vst [vmem:[%s195 + $0x10] sm:$0xff] %v200
                %v202 = vld [vmem:[%s194 + $0x18] sm:$0xff]
                %203 = vst [vmem:[%s195 + $0x18] sm:$0xff] %v202
                %v204 = vld [vmem:[%s194 + $0x40] sm:$0xff]
                %205 = vst [vmem:[%s195 + $0x20] sm:$0xff] %v204
                %v206 = vld [vmem:[%s194 + $0x48] sm:$0xff]
                %207 = vst [vmem:[%s195 + $0x28] sm:$0xff] %v206
                %v208 = vld [vmem:[%s194 + $0x50] sm:$0xff]
                %209 = vst [vmem:[%s195 + $0x30] sm:$0xff] %v208
                %v210 = vld [vmem:[%s194 + $0x58] sm:$0xff]
                %211 = vst [vmem:[%s195 + $0x38] sm:$0xff] %v210
                %v212 = vld [vmem:[%s194 + $0x80] sm:$0xff]
                %213 = vst [vmem:[%s195 + $0x40] sm:$0xff] %v212
                %v214 = vld [vmem:[%s194 + $0x88] sm:$0xff]
                %215 = vst [vmem:[%s195 + $0x48] sm:$0xff] %v214
                %v216 = vld [vmem:[%s194 + $0x90] sm:$0xff]
                %217 = vst [vmem:[%s195 + $0x50] sm:$0xff] %v216
                %v218 = vld [vmem:[%s194 + $0x98] sm:$0xff]
                %219 = vst [vmem:[%s195 + $0x58] sm:$0xff] %v218
                %v220 = vld [vmem:[%s194 + $0xc0] sm:$0xff]
                %221 = vst [vmem:[%s195 + $0x60] sm:$0xff] %v220
                %v222 = vld [vmem:[%s194 + $0xc8] sm:$0xff]
                %223 = vst [vmem:[%s195 + $0x68] sm:$0xff] %v222
                %v224 = vld [vmem:[%s194 + $0xd0] sm:$0xff]
                %225 = vst [vmem:[%s195 + $0x70] sm:$0xff] %v224
                %v226 = vld [vmem:[%s194 + $0xd8] sm:$0xff]
                %227 = vst [vmem:[%s195 + $0x78] sm:$0xff] %v226
                %v228 = vld [vmem:[%s194 + $0x100] sm:$0xff]
                %229 = vst [vmem:[%s195 + $0x80] sm:$0xff] %v228
                %v230 = vld [vmem:[%s194 + $0x108] sm:$0xff]
                %231 = vst [vmem:[%s195 + $0x88] sm:$0xff] %v230
                %v232 = vld [vmem:[%s194 + $0x110] sm:$0xff]
                %233 = vst [vmem:[%s195 + $0x90] sm:$0xff] %v232
                %v234 = vld [vmem:[%s194 + $0x118] sm:$0xff]
                %235 = vst [vmem:[%s195 + $0x98] sm:$0xff] %v234
                %v236 = vld [vmem:[%s194 + $0x140] sm:$0xff]
                %237 = vst [vmem:[%s195 + $0xa0] sm:$0xff] %v236
                %v238 = vld [vmem:[%s194 + $0x148] sm:$0xff]
                %239 = vst [vmem:[%s195 + $0xa8] sm:$0xff] %v238
                %v240 = vld [vmem:[%s194 + $0x150] sm:$0xff]
                %241 = vst [vmem:[%s195 + $0xb0] sm:$0xff] %v240
                %v242 = vld [vmem:[%s194 + $0x158] sm:$0xff]
                %243 = vst [vmem:[%s195 + $0xb8] sm:$0xff] %v242
                %v244 = vld [vmem:[%s194 + $0x180] sm:$0xff]
                %245 = vst [vmem:[%s195 + $0xc0] sm:$0xff] %v244
                %v246 = vld [vmem:[%s194 + $0x188] sm:$0xff]
                %247 = vst [vmem:[%s195 + $0xc8] sm:$0xff] %v246
                %v248 = vld [vmem:[%s194 + $0x190] sm:$0xff]
                %249 = vst [vmem:[%s195 + $0xd0] sm:$0xff] %v248
                %v250 = vld [vmem:[%s194 + $0x198] sm:$0xff]
                %251 = vst [vmem:[%s195 + $0xd8] sm:$0xff] %v250
                %v252 = vld [vmem:[%s194 + $0x1c0] sm:$0xff]
                %253 = vst [vmem:[%s195 + $0xe0] sm:$0xff] %v252
                %v254 = vld [vmem:[%s194 + $0x1c8] sm:$0xff]
                %255 = vst [vmem:[%s195 + $0xe8] sm:$0xff] %v254
                %v256 = vld [vmem:[%s194 + $0x1d0] sm:$0xff]
                %257 = vst [vmem:[%s195 + $0xf0] sm:$0xff] %v256
                %v258 = vld [vmem:[%s194 + $0x1d8] sm:$0xff]
                %259 = vst [vmem:[%s195 + $0xf8] sm:$0xff] %v258
                %v260 = vld [vmem:[%s194 + $0x200] sm:$0xff]
                %261 = vst [vmem:[%s195 + $0x100] sm:$0xff] %v260
                %v262 = vld [vmem:[%s194 + $0x208] sm:$0xff]
                %263 = vst [vmem:[%s195 + $0x108] sm:$0xff] %v262
                %v264 = vld [vmem:[%s194 + $0x210] sm:$0xff]
                %265 = vst [vmem:[%s195 + $0x110] sm:$0xff] %v264
                %v266 = vld [vmem:[%s194 + $0x218] sm:$0xff]
                %267 = vst [vmem:[%s195 + $0x118] sm:$0xff] %v266
                %v268 = vld [vmem:[%s194 + $0x240] sm:$0xff]
                %269 = vst [vmem:[%s195 + $0x120] sm:$0xff] %v268
                %v270 = vld [vmem:[%s194 + $0x248] sm:$0xff]
                %271 = vst [vmem:[%s195 + $0x128] sm:$0xff] %v270
                %v272 = vld [vmem:[%s194 + $0x250] sm:$0xff]
                %273 = vst [vmem:[%s195 + $0x130] sm:$0xff] %v272
                %v274 = vld [vmem:[%s194 + $0x258] sm:$0xff]
                %275 = vst [vmem:[%s195 + $0x138] sm:$0xff] %v274
                %v276 = vld [vmem:[%s194 + $0x280] sm:$0xff]
                %277 = vst [vmem:[%s195 + $0x140] sm:$0xff] %v276
                %v278 = vld [vmem:[%s194 + $0x288] sm:$0xff]
                %279 = vst [vmem:[%s195 + $0x148] sm:$0xff] %v278
                %v280 = vld [vmem:[%s194 + $0x290] sm:$0xff]
                %281 = vst [vmem:[%s195 + $0x150] sm:$0xff] %v280
                %v282 = vld [vmem:[%s194 + $0x298] sm:$0xff]
                %283 = vst [vmem:[%s195 + $0x158] sm:$0xff] %v282
                %v284 = vld [vmem:[%s194 + $0x2c0] sm:$0xff]
                %285 = vst [vmem:[%s195 + $0x160] sm:$0xff] %v284
                %v286 = vld [vmem:[%s194 + $0x2c8] sm:$0xff]
                %287 = vst [vmem:[%s195 + $0x168] sm:$0xff] %v286
                %v288 = vld [vmem:[%s194 + $0x2d0] sm:$0xff]
                %289 = vst [vmem:[%s195 + $0x170] sm:$0xff] %v288
                %v290 = vld [vmem:[%s194 + $0x2d8] sm:$0xff]
                %291 = vst [vmem:[%s195 + $0x178] sm:$0xff] %v290
                %v292 = vld [vmem:[%s194 + $0x300] sm:$0xff]
                %293 = vst [vmem:[%s195 + $0x180] sm:$0xff] %v292
                %v294 = vld [vmem:[%s194 + $0x308] sm:$0xff]
                %295 = vst [vmem:[%s195 + $0x188] sm:$0xff] %v294
                %v296 = vld [vmem:[%s194 + $0x310] sm:$0xff]
                %297 = vst [vmem:[%s195 + $0x190] sm:$0xff] %v296
                %v298 = vld [vmem:[%s194 + $0x318] sm:$0xff]
                %299 = vst [vmem:[%s195 + $0x198] sm:$0xff] %v298
                %v300 = vld [vmem:[%s194 + $0x340] sm:$0xff]
                %301 = vst [vmem:[%s195 + $0x1a0] sm:$0xff] %v300
                %v302 = vld [vmem:[%s194 + $0x348] sm:$0xff]
                %303 = vst [vmem:[%s195 + $0x1a8] sm:$0xff] %v302
                %v304 = vld [vmem:[%s194 + $0x350] sm:$0xff]
                %305 = vst [vmem:[%s195 + $0x1b0] sm:$0xff] %v304
                %v306 = vld [vmem:[%s194 + $0x358] sm:$0xff]
                %307 = vst [vmem:[%s195 + $0x1b8] sm:$0xff] %v306
                %v308 = vld [vmem:[%s194 + $0x380] sm:$0xff]
                %309 = vst [vmem:[%s195 + $0x1c0] sm:$0xff] %v308
                %v310 = vld [vmem:[%s194 + $0x388] sm:$0xff]
                %311 = vst [vmem:[%s195 + $0x1c8] sm:$0xff] %v310
                %v312 = vld [vmem:[%s194 + $0x390] sm:$0xff]
                %313 = vst [vmem:[%s195 + $0x1d0] sm:$0xff] %v312
                %v314 = vld [vmem:[%s194 + $0x398] sm:$0xff]
                %315 = vst [vmem:[%s195 + $0x1d8] sm:$0xff] %v314
                %v316 = vld [vmem:[%s194 + $0x3c0] sm:$0xff]
                %317 = vst [vmem:[%s195 + $0x1e0] sm:$0xff] %v316
                %v318 = vld [vmem:[%s194 + $0x3c8] sm:$0xff]
                %319 = vst [vmem:[%s195 + $0x1e8] sm:$0xff] %v318
                %v320 = vld [vmem:[%s194 + $0x3d0] sm:$0xff]
                %321 = vst [vmem:[%s195 + $0x1f0] sm:$0xff] %v320
                %v322 = vld [vmem:[%s194 + $0x3d8] sm:$0xff]
                %323 = vst [vmem:[%s195 + $0x1f8] sm:$0xff] %v322
              $region41: #{encoding_forward.2} parent=35 // loop_footer
                %s193 = sadd.s32 1, %s189
              $region42: #{encoding_forward.2} parent=35 // loop_footer_branch
                %188 = sbr.rel target = $region38
              $region43: #{encoding_forward.2} parent=35 // loop_exit
                _
            $region36: #{encoding_forward.2} parent=31 // pred_fallthru
              _
            // Predicated region
            $region44: #{encoding_forward.2} parent=31 // pred_check
              _
            $region45: #{encoding_forward.2} parent=31 // pred_check_branch
              %325 = sbr.rel target = $region47
            $region46: #{encoding_forward.2} parent=31 // pred_region
              _
            $region47: #{encoding_forward.2} parent=31 // pred_fallthru
              _
          $region32: #{encoding_forward.2} parent=27 // pred_fallthru
            _
          %326 = vnop
        $region28: #{encoding_forward.2} parent=23 // pred_fallthru
          _
      $region24: #{encoding_forward.2} parent=5 // pred_fallthru
        _
      %p327 = scmp.le.s32.totalorder 1, %s11
      %p328 = scmp.lt.s32.totalorder %s11, 5
      %p329 = pnand %p327, %p328
      %p330 = pneg %p329
      // Predicated region
      $region48: #{encoding_forward.2} parent=5 // pred_check
        _
      $region49: #{encoding_forward.2} parent=5 // pred_check_branch
        %332 = sbr.rel (%p329) target = $region51
      $region50: #{encoding_forward.2} parent=5 // pred_region
        %s333 = ssub.s32 %s11, 1
        %s334 = sand.u32 %s38, 1
        %s335 = sand.u32 %s38, 1
        %s336 = smul.addr %s335, 512
        %s337 = scalar_lea.vmem [#allocation2], %s336
        // Predicated region
        $region52: #{encoding_forward.2} parent=50 // pred_check
          %p338 = pneg %p51
        $region53: #{encoding_forward.2} parent=50 // pred_check_branch
          %340 = sbr.rel (%p338) target = $region55
        $region54: #{encoding_forward.2} parent=50 // pred_region
          _
        $region55: #{encoding_forward.2} parent=50 // pred_fallthru
          _
        %s341 = sand.u32 %s38, 1
        %s342 = sand.u32 %s38, 1
        %s343 = smul.addr %s342, 512
        %s344 = scalar_lea.vmem [#allocation2], %s343
        %p345 = pneg %p51
        %p346 = pneg %p48
        %p347 = pneg %p72
        %p348 = pneg %p69
        %p349 = pneg %p93
        %p350 = pneg %p90
        %p351 = pneg %p121
        %p352 = pneg %p118
        %s353 = sand.u32 %s108, 1
        %s354 = sand.u32 %s108, 1
        %s355 = smul.addr %s354, 512
        %s356 = scalar_lea.vmem [#allocation3], %s355
        %p357 = pneg %p147
        %p358 = pneg %p144
        %p359 = scmp.lt.s32.totalorder %s20, 1
        %s360 = scalar_select %p359, %s20, 1
        %s361 = smul.addr %s360, 8
        %s362 = scalar_lea.vmem %s4, %s361
        %s363 = smul.u32 4, %s21
        %s364 = smul.u32 4, %s21
        %p365 = scmp.lt.s32.totalorder %s20, 1
        %s366 = scalar_select %p365, %s20, 1
        %s367 = smul.addr %s366, 8
        %s368 = scalar_lea.vmem %s4, %s367
        %p369 = scmp.eq.s32.totalorder %s21, 0
        // Predicated region
        $region56: #{encoding_forward.2} parent=50 // pred_check
          %p370 = pneg %p369
        $region57: #{encoding_forward.2} parent=50 // pred_check_branch
          %372 = sbr.rel (%p370) target = $region59
        $region58: #{encoding_forward.2} parent=50 // pred_region
          %373 = vst [vmem:[%s368] sm:$0xff] 0.0
        $region59: #{encoding_forward.2} parent=50 // pred_fallthru
          _
        %v374 = vld [vmem:[%s1] sm:$0xff]
        %v375 = vld [vmem:[%s2] sm:$0xff]
        loop: start=0, step=1, limit=4
        $region60: #{encoding_forward.2} parent=50 // loop_pre_header
          _
        $region61: #{encoding_forward.2} parent=50 // loop_header
          %s377 = sphi 0, %s381
          %p378 = scmp.ge.s32.totalorder %s377, 4
          %v382 = vphi 0.0, %v2154
        $region62: #{encoding_forward.2} parent=50 // loop_header_branch
          %380 = sbr.rel (%p378) target = $region66
        $region63: #{encoding_forward.2} parent=50 // loop_body
          %s383 = smul.u32 %s377, 128
          %s384 = sshra.s32 %s383, 7
          %s385 = sand.u32 %s383, 127
          %s386 = smul.addr %s384, 8
          %s387 = scalar_lea.vmem %s337, %s386 [#allocation2]
          %v388 = vld [vmem:[%s387] sm:$0xff]
          %v389 = vld [vmem:[%s387 + $0x20] sm:$0xff]
          %v390 = vld [vmem:[%s387 + $0x40] sm:$0xff]
          %v391 = vld [vmem:[%s387 + $0x60] sm:$0xff]
          %v392 = vld [vmem:[%s387 + $0x80] sm:$0xff]
          %v393 = vld [vmem:[%s387 + $0xa0] sm:$0xff]
          %v394 = vld [vmem:[%s387 + $0xc0] sm:$0xff]
          %v395 = vld [vmem:[%s387 + $0xe0] sm:$0xff]
          %v396 = vld [vmem:[%s387 + $0x100] sm:$0xff]
          %v397 = vld [vmem:[%s387 + $0x120] sm:$0xff]
          %v398 = vld [vmem:[%s387 + $0x140] sm:$0xff]
          %v399 = vld [vmem:[%s387 + $0x160] sm:$0xff]
          %v400 = vld [vmem:[%s387 + $0x180] sm:$0xff]
          %v401 = vld [vmem:[%s387 + $0x1a0] sm:$0xff]
          %v402 = vld [vmem:[%s387 + $0x1c0] sm:$0xff]
          %v403 = vld [vmem:[%s387 + $0x1e0] sm:$0xff]
          %404 = vxpose.xlu0.b32.start [1/16] %v388, 128
          %405 = vxpose.xlu0.b32.cont [2/16] %v389, 128
          %406 = vxpose.xlu0.b32.cont [3/16] %v390, 128
          %407 = vxpose.xlu0.b32.cont [4/16] %v391, 128
          %408 = vxpose.xlu0.b32.cont [5/16] %v392, 128
          %409 = vxpose.xlu0.b32.cont [6/16] %v393, 128
          %410 = vxpose.xlu0.b32.cont [7/16] %v394, 128
          %411 = vxpose.xlu0.b32.cont [8/16] %v395, 128
          %412 = vxpose.xlu0.b32.cont [9/16] %v396, 128
          %413 = vxpose.xlu0.b32.cont [10/16] %v397, 128
          %414 = vxpose.xlu0.b32.cont [11/16] %v398, 128
          %415 = vxpose.xlu0.b32.cont [12/16] %v399, 128
          %416 = vxpose.xlu0.b32.cont [13/16] %v400, 128
          %417 = vxpose.xlu0.b32.cont [14/16] %v401, 128
          %418 = vxpose.xlu0.b32.cont [15/16] %v402, 128
          %419 = vxpose.xlu0.b32.end [16/16] %v403, 128
          %v420 = vpop.trf.xlu0
          %v421 = vpop.trf.xlu0
          %v422 = vpop.trf.xlu0
          %v423 = vpop.trf.xlu0
          %v424 = vpop.trf.xlu0
          %v425 = vpop.trf.xlu0
          %v426 = vpop.trf.xlu0
          %v427 = vpop.trf.xlu0
          %v428 = vpop.trf.xlu0
          %v429 = vpop.trf.xlu0
          %v430 = vpop.trf.xlu0
          %v431 = vpop.trf.xlu0
          %v432 = vpop.trf.xlu0
          %v433 = vpop.trf.xlu0
          %v434 = vpop.trf.xlu0
          %v435 = vpop.trf.xlu0
          %v436 = vlaneseq
          %v437 = vshrl.u32 %v436, 7
          %v438 = vsub.s32 0, %v437
          %v439 = vrot.slane %v374, %v438
          %v440 = vsub.f32 %v420, %v439
          %v441 = vsub.f32 %v421, %v439
          %v442 = vsub.f32 %v422, %v439
          %v443 = vsub.f32 %v423, %v439
          %v444 = vsub.f32 %v424, %v439
          %v445 = vsub.f32 %v425, %v439
          %v446 = vsub.f32 %v426, %v439
          %v447 = vsub.f32 %v427, %v439
          %v448 = vmul.f32 %v440, %v440
          %v449 = vmul.f32 %v441, %v441
          %v450 = vmul.f32 %v442, %v442
          %v451 = vmul.f32 %v443, %v443
          %v452 = vmul.f32 %v444, %v444
          %v453 = vmul.f32 %v445, %v445
          %v454 = vmul.f32 %v446, %v446
          %v455 = vmul.f32 %v447, %v447
          %v456 = vlaneseq
          %v457 = vshrl.u32 %v456, 7
          %v458 = vsub.s32 0, %v457
          %v459 = vrot.slane %v375, %v458
          %v460 = vmul.f32 %v459, %v448
          %v461 = vmul.f32 %v459, %v449
          %v462 = vmul.f32 %v459, %v450
          %v463 = vmul.f32 %v459, %v451
          %v464 = vmul.f32 %v459, %v452
          %v465 = vmul.f32 %v459, %v453
          %v466 = vmul.f32 %v459, %v454
          %v467 = vmul.f32 %v459, %v455
          %v468 = vlaneseq
          %v469 = vshrl.u32 %v468, 7
          %v470 = vsub.s32 1, %v469
          %v471 = vrot.slane %v374, %v470
          %v472 = vsub.f32 %v420, %v471
          %v473 = vsub.f32 %v421, %v471
          %v474 = vsub.f32 %v422, %v471
          %v475 = vsub.f32 %v423, %v471
          %v476 = vsub.f32 %v424, %v471
          %v477 = vsub.f32 %v425, %v471
          %v478 = vsub.f32 %v426, %v471
          %v479 = vsub.f32 %v427, %v471
          %v480 = vmul.f32 %v472, %v472
          %v481 = vmul.f32 %v473, %v473
          %v482 = vmul.f32 %v474, %v474
          %v483 = vmul.f32 %v475, %v475
          %v484 = vmul.f32 %v476, %v476
          %v485 = vmul.f32 %v477, %v477
          %v486 = vmul.f32 %v478, %v478
          %v487 = vmul.f32 %v479, %v479
          %v488 = vlaneseq
          %v489 = vshrl.u32 %v488, 7
          %v490 = vsub.s32 1, %v489
          %v491 = vrot.slane %v375, %v490
          %v492 = vmul.f32 %v491, %v480
          %v493 = vmul.f32 %v491, %v481
          %v494 = vmul.f32 %v491, %v482
          %v495 = vmul.f32 %v491, %v483
          %v496 = vmul.f32 %v491, %v484
          %v497 = vmul.f32 %v491, %v485
          %v498 = vmul.f32 %v491, %v486
          %v499 = vmul.f32 %v491, %v487
          %v500 = vmax.f32 %v460, %v492
          %v501 = vmax.f32 %v461, %v493
          %v502 = vmax.f32 %v462, %v494
          %v503 = vmax.f32 %v463, %v495
          %v504 = vmax.f32 %v464, %v496
          %v505 = vmax.f32 %v465, %v497
          %v506 = vmax.f32 %v466, %v498
          %v507 = vmax.f32 %v467, %v499
          %v508 = vlaneseq
          %v509 = vshrl.u32 %v508, 7
          %v510 = vsub.s32 2, %v509
          %v511 = vrot.slane %v374, %v510
          %v512 = vsub.f32 %v420, %v511
          %v513 = vsub.f32 %v421, %v511
          %v514 = vsub.f32 %v422, %v511
          %v515 = vsub.f32 %v423, %v511
          %v516 = vsub.f32 %v424, %v511
          %v517 = vsub.f32 %v425, %v511
          %v518 = vsub.f32 %v426, %v511
          %v519 = vsub.f32 %v427, %v511
          %v520 = vmul.f32 %v512, %v512
          %v521 = vmul.f32 %v513, %v513
          %v522 = vmul.f32 %v514, %v514
          %v523 = vmul.f32 %v515, %v515
          %v524 = vmul.f32 %v516, %v516
          %v525 = vmul.f32 %v517, %v517
          %v526 = vmul.f32 %v518, %v518
          %v527 = vmul.f32 %v519, %v519
          %v528 = vlaneseq
          %v529 = vshrl.u32 %v528, 7
          %v530 = vsub.s32 2, %v529
          %v531 = vrot.slane %v375, %v530
          %v532 = vmul.f32 %v531, %v520
          %v533 = vmul.f32 %v531, %v521
          %v534 = vmul.f32 %v531, %v522
          %v535 = vmul.f32 %v531, %v523
          %v536 = vmul.f32 %v531, %v524
          %v537 = vmul.f32 %v531, %v525
          %v538 = vmul.f32 %v531, %v526
          %v539 = vmul.f32 %v531, %v527
          %v540 = vmax.f32 %v500, %v532
          %v541 = vmax.f32 %v501, %v533
          %v542 = vmax.f32 %v502, %v534
          %v543 = vmax.f32 %v503, %v535
          %v544 = vmax.f32 %v504, %v536
          %v545 = vmax.f32 %v505, %v537
          %v546 = vmax.f32 %v506, %v538
          %v547 = vmax.f32 %v507, %v539
          %v548 = vlaneseq
          %v549 = vshrl.u32 %v548, 7
          %v550 = vsub.s32 3, %v549
          %v551 = vrot.slane %v374, %v550
          %v552 = vsub.f32 %v420, %v551
          %v553 = vsub.f32 %v421, %v551
          %v554 = vsub.f32 %v422, %v551
          %v555 = vsub.f32 %v423, %v551
          %v556 = vsub.f32 %v424, %v551
          %v557 = vsub.f32 %v425, %v551
          %v558 = vsub.f32 %v426, %v551
          %v559 = vsub.f32 %v427, %v551
          %v560 = vmul.f32 %v552, %v552
          %v561 = vmul.f32 %v553, %v553
          %v562 = vmul.f32 %v554, %v554
          %v563 = vmul.f32 %v555, %v555
          %v564 = vmul.f32 %v556, %v556
          %v565 = vmul.f32 %v557, %v557
          %v566 = vmul.f32 %v558, %v558
          %v567 = vmul.f32 %v559, %v559
          %v568 = vlaneseq
          %v569 = vshrl.u32 %v568, 7
          %v570 = vsub.s32 3, %v569
          %v571 = vrot.slane %v375, %v570
          %v572 = vmul.f32 %v571, %v560
          %v573 = vmul.f32 %v571, %v561
          %v574 = vmul.f32 %v571, %v562
          %v575 = vmul.f32 %v571, %v563
          %v576 = vmul.f32 %v571, %v564
          %v577 = vmul.f32 %v571, %v565
          %v578 = vmul.f32 %v571, %v566
          %v579 = vmul.f32 %v571, %v567
          %v580 = vmax.f32 %v540, %v572
          %v581 = vmax.f32 %v541, %v573
          %v582 = vmax.f32 %v542, %v574
          %v583 = vmax.f32 %v543, %v575
          %v584 = vmax.f32 %v544, %v576
          %v585 = vmax.f32 %v545, %v577
          %v586 = vmax.f32 %v546, %v578
          %v587 = vmax.f32 %v547, %v579
          %v588 = vlaneseq
          %v589 = vshrl.u32 %v588, 7
          %v590 = vsub.s32 4, %v589
          %v591 = vrot.slane %v374, %v590
          %v592 = vsub.f32 %v420, %v591
          %v593 = vsub.f32 %v421, %v591
          %v594 = vsub.f32 %v422, %v591
          %v595 = vsub.f32 %v423, %v591
          %v596 = vsub.f32 %v424, %v591
          %v597 = vsub.f32 %v425, %v591
          %v598 = vsub.f32 %v426, %v591
          %v599 = vsub.f32 %v427, %v591
          %v600 = vmul.f32 %v592, %v592
          %v601 = vmul.f32 %v593, %v593
          %v602 = vmul.f32 %v594, %v594
          %v603 = vmul.f32 %v595, %v595
          %v604 = vmul.f32 %v596, %v596
          %v605 = vmul.f32 %v597, %v597
          %v606 = vmul.f32 %v598, %v598
          %v607 = vmul.f32 %v599, %v599
          %v608 = vlaneseq
          %v609 = vshrl.u32 %v608, 7
          %v610 = vsub.s32 4, %v609
          %v611 = vrot.slane %v375, %v610
          %v612 = vmul.f32 %v611, %v600
          %v613 = vmul.f32 %v611, %v601
          %v614 = vmul.f32 %v611, %v602
          %v615 = vmul.f32 %v611, %v603
          %v616 = vmul.f32 %v611, %v604
          %v617 = vmul.f32 %v611, %v605
          %v618 = vmul.f32 %v611, %v606
          %v619 = vmul.f32 %v611, %v607
          %v620 = vmax.f32 %v580, %v612
          %v621 = vmax.f32 %v581, %v613
          %v622 = vmax.f32 %v582, %v614
          %v623 = vmax.f32 %v583, %v615
          %v624 = vmax.f32 %v584, %v616
          %v625 = vmax.f32 %v585, %v617
          %v626 = vmax.f32 %v586, %v618
          %v627 = vmax.f32 %v587, %v619
          %v628 = vlaneseq
          %v629 = vshrl.u32 %v628, 7
          %v630 = vsub.s32 5, %v629
          %v631 = vrot.slane %v374, %v630
          %v632 = vsub.f32 %v420, %v631
          %v633 = vsub.f32 %v421, %v631
          %v634 = vsub.f32 %v422, %v631
          %v635 = vsub.f32 %v423, %v631
          %v636 = vsub.f32 %v424, %v631
          %v637 = vsub.f32 %v425, %v631
          %v638 = vsub.f32 %v426, %v631
          %v639 = vsub.f32 %v427, %v631
          %v640 = vmul.f32 %v632, %v632
          %v641 = vmul.f32 %v633, %v633
          %v642 = vmul.f32 %v634, %v634
          %v643 = vmul.f32 %v635, %v635
          %v644 = vmul.f32 %v636, %v636
          %v645 = vmul.f32 %v637, %v637
          %v646 = vmul.f32 %v638, %v638
          %v647 = vmul.f32 %v639, %v639
          %v648 = vlaneseq
          %v649 = vshrl.u32 %v648, 7
          %v650 = vsub.s32 5, %v649
          %v651 = vrot.slane %v375, %v650
          %v652 = vmul.f32 %v651, %v640
          %v653 = vmul.f32 %v651, %v641
          %v654 = vmul.f32 %v651, %v642
          %v655 = vmul.f32 %v651, %v643
          %v656 = vmul.f32 %v651, %v644
          %v657 = vmul.f32 %v651, %v645
          %v658 = vmul.f32 %v651, %v646
          %v659 = vmul.f32 %v651, %v647
          %v660 = vmax.f32 %v620, %v652
          %v661 = vmax.f32 %v621, %v653
          %v662 = vmax.f32 %v622, %v654
          %v663 = vmax.f32 %v623, %v655
          %v664 = vmax.f32 %v624, %v656
          %v665 = vmax.f32 %v625, %v657
          %v666 = vmax.f32 %v626, %v658
          %v667 = vmax.f32 %v627, %v659
          %v668 = vlaneseq
          %v669 = vshrl.u32 %v668, 7
          %v670 = vsub.s32 6, %v669
          %v671 = vrot.slane %v374, %v670
          %v672 = vsub.f32 %v420, %v671
          %v673 = vsub.f32 %v421, %v671
          %v674 = vsub.f32 %v422, %v671
          %v675 = vsub.f32 %v423, %v671
          %v676 = vsub.f32 %v424, %v671
          %v677 = vsub.f32 %v425, %v671
          %v678 = vsub.f32 %v426, %v671
          %v679 = vsub.f32 %v427, %v671
          %v680 = vmul.f32 %v672, %v672
          %v681 = vmul.f32 %v673, %v673
          %v682 = vmul.f32 %v674, %v674
          %v683 = vmul.f32 %v675, %v675
          %v684 = vmul.f32 %v676, %v676
          %v685 = vmul.f32 %v677, %v677
          %v686 = vmul.f32 %v678, %v678
          %v687 = vmul.f32 %v679, %v679
          %v688 = vlaneseq
          %v689 = vshrl.u32 %v688, 7
          %v690 = vsub.s32 6, %v689
          %v691 = vrot.slane %v375, %v690
          %v692 = vmul.f32 %v691, %v680
          %v693 = vmul.f32 %v691, %v681
          %v694 = vmul.f32 %v691, %v682
          %v695 = vmul.f32 %v691, %v683
          %v696 = vmul.f32 %v691, %v684
          %v697 = vmul.f32 %v691, %v685
          %v698 = vmul.f32 %v691, %v686
          %v699 = vmul.f32 %v691, %v687
          %v700 = vmax.f32 %v660, %v692
          %v701 = vmax.f32 %v661, %v693
          %v702 = vmax.f32 %v662, %v694
          %v703 = vmax.f32 %v663, %v695
          %v704 = vmax.f32 %v664, %v696
          %v705 = vmax.f32 %v665, %v697
          %v706 = vmax.f32 %v666, %v698
          %v707 = vmax.f32 %v667, %v699
          %v708 = vlaneseq
          %v709 = vshrl.u32 %v708, 7
          %v710 = vsub.s32 7, %v709
          %v711 = vrot.slane %v374, %v710
          %v712 = vsub.f32 %v420, %v711
          %v713 = vsub.f32 %v421, %v711
          %v714 = vsub.f32 %v422, %v711
          %v715 = vsub.f32 %v423, %v711
          %v716 = vsub.f32 %v424, %v711
          %v717 = vsub.f32 %v425, %v711
          %v718 = vsub.f32 %v426, %v711
          %v719 = vsub.f32 %v427, %v711
          %v720 = vmul.f32 %v712, %v712
          %v721 = vmul.f32 %v713, %v713
          %v722 = vmul.f32 %v714, %v714
          %v723 = vmul.f32 %v715, %v715
          %v724 = vmul.f32 %v716, %v716
          %v725 = vmul.f32 %v717, %v717
          %v726 = vmul.f32 %v718, %v718
          %v727 = vmul.f32 %v719, %v719
          %v728 = vlaneseq
          %v729 = vshrl.u32 %v728, 7
          %v730 = vsub.s32 7, %v729
          %v731 = vrot.slane %v375, %v730
          %v732 = vmul.f32 %v731, %v720
          %v733 = vmul.f32 %v731, %v721
          %v734 = vmul.f32 %v731, %v722
          %v735 = vmul.f32 %v731, %v723
          %v736 = vmul.f32 %v731, %v724
          %v737 = vmul.f32 %v731, %v725
          %v738 = vmul.f32 %v731, %v726
          %v739 = vmul.f32 %v731, %v727
          %v740 = vmax.f32 %v700, %v732
          %v741 = vmax.f32 %v701, %v733
          %v742 = vmax.f32 %v702, %v734
          %v743 = vmax.f32 %v703, %v735
          %v744 = vmax.f32 %v704, %v736
          %v745 = vmax.f32 %v705, %v737
          %v746 = vmax.f32 %v706, %v738
          %v747 = vmax.f32 %v707, %v739
          %v748 = vsub.f32 %v460, %v740
          %v749 = vsub.f32 %v461, %v741
          %v750 = vsub.f32 %v462, %v742
          %v751 = vsub.f32 %v463, %v743
          %v752 = vsub.f32 %v464, %v744
          %v753 = vsub.f32 %v465, %v745
          %v754 = vsub.f32 %v466, %v746
          %v755 = vsub.f32 %v467, %v747
          %v756 = vmul.f32 %v748, 1.442695
          %v757 = vpow.pop %v756
          %v758 = vmul.f32 %v749, 1.442695
          %v759 = vpow.pop %v758
          %v760 = vmul.f32 %v750, 1.442695
          %v761 = vpow.pop %v760
          %v762 = vmul.f32 %v751, 1.442695
          %v763 = vpow.pop %v762
          %v764 = vmul.f32 %v752, 1.442695
          %v765 = vpow.pop %v764
          %v766 = vmul.f32 %v753, 1.442695
          %v767 = vpow.pop %v766
          %v768 = vmul.f32 %v754, 1.442695
          %v769 = vpow.pop %v768
          %v770 = vmul.f32 %v755, 1.442695
          %v771 = vpow.pop %v770
          %v772 = vadd.f32 %v757, 0.0
          %v773 = vadd.f32 %v759, 0.0
          %v774 = vadd.f32 %v761, 0.0
          %v775 = vadd.f32 %v763, 0.0
          %v776 = vadd.f32 %v765, 0.0
          %v777 = vadd.f32 %v767, 0.0
          %v778 = vadd.f32 %v769, 0.0
          %v779 = vadd.f32 %v771, 0.0
          %v780 = vsub.f32 %v492, %v740
          %v781 = vsub.f32 %v493, %v741
          %v782 = vsub.f32 %v494, %v742
          %v783 = vsub.f32 %v495, %v743
          %v784 = vsub.f32 %v496, %v744
          %v785 = vsub.f32 %v497, %v745
          %v786 = vsub.f32 %v498, %v746
          %v787 = vsub.f32 %v499, %v747
          %v788 = vmul.f32 %v780, 1.442695
          %v789 = vpow.pop %v788
          %v790 = vmul.f32 %v781, 1.442695
          %v791 = vpow.pop %v790
          %v792 = vmul.f32 %v782, 1.442695
          %v793 = vpow.pop %v792
          %v794 = vmul.f32 %v783, 1.442695
          %v795 = vpow.pop %v794
          %v796 = vmul.f32 %v784, 1.442695
          %v797 = vpow.pop %v796
          %v798 = vmul.f32 %v785, 1.442695
          %v799 = vpow.pop %v798
          %v800 = vmul.f32 %v786, 1.442695
          %v801 = vpow.pop %v800
          %v802 = vmul.f32 %v787, 1.442695
          %v803 = vpow.pop %v802
          %v804 = vadd.f32 %v772, %v789
          %v805 = vadd.f32 %v773, %v791
          %v806 = vadd.f32 %v774, %v793
          %v807 = vadd.f32 %v775, %v795
          %v808 = vadd.f32 %v776, %v797
          %v809 = vadd.f32 %v777, %v799
          %v810 = vadd.f32 %v778, %v801
          %v811 = vadd.f32 %v779, %v803
          %v812 = vsub.f32 %v532, %v740
          %v813 = vsub.f32 %v533, %v741
          %v814 = vsub.f32 %v534, %v742
          %v815 = vsub.f32 %v535, %v743
          %v816 = vsub.f32 %v536, %v744
          %v817 = vsub.f32 %v537, %v745
          %v818 = vsub.f32 %v538, %v746
          %v819 = vsub.f32 %v539, %v747
          %v820 = vmul.f32 %v812, 1.442695
          %v821 = vpow.pop %v820
          %v822 = vmul.f32 %v813, 1.442695
          %v823 = vpow.pop %v822
          %v824 = vmul.f32 %v814, 1.442695
          %v825 = vpow.pop %v824
          %v826 = vmul.f32 %v815, 1.442695
          %v827 = vpow.pop %v826
          %v828 = vmul.f32 %v816, 1.442695
          %v829 = vpow.pop %v828
          %v830 = vmul.f32 %v817, 1.442695
          %v831 = vpow.pop %v830
          %v832 = vmul.f32 %v818, 1.442695
          %v833 = vpow.pop %v832
          %v834 = vmul.f32 %v819, 1.442695
          %v835 = vpow.pop %v834
          %v836 = vadd.f32 %v804, %v821
          %v837 = vadd.f32 %v805, %v823
          %v838 = vadd.f32 %v806, %v825
          %v839 = vadd.f32 %v807, %v827
          %v840 = vadd.f32 %v808, %v829
          %v841 = vadd.f32 %v809, %v831
          %v842 = vadd.f32 %v810, %v833
          %v843 = vadd.f32 %v811, %v835
          %v844 = vsub.f32 %v572, %v740
          %v845 = vsub.f32 %v573, %v741
          %v846 = vsub.f32 %v574, %v742
          %v847 = vsub.f32 %v575, %v743
          %v848 = vsub.f32 %v576, %v744
          %v849 = vsub.f32 %v577, %v745
          %v850 = vsub.f32 %v578, %v746
          %v851 = vsub.f32 %v579, %v747
          %v852 = vmul.f32 %v844, 1.442695
          %v853 = vpow.pop %v852
          %v854 = vmul.f32 %v845, 1.442695
          %v855 = vpow.pop %v854
          %v856 = vmul.f32 %v846, 1.442695
          %v857 = vpow.pop %v856
          %v858 = vmul.f32 %v847, 1.442695
          %v859 = vpow.pop %v858
          %v860 = vmul.f32 %v848, 1.442695
          %v861 = vpow.pop %v860
          %v862 = vmul.f32 %v849, 1.442695
          %v863 = vpow.pop %v862
          %v864 = vmul.f32 %v850, 1.442695
          %v865 = vpow.pop %v864
          %v866 = vmul.f32 %v851, 1.442695
          %v867 = vpow.pop %v866
          %v868 = vadd.f32 %v836, %v853
          %v869 = vadd.f32 %v837, %v855
          %v870 = vadd.f32 %v838, %v857
          %v871 = vadd.f32 %v839, %v859
          %v872 = vadd.f32 %v840, %v861
          %v873 = vadd.f32 %v841, %v863
          %v874 = vadd.f32 %v842, %v865
          %v875 = vadd.f32 %v843, %v867
          %v876 = vsub.f32 %v612, %v740
          %v877 = vsub.f32 %v613, %v741
          %v878 = vsub.f32 %v614, %v742
          %v879 = vsub.f32 %v615, %v743
          %v880 = vsub.f32 %v616, %v744
          %v881 = vsub.f32 %v617, %v745
          %v882 = vsub.f32 %v618, %v746
          %v883 = vsub.f32 %v619, %v747
          %v884 = vmul.f32 %v876, 1.442695
          %v885 = vpow.pop %v884
          %v886 = vmul.f32 %v877, 1.442695
          %v887 = vpow.pop %v886
          %v888 = vmul.f32 %v878, 1.442695
          %v889 = vpow.pop %v888
          %v890 = vmul.f32 %v879, 1.442695
          %v891 = vpow.pop %v890
          %v892 = vmul.f32 %v880, 1.442695
          %v893 = vpow.pop %v892
          %v894 = vmul.f32 %v881, 1.442695
          %v895 = vpow.pop %v894
          %v896 = vmul.f32 %v882, 1.442695
          %v897 = vpow.pop %v896
          %v898 = vmul.f32 %v883, 1.442695
          %v899 = vpow.pop %v898
          %v900 = vadd.f32 %v868, %v885
          %v901 = vadd.f32 %v869, %v887
          %v902 = vadd.f32 %v870, %v889
          %v903 = vadd.f32 %v871, %v891
          %v904 = vadd.f32 %v872, %v893
          %v905 = vadd.f32 %v873, %v895
          %v906 = vadd.f32 %v874, %v897
          %v907 = vadd.f32 %v875, %v899
          %v908 = vsub.f32 %v652, %v740
          %v909 = vsub.f32 %v653, %v741
          %v910 = vsub.f32 %v654, %v742
          %v911 = vsub.f32 %v655, %v743
          %v912 = vsub.f32 %v656, %v744
          %v913 = vsub.f32 %v657, %v745
          %v914 = vsub.f32 %v658, %v746
          %v915 = vsub.f32 %v659, %v747
          %v916 = vmul.f32 %v908, 1.442695
          %v917 = vpow.pop %v916
          %v918 = vmul.f32 %v909, 1.442695
          %v919 = vpow.pop %v918
          %v920 = vmul.f32 %v910, 1.442695
          %v921 = vpow.pop %v920
          %v922 = vmul.f32 %v911, 1.442695
          %v923 = vpow.pop %v922
          %v924 = vmul.f32 %v912, 1.442695
          %v925 = vpow.pop %v924
          %v926 = vmul.f32 %v913, 1.442695
          %v927 = vpow.pop %v926
          %v928 = vmul.f32 %v914, 1.442695
          %v929 = vpow.pop %v928
          %v930 = vmul.f32 %v915, 1.442695
          %v931 = vpow.pop %v930
          %v932 = vadd.f32 %v900, %v917
          %v933 = vadd.f32 %v901, %v919
          %v934 = vadd.f32 %v902, %v921
          %v935 = vadd.f32 %v903, %v923
          %v936 = vadd.f32 %v904, %v925
          %v937 = vadd.f32 %v905, %v927
          %v938 = vadd.f32 %v906, %v929
          %v939 = vadd.f32 %v907, %v931
          %v940 = vsub.f32 %v692, %v740
          %v941 = vsub.f32 %v693, %v741
          %v942 = vsub.f32 %v694, %v742
          %v943 = vsub.f32 %v695, %v743
          %v944 = vsub.f32 %v696, %v744
          %v945 = vsub.f32 %v697, %v745
          %v946 = vsub.f32 %v698, %v746
          %v947 = vsub.f32 %v699, %v747
          %v948 = vmul.f32 %v940, 1.442695
          %v949 = vpow.pop %v948
          %v950 = vmul.f32 %v941, 1.442695
          %v951 = vpow.pop %v950
          %v952 = vmul.f32 %v942, 1.442695
          %v953 = vpow.pop %v952
          %v954 = vmul.f32 %v943, 1.442695
          %v955 = vpow.pop %v954
          %v956 = vmul.f32 %v944, 1.442695
          %v957 = vpow.pop %v956
          %v958 = vmul.f32 %v945, 1.442695
          %v959 = vpow.pop %v958
          %v960 = vmul.f32 %v946, 1.442695
          %v961 = vpow.pop %v960
          %v962 = vmul.f32 %v947, 1.442695
          %v963 = vpow.pop %v962
          %v964 = vadd.f32 %v932, %v949
          %v965 = vadd.f32 %v933, %v951
          %v966 = vadd.f32 %v934, %v953
          %v967 = vadd.f32 %v935, %v955
          %v968 = vadd.f32 %v936, %v957
          %v969 = vadd.f32 %v937, %v959
          %v970 = vadd.f32 %v938, %v961
          %v971 = vadd.f32 %v939, %v963
          %v972 = vsub.f32 %v732, %v740
          %v973 = vsub.f32 %v733, %v741
          %v974 = vsub.f32 %v734, %v742
          %v975 = vsub.f32 %v735, %v743
          %v976 = vsub.f32 %v736, %v744
          %v977 = vsub.f32 %v737, %v745
          %v978 = vsub.f32 %v738, %v746
          %v979 = vsub.f32 %v739, %v747
          %v980 = vmul.f32 %v972, 1.442695
          %v981 = vpow.pop %v980
          %v982 = vmul.f32 %v973, 1.442695
          %v983 = vpow.pop %v982
          %v984 = vmul.f32 %v974, 1.442695
          %v985 = vpow.pop %v984
          %v986 = vmul.f32 %v975, 1.442695
          %v987 = vpow.pop %v986
          %v988 = vmul.f32 %v976, 1.442695
          %v989 = vpow.pop %v988
          %v990 = vmul.f32 %v977, 1.442695
          %v991 = vpow.pop %v990
          %v992 = vmul.f32 %v978, 1.442695
          %v993 = vpow.pop %v992
          %v994 = vmul.f32 %v979, 1.442695
          %v995 = vpow.pop %v994
          %v996 = vadd.f32 %v964, %v981
          %v997 = vadd.f32 %v965, %v983
          %v998 = vadd.f32 %v966, %v985
          %v999 = vadd.f32 %v967, %v987
          %v1000 = vadd.f32 %v968, %v989
          %v1001 = vadd.f32 %v969, %v991
          %v1002 = vadd.f32 %v970, %v993
          %v1003 = vadd.f32 %v971, %v995
          %v1004 = vrcp.pop %v996
          %v1005 = vmul.f32 1.0, %v1004
          %v1006 = vrcp.pop %v997
          %v1007 = vmul.f32 1.0, %v1006
          %v1008 = vrcp.pop %v998
          %v1009 = vmul.f32 1.0, %v1008
          %v1010 = vrcp.pop %v999
          %v1011 = vmul.f32 1.0, %v1010
          %v1012 = vrcp.pop %v1000
          %v1013 = vmul.f32 1.0, %v1012
          %v1014 = vrcp.pop %v1001
          %v1015 = vmul.f32 1.0, %v1014
          %v1016 = vrcp.pop %v1002
          %v1017 = vmul.f32 1.0, %v1016
          %v1018 = vrcp.pop %v1003
          %v1019 = vmul.f32 1.0, %v1018
          %v1020 = vmul.f32 %v757, %v1005
          %v1021 = vmul.f32 %v759, %v1007
          %v1022 = vmul.f32 %v761, %v1009
          %v1023 = vmul.f32 %v763, %v1011
          %v1024 = vmul.f32 %v765, %v1013
          %v1025 = vmul.f32 %v767, %v1015
          %v1026 = vmul.f32 %v769, %v1017
          %v1027 = vmul.f32 %v771, %v1019
          %v1028 = vmul.f32 %v1020, %v440
          %v1029 = vmul.f32 %v1021, %v441
          %v1030 = vmul.f32 %v1022, %v442
          %v1031 = vmul.f32 %v1023, %v443
          %v1032 = vmul.f32 %v1024, %v444
          %v1033 = vmul.f32 %v1025, %v445
          %v1034 = vmul.f32 %v1026, %v446
          %v1035 = vmul.f32 %v1027, %v447
          %v1036 = vadd.f32 %v1028, 0.0
          %v1037 = vadd.f32 %v1029, 0.0
          %v1038 = vadd.f32 %v1030, 0.0
          %v1039 = vadd.f32 %v1031, 0.0
          %v1040 = vadd.f32 %v1032, 0.0
          %v1041 = vadd.f32 %v1033, 0.0
          %v1042 = vadd.f32 %v1034, 0.0
          %v1043 = vadd.f32 %v1035, 0.0
          %v1044 = vadd.f32 %v1028, %v1029
          %v1045 = vadd.f32 %v1044, %v1030
          %v1046 = vadd.f32 %v1045, %v1031
          %v1047 = vadd.f32 %v1046, %v1032
          %v1048 = vadd.f32 %v1047, %v1033
          %v1049 = vadd.f32 %v1048, %v1034
          %v1050 = vadd.f32 %v1049, %v1035
          %v1051 = vrot.slane %v1050, 4
          %v1052 = vadd.f32 %v1050, %v1051
          %v1053 = vrot.slane %v1052, 2
          %v1054 = vadd.f32 %v1052, %v1053
          %v1055 = vrot.slane %v1054, 1
          %v1056 = vadd.f32 %v1054, %v1055
          %v1057 = vmul.f32 %v789, %v1005
          %v1058 = vmul.f32 %v791, %v1007
          %v1059 = vmul.f32 %v793, %v1009
          %v1060 = vmul.f32 %v795, %v1011
          %v1061 = vmul.f32 %v797, %v1013
          %v1062 = vmul.f32 %v799, %v1015
          %v1063 = vmul.f32 %v801, %v1017
          %v1064 = vmul.f32 %v803, %v1019
          %v1065 = vmul.f32 %v1057, %v472
          %v1066 = vmul.f32 %v1058, %v473
          %v1067 = vmul.f32 %v1059, %v474
          %v1068 = vmul.f32 %v1060, %v475
          %v1069 = vmul.f32 %v1061, %v476
          %v1070 = vmul.f32 %v1062, %v477
          %v1071 = vmul.f32 %v1063, %v478
          %v1072 = vmul.f32 %v1064, %v479
          %v1073 = vadd.f32 %v1036, %v1065
          %v1074 = vadd.f32 %v1037, %v1066
          %v1075 = vadd.f32 %v1038, %v1067
          %v1076 = vadd.f32 %v1039, %v1068
          %v1077 = vadd.f32 %v1040, %v1069
          %v1078 = vadd.f32 %v1041, %v1070
          %v1079 = vadd.f32 %v1042, %v1071
          %v1080 = vadd.f32 %v1043, %v1072
          %v1081 = vadd.f32 %v1065, %v1066
          %v1082 = vadd.f32 %v1081, %v1067
          %v1083 = vadd.f32 %v1082, %v1068
          %v1084 = vadd.f32 %v1083, %v1069
          %v1085 = vadd.f32 %v1084, %v1070
          %v1086 = vadd.f32 %v1085, %v1071
          %v1087 = vadd.f32 %v1086, %v1072
          %v1088 = vrot.slane %v1087, 4
          %v1089 = vadd.f32 %v1087, %v1088
          %v1090 = vrot.slane %v1089, 2
          %v1091 = vadd.f32 %v1089, %v1090
          %v1092 = vrot.slane %v1091, 1
          %v1093 = vadd.f32 %v1091, %v1092
          %v1094 = vmul.f32 %v821, %v1005
          %v1095 = vmul.f32 %v823, %v1007
          %v1096 = vmul.f32 %v825, %v1009
          %v1097 = vmul.f32 %v827, %v1011
          %v1098 = vmul.f32 %v829, %v1013
          %v1099 = vmul.f32 %v831, %v1015
          %v1100 = vmul.f32 %v833, %v1017
          %v1101 = vmul.f32 %v835, %v1019
          %v1102 = vmul.f32 %v1094, %v512
          %v1103 = vmul.f32 %v1095, %v513
          %v1104 = vmul.f32 %v1096, %v514
          %v1105 = vmul.f32 %v1097, %v515
          %v1106 = vmul.f32 %v1098, %v516
          %v1107 = vmul.f32 %v1099, %v517
          %v1108 = vmul.f32 %v1100, %v518
          %v1109 = vmul.f32 %v1101, %v519
          %v1110 = vadd.f32 %v1073, %v1102
          %v1111 = vadd.f32 %v1074, %v1103
          %v1112 = vadd.f32 %v1075, %v1104
          %v1113 = vadd.f32 %v1076, %v1105
          %v1114 = vadd.f32 %v1077, %v1106
          %v1115 = vadd.f32 %v1078, %v1107
          %v1116 = vadd.f32 %v1079, %v1108
          %v1117 = vadd.f32 %v1080, %v1109
          %v1118 = vadd.f32 %v1102, %v1103
          %v1119 = vadd.f32 %v1118, %v1104
          %v1120 = vadd.f32 %v1119, %v1105
          %v1121 = vadd.f32 %v1120, %v1106
          %v1122 = vadd.f32 %v1121, %v1107
          %v1123 = vadd.f32 %v1122, %v1108
          %v1124 = vadd.f32 %v1123, %v1109
          %v1125 = vrot.slane %v1124, 4
          %v1126 = vadd.f32 %v1124, %v1125
          %v1127 = vrot.slane %v1126, 2
          %v1128 = vadd.f32 %v1126, %v1127
          %v1129 = vrot.slane %v1128, 1
          %v1130 = vadd.f32 %v1128, %v1129
          %v1131 = vmul.f32 %v853, %v1005
          %v1132 = vmul.f32 %v855, %v1007
          %v1133 = vmul.f32 %v857, %v1009
          %v1134 = vmul.f32 %v859, %v1011
          %v1135 = vmul.f32 %v861, %v1013
          %v1136 = vmul.f32 %v863, %v1015
          %v1137 = vmul.f32 %v865, %v1017
          %v1138 = vmul.f32 %v867, %v1019
          %v1139 = vmul.f32 %v1131, %v552
          %v1140 = vmul.f32 %v1132, %v553
          %v1141 = vmul.f32 %v1133, %v554
          %v1142 = vmul.f32 %v1134, %v555
          %v1143 = vmul.f32 %v1135, %v556
          %v1144 = vmul.f32 %v1136, %v557
          %v1145 = vmul.f32 %v1137, %v558
          %v1146 = vmul.f32 %v1138, %v559
          %v1147 = vadd.f32 %v1110, %v1139
          %v1148 = vadd.f32 %v1111, %v1140
          %v1149 = vadd.f32 %v1112, %v1141
          %v1150 = vadd.f32 %v1113, %v1142
          %v1151 = vadd.f32 %v1114, %v1143
          %v1152 = vadd.f32 %v1115, %v1144
          %v1153 = vadd.f32 %v1116, %v1145
          %v1154 = vadd.f32 %v1117, %v1146
          %v1155 = vadd.f32 %v1139, %v1140
          %v1156 = vadd.f32 %v1155, %v1141
          %v1157 = vadd.f32 %v1156, %v1142
          %v1158 = vadd.f32 %v1157, %v1143
          %v1159 = vadd.f32 %v1158, %v1144
          %v1160 = vadd.f32 %v1159, %v1145
          %v1161 = vadd.f32 %v1160, %v1146
          %v1162 = vrot.slane %v1161, 4
          %v1163 = vadd.f32 %v1161, %v1162
          %v1164 = vrot.slane %v1163, 2
          %v1165 = vadd.f32 %v1163, %v1164
          %v1166 = vrot.slane %v1165, 1
          %v1167 = vadd.f32 %v1165, %v1166
          %v1168 = vmul.f32 %v885, %v1005
          %v1169 = vmul.f32 %v887, %v1007
          %v1170 = vmul.f32 %v889, %v1009
          %v1171 = vmul.f32 %v891, %v1011
          %v1172 = vmul.f32 %v893, %v1013
          %v1173 = vmul.f32 %v895, %v1015
          %v1174 = vmul.f32 %v897, %v1017
          %v1175 = vmul.f32 %v899, %v1019
          %v1176 = vmul.f32 %v1168, %v592
          %v1177 = vmul.f32 %v1169, %v593
          %v1178 = vmul.f32 %v1170, %v594
          %v1179 = vmul.f32 %v1171, %v595
          %v1180 = vmul.f32 %v1172, %v596
          %v1181 = vmul.f32 %v1173, %v597
          %v1182 = vmul.f32 %v1174, %v598
          %v1183 = vmul.f32 %v1175, %v599
          %v1184 = vadd.f32 %v1147, %v1176
          %v1185 = vadd.f32 %v1148, %v1177
          %v1186 = vadd.f32 %v1149, %v1178
          %v1187 = vadd.f32 %v1150, %v1179
          %v1188 = vadd.f32 %v1151, %v1180
          %v1189 = vadd.f32 %v1152, %v1181
          %v1190 = vadd.f32 %v1153, %v1182
          %v1191 = vadd.f32 %v1154, %v1183
          %v1192 = vadd.f32 %v1176, %v1177
          %v1193 = vadd.f32 %v1192, %v1178
          %v1194 = vadd.f32 %v1193, %v1179
          %v1195 = vadd.f32 %v1194, %v1180
          %v1196 = vadd.f32 %v1195, %v1181
          %v1197 = vadd.f32 %v1196, %v1182
          %v1198 = vadd.f32 %v1197, %v1183
          %v1199 = vrot.slane %v1198, 4
          %v1200 = vadd.f32 %v1198, %v1199
          %v1201 = vrot.slane %v1200, 2
          %v1202 = vadd.f32 %v1200, %v1201
          %v1203 = vrot.slane %v1202, 1
          %v1204 = vadd.f32 %v1202, %v1203
          %v1205 = vmul.f32 %v917, %v1005
          %v1206 = vmul.f32 %v919, %v1007
          %v1207 = vmul.f32 %v921, %v1009
          %v1208 = vmul.f32 %v923, %v1011
          %v1209 = vmul.f32 %v925, %v1013
          %v1210 = vmul.f32 %v927, %v1015
          %v1211 = vmul.f32 %v929, %v1017
          %v1212 = vmul.f32 %v931, %v1019
          %v1213 = vmul.f32 %v1205, %v632
          %v1214 = vmul.f32 %v1206, %v633
          %v1215 = vmul.f32 %v1207, %v634
          %v1216 = vmul.f32 %v1208, %v635
          %v1217 = vmul.f32 %v1209, %v636
          %v1218 = vmul.f32 %v1210, %v637
          %v1219 = vmul.f32 %v1211, %v638
          %v1220 = vmul.f32 %v1212, %v639
          %v1221 = vadd.f32 %v1184, %v1213
          %v1222 = vadd.f32 %v1185, %v1214
          %v1223 = vadd.f32 %v1186, %v1215
          %v1224 = vadd.f32 %v1187, %v1216
          %v1225 = vadd.f32 %v1188, %v1217
          %v1226 = vadd.f32 %v1189, %v1218
          %v1227 = vadd.f32 %v1190, %v1219
          %v1228 = vadd.f32 %v1191, %v1220
          %v1229 = vadd.f32 %v1213, %v1214
          %v1230 = vadd.f32 %v1229, %v1215
          %v1231 = vadd.f32 %v1230, %v1216
          %v1232 = vadd.f32 %v1231, %v1217
          %v1233 = vadd.f32 %v1232, %v1218
          %v1234 = vadd.f32 %v1233, %v1219
          %v1235 = vadd.f32 %v1234, %v1220
          %v1236 = vrot.slane %v1235, 4
          %v1237 = vadd.f32 %v1235, %v1236
          %v1238 = vrot.slane %v1237, 2
          %v1239 = vadd.f32 %v1237, %v1238
          %v1240 = vrot.slane %v1239, 1
          %v1241 = vadd.f32 %v1239, %v1240
          %v1242 = vmul.f32 %v949, %v1005
          %v1243 = vmul.f32 %v951, %v1007
          %v1244 = vmul.f32 %v953, %v1009
          %v1245 = vmul.f32 %v955, %v1011
          %v1246 = vmul.f32 %v957, %v1013
          %v1247 = vmul.f32 %v959, %v1015
          %v1248 = vmul.f32 %v961, %v1017
          %v1249 = vmul.f32 %v963, %v1019
          %v1250 = vmul.f32 %v1242, %v672
          %v1251 = vmul.f32 %v1243, %v673
          %v1252 = vmul.f32 %v1244, %v674
          %v1253 = vmul.f32 %v1245, %v675
          %v1254 = vmul.f32 %v1246, %v676
          %v1255 = vmul.f32 %v1247, %v677
          %v1256 = vmul.f32 %v1248, %v678
          %v1257 = vmul.f32 %v1249, %v679
          %v1258 = vadd.f32 %v1221, %v1250
          %v1259 = vadd.f32 %v1222, %v1251
          %v1260 = vadd.f32 %v1223, %v1252
          %v1261 = vadd.f32 %v1224, %v1253
          %v1262 = vadd.f32 %v1225, %v1254
          %v1263 = vadd.f32 %v1226, %v1255
          %v1264 = vadd.f32 %v1227, %v1256
          %v1265 = vadd.f32 %v1228, %v1257
          %v1266 = vadd.f32 %v1250, %v1251
          %v1267 = vadd.f32 %v1266, %v1252
          %v1268 = vadd.f32 %v1267, %v1253
          %v1269 = vadd.f32 %v1268, %v1254
          %v1270 = vadd.f32 %v1269, %v1255
          %v1271 = vadd.f32 %v1270, %v1256
          %v1272 = vadd.f32 %v1271, %v1257
          %v1273 = vrot.slane %v1272, 4
          %v1274 = vadd.f32 %v1272, %v1273
          %v1275 = vrot.slane %v1274, 2
          %v1276 = vadd.f32 %v1274, %v1275
          %v1277 = vrot.slane %v1276, 1
          %v1278 = vadd.f32 %v1276, %v1277
          %v1279 = vmul.f32 %v981, %v1005
          %v1280 = vmul.f32 %v983, %v1007
          %v1281 = vmul.f32 %v985, %v1009
          %v1282 = vmul.f32 %v987, %v1011
          %v1283 = vmul.f32 %v989, %v1013
          %v1284 = vmul.f32 %v991, %v1015
          %v1285 = vmul.f32 %v993, %v1017
          %v1286 = vmul.f32 %v995, %v1019
          %v1287 = vmul.f32 %v1279, %v712
          %v1288 = vmul.f32 %v1280, %v713
          %v1289 = vmul.f32 %v1281, %v714
          %v1290 = vmul.f32 %v1282, %v715
          %v1291 = vmul.f32 %v1283, %v716
          %v1292 = vmul.f32 %v1284, %v717
          %v1293 = vmul.f32 %v1285, %v718
          %v1294 = vmul.f32 %v1286, %v719
          %v1295 = vadd.f32 %v1258, %v1287
          %v1296 = vadd.f32 %v1259, %v1288
          %v1297 = vadd.f32 %v1260, %v1289
          %v1298 = vadd.f32 %v1261, %v1290
          %v1299 = vadd.f32 %v1262, %v1291
          %v1300 = vadd.f32 %v1263, %v1292
          %v1301 = vadd.f32 %v1264, %v1293
          %v1302 = vadd.f32 %v1265, %v1294
          %v1303 = vadd.f32 %v1287, %v1288
          %v1304 = vadd.f32 %v1303, %v1289
          %v1305 = vadd.f32 %v1304, %v1290
          %v1306 = vadd.f32 %v1305, %v1291
          %v1307 = vadd.f32 %v1306, %v1292
          %v1308 = vadd.f32 %v1307, %v1293
          %v1309 = vadd.f32 %v1308, %v1294
          %v1310 = vrot.slane %v1309, 4
          %v1311 = vadd.f32 %v1309, %v1310
          %v1312 = vrot.slane %v1311, 2
          %v1313 = vadd.f32 %v1311, %v1312
          %v1314 = vrot.slane %v1313, 1
          %v1315 = vadd.f32 %v1313, %v1314
          %vm1316 = vcmask 1040384
          %v1317 = vsel %vm1316, %v1056, %v1093
          %vm1318 = vcmask 1041408
          %v1319 = vsel %vm1318, %v1317, %v1130
          %vm1320 = vcmask 1042432
          %v1321 = vsel %vm1320, %v1319, %v1167
          %vm1322 = vcmask 1043456
          %v1323 = vsel %vm1322, %v1321, %v1204
          %vm1324 = vcmask 1044480
          %v1325 = vsel %vm1324, %v1323, %v1241
          %vm1326 = vcmask 1045504
          %v1327 = vsel %vm1326, %v1325, %v1278
          %vm1328 = vcmask 1046528
          %v1329 = vsel %vm1328, %v1327, %v1315
          %v1330 = vadd.f32 %v382, %v1329
          %v1331 = vsub.f32 %v428, %v439
          %v1332 = vsub.f32 %v429, %v439
          %v1333 = vsub.f32 %v430, %v439
          %v1334 = vsub.f32 %v431, %v439
          %v1335 = vsub.f32 %v432, %v439
          %v1336 = vsub.f32 %v433, %v439
          %v1337 = vsub.f32 %v434, %v439
          %v1338 = vsub.f32 %v435, %v439
          %v1339 = vmul.f32 %v1331, %v1331
          %v1340 = vmul.f32 %v1332, %v1332
          %v1341 = vmul.f32 %v1333, %v1333
          %v1342 = vmul.f32 %v1334, %v1334
          %v1343 = vmul.f32 %v1335, %v1335
          %v1344 = vmul.f32 %v1336, %v1336
          %v1345 = vmul.f32 %v1337, %v1337
          %v1346 = vmul.f32 %v1338, %v1338
          %v1347 = vmul.f32 %v459, %v1339
          %v1348 = vmul.f32 %v459, %v1340
          %v1349 = vmul.f32 %v459, %v1341
          %v1350 = vmul.f32 %v459, %v1342
          %v1351 = vmul.f32 %v459, %v1343
          %v1352 = vmul.f32 %v459, %v1344
          %v1353 = vmul.f32 %v459, %v1345
          %v1354 = vmul.f32 %v459, %v1346
          %v1355 = vsub.f32 %v428, %v471
          %v1356 = vsub.f32 %v429, %v471
          %v1357 = vsub.f32 %v430, %v471
          %v1358 = vsub.f32 %v431, %v471
          %v1359 = vsub.f32 %v432, %v471
          %v1360 = vsub.f32 %v433, %v471
          %v1361 = vsub.f32 %v434, %v471
          %v1362 = vsub.f32 %v435, %v471
          %v1363 = vmul.f32 %v1355, %v1355
          %v1364 = vmul.f32 %v1356, %v1356
          %v1365 = vmul.f32 %v1357, %v1357
          %v1366 = vmul.f32 %v1358, %v1358
          %v1367 = vmul.f32 %v1359, %v1359
          %v1368 = vmul.f32 %v1360, %v1360
          %v1369 = vmul.f32 %v1361, %v1361
          %v1370 = vmul.f32 %v1362, %v1362
          %v1371 = vmul.f32 %v491, %v1363
          %v1372 = vmul.f32 %v491, %v1364
          %v1373 = vmul.f32 %v491, %v1365
          %v1374 = vmul.f32 %v491, %v1366
          %v1375 = vmul.f32 %v491, %v1367
          %v1376 = vmul.f32 %v491, %v1368
          %v1377 = vmul.f32 %v491, %v1369
          %v1378 = vmul.f32 %v491, %v1370
          %v1379 = vmax.f32 %v1347, %v1371
          %v1380 = vmax.f32 %v1348, %v1372
          %v1381 = vmax.f32 %v1349, %v1373
          %v1382 = vmax.f32 %v1350, %v1374
          %v1383 = vmax.f32 %v1351, %v1375
          %v1384 = vmax.f32 %v1352, %v1376
          %v1385 = vmax.f32 %v1353, %v1377
          %v1386 = vmax.f32 %v1354, %v1378
          %v1387 = vsub.f32 %v428, %v511
          %v1388 = vsub.f32 %v429, %v511
          %v1389 = vsub.f32 %v430, %v511
          %v1390 = vsub.f32 %v431, %v511
          %v1391 = vsub.f32 %v432, %v511
          %v1392 = vsub.f32 %v433, %v511
          %v1393 = vsub.f32 %v434, %v511
          %v1394 = vsub.f32 %v435, %v511
          %v1395 = vmul.f32 %v1387, %v1387
          %v1396 = vmul.f32 %v1388, %v1388
          %v1397 = vmul.f32 %v1389, %v1389
          %v1398 = vmul.f32 %v1390, %v1390
          %v1399 = vmul.f32 %v1391, %v1391
          %v1400 = vmul.f32 %v1392, %v1392
          %v1401 = vmul.f32 %v1393, %v1393
          %v1402 = vmul.f32 %v1394, %v1394
          %v1403 = vmul.f32 %v531, %v1395
          %v1404 = vmul.f32 %v531, %v1396
          %v1405 = vmul.f32 %v531, %v1397
          %v1406 = vmul.f32 %v531, %v1398
          %v1407 = vmul.f32 %v531, %v1399
          %v1408 = vmul.f32 %v531, %v1400
          %v1409 = vmul.f32 %v531, %v1401
          %v1410 = vmul.f32 %v531, %v1402
          %v1411 = vmax.f32 %v1379, %v1403
          %v1412 = vmax.f32 %v1380, %v1404
          %v1413 = vmax.f32 %v1381, %v1405
          %v1414 = vmax.f32 %v1382, %v1406
          %v1415 = vmax.f32 %v1383, %v1407
          %v1416 = vmax.f32 %v1384, %v1408
          %v1417 = vmax.f32 %v1385, %v1409
          %v1418 = vmax.f32 %v1386, %v1410
          %v1419 = vsub.f32 %v428, %v551
          %v1420 = vsub.f32 %v429, %v551
          %v1421 = vsub.f32 %v430, %v551
          %v1422 = vsub.f32 %v431, %v551
          %v1423 = vsub.f32 %v432, %v551
          %v1424 = vsub.f32 %v433, %v551
          %v1425 = vsub.f32 %v434, %v551
          %v1426 = vsub.f32 %v435, %v551
          %v1427 = vmul.f32 %v1419, %v1419
          %v1428 = vmul.f32 %v1420, %v1420
          %v1429 = vmul.f32 %v1421, %v1421
          %v1430 = vmul.f32 %v1422, %v1422
          %v1431 = vmul.f32 %v1423, %v1423
          %v1432 = vmul.f32 %v1424, %v1424
          %v1433 = vmul.f32 %v1425, %v1425
          %v1434 = vmul.f32 %v1426, %v1426
          %v1435 = vmul.f32 %v571, %v1427
          %v1436 = vmul.f32 %v571, %v1428
          %v1437 = vmul.f32 %v571, %v1429
          %v1438 = vmul.f32 %v571, %v1430
          %v1439 = vmul.f32 %v571, %v1431
          %v1440 = vmul.f32 %v571, %v1432
          %v1441 = vmul.f32 %v571, %v1433
          %v1442 = vmul.f32 %v571, %v1434
          %v1443 = vmax.f32 %v1411, %v1435
          %v1444 = vmax.f32 %v1412, %v1436
          %v1445 = vmax.f32 %v1413, %v1437
          %v1446 = vmax.f32 %v1414, %v1438
          %v1447 = vmax.f32 %v1415, %v1439
          %v1448 = vmax.f32 %v1416, %v1440
          %v1449 = vmax.f32 %v1417, %v1441
          %v1450 = vmax.f32 %v1418, %v1442
          %v1451 = vsub.f32 %v428, %v591
          %v1452 = vsub.f32 %v429, %v591
          %v1453 = vsub.f32 %v430, %v591
          %v1454 = vsub.f32 %v431, %v591
          %v1455 = vsub.f32 %v432, %v591
          %v1456 = vsub.f32 %v433, %v591
          %v1457 = vsub.f32 %v434, %v591
          %v1458 = vsub.f32 %v435, %v591
          %v1459 = vmul.f32 %v1451, %v1451
          %v1460 = vmul.f32 %v1452, %v1452
          %v1461 = vmul.f32 %v1453, %v1453
          %v1462 = vmul.f32 %v1454, %v1454
          %v1463 = vmul.f32 %v1455, %v1455
          %v1464 = vmul.f32 %v1456, %v1456
          %v1465 = vmul.f32 %v1457, %v1457
          %v1466 = vmul.f32 %v1458, %v1458
          %v1467 = vmul.f32 %v611, %v1459
          %v1468 = vmul.f32 %v611, %v1460
          %v1469 = vmul.f32 %v611, %v1461
          %v1470 = vmul.f32 %v611, %v1462
          %v1471 = vmul.f32 %v611, %v1463
          %v1472 = vmul.f32 %v611, %v1464
          %v1473 = vmul.f32 %v611, %v1465
          %v1474 = vmul.f32 %v611, %v1466
          %v1475 = vmax.f32 %v1443, %v1467
          %v1476 = vmax.f32 %v1444, %v1468
          %v1477 = vmax.f32 %v1445, %v1469
          %v1478 = vmax.f32 %v1446, %v1470
          %v1479 = vmax.f32 %v1447, %v1471
          %v1480 = vmax.f32 %v1448, %v1472
          %v1481 = vmax.f32 %v1449, %v1473
          %v1482 = vmax.f32 %v1450, %v1474
          %v1483 = vsub.f32 %v428, %v631
          %v1484 = vsub.f32 %v429, %v631
          %v1485 = vsub.f32 %v430, %v631
          %v1486 = vsub.f32 %v431, %v631
          %v1487 = vsub.f32 %v432, %v631
          %v1488 = vsub.f32 %v433, %v631
          %v1489 = vsub.f32 %v434, %v631
          %v1490 = vsub.f32 %v435, %v631
          %v1491 = vmul.f32 %v1483, %v1483
          %v1492 = vmul.f32 %v1484, %v1484
          %v1493 = vmul.f32 %v1485, %v1485
          %v1494 = vmul.f32 %v1486, %v1486
          %v1495 = vmul.f32 %v1487, %v1487
          %v1496 = vmul.f32 %v1488, %v1488
          %v1497 = vmul.f32 %v1489, %v1489
          %v1498 = vmul.f32 %v1490, %v1490
          %v1499 = vmul.f32 %v651, %v1491
          %v1500 = vmul.f32 %v651, %v1492
          %v1501 = vmul.f32 %v651, %v1493
          %v1502 = vmul.f32 %v651, %v1494
          %v1503 = vmul.f32 %v651, %v1495
          %v1504 = vmul.f32 %v651, %v1496
          %v1505 = vmul.f32 %v651, %v1497
          %v1506 = vmul.f32 %v651, %v1498
          %v1507 = vmax.f32 %v1475, %v1499
          %v1508 = vmax.f32 %v1476, %v1500
          %v1509 = vmax.f32 %v1477, %v1501
          %v1510 = vmax.f32 %v1478, %v1502
          %v1511 = vmax.f32 %v1479, %v1503
          %v1512 = vmax.f32 %v1480, %v1504
          %v1513 = vmax.f32 %v1481, %v1505
          %v1514 = vmax.f32 %v1482, %v1506
          %v1515 = vsub.f32 %v428, %v671
          %v1516 = vsub.f32 %v429, %v671
          %v1517 = vsub.f32 %v430, %v671
          %v1518 = vsub.f32 %v431, %v671
          %v1519 = vsub.f32 %v432, %v671
          %v1520 = vsub.f32 %v433, %v671
          %v1521 = vsub.f32 %v434, %v671
          %v1522 = vsub.f32 %v435, %v671
          %v1523 = vmul.f32 %v1515, %v1515
          %v1524 = vmul.f32 %v1516, %v1516
          %v1525 = vmul.f32 %v1517, %v1517
          %v1526 = vmul.f32 %v1518, %v1518
          %v1527 = vmul.f32 %v1519, %v1519
          %v1528 = vmul.f32 %v1520, %v1520
          %v1529 = vmul.f32 %v1521, %v1521
          %v1530 = vmul.f32 %v1522, %v1522
          %v1531 = vmul.f32 %v691, %v1523
          %v1532 = vmul.f32 %v691, %v1524
          %v1533 = vmul.f32 %v691, %v1525
          %v1534 = vmul.f32 %v691, %v1526
          %v1535 = vmul.f32 %v691, %v1527
          %v1536 = vmul.f32 %v691, %v1528
          %v1537 = vmul.f32 %v691, %v1529
          %v1538 = vmul.f32 %v691, %v1530
          %v1539 = vmax.f32 %v1507, %v1531
          %v1540 = vmax.f32 %v1508, %v1532
          %v1541 = vmax.f32 %v1509, %v1533
          %v1542 = vmax.f32 %v1510, %v1534
          %v1543 = vmax.f32 %v1511, %v1535
          %v1544 = vmax.f32 %v1512, %v1536
          %v1545 = vmax.f32 %v1513, %v1537
          %v1546 = vmax.f32 %v1514, %v1538
          %v1547 = vsub.f32 %v428, %v711
          %v1548 = vsub.f32 %v429, %v711
          %v1549 = vsub.f32 %v430, %v711
          %v1550 = vsub.f32 %v431, %v711
          %v1551 = vsub.f32 %v432, %v711
          %v1552 = vsub.f32 %v433, %v711
          %v1553 = vsub.f32 %v434, %v711
          %v1554 = vsub.f32 %v435, %v711
          %v1555 = vmul.f32 %v1547, %v1547
          %v1556 = vmul.f32 %v1548, %v1548
          %v1557 = vmul.f32 %v1549, %v1549
          %v1558 = vmul.f32 %v1550, %v1550
          %v1559 = vmul.f32 %v1551, %v1551
          %v1560 = vmul.f32 %v1552, %v1552
          %v1561 = vmul.f32 %v1553, %v1553
          %v1562 = vmul.f32 %v1554, %v1554
          %v1563 = vmul.f32 %v731, %v1555
          %v1564 = vmul.f32 %v731, %v1556
          %v1565 = vmul.f32 %v731, %v1557
          %v1566 = vmul.f32 %v731, %v1558
          %v1567 = vmul.f32 %v731, %v1559
          %v1568 = vmul.f32 %v731, %v1560
          %v1569 = vmul.f32 %v731, %v1561
          %v1570 = vmul.f32 %v731, %v1562
          %v1571 = vmax.f32 %v1539, %v1563
          %v1572 = vmax.f32 %v1540, %v1564
          %v1573 = vmax.f32 %v1541, %v1565
          %v1574 = vmax.f32 %v1542, %v1566
          %v1575 = vmax.f32 %v1543, %v1567
          %v1576 = vmax.f32 %v1544, %v1568
          %v1577 = vmax.f32 %v1545, %v1569
          %v1578 = vmax.f32 %v1546, %v1570
          %v1579 = vsub.f32 %v1347, %v1571
          %v1580 = vsub.f32 %v1348, %v1572
          %v1581 = vsub.f32 %v1349, %v1573
          %v1582 = vsub.f32 %v1350, %v1574
          %v1583 = vsub.f32 %v1351, %v1575
          %v1584 = vsub.f32 %v1352, %v1576
          %v1585 = vsub.f32 %v1353, %v1577
          %v1586 = vsub.f32 %v1354, %v1578
          %v1587 = vmul.f32 %v1579, 1.442695
          %v1588 = vpow.pop %v1587
          %v1589 = vmul.f32 %v1580, 1.442695
          %v1590 = vpow.pop %v1589
          %v1591 = vmul.f32 %v1581, 1.442695
          %v1592 = vpow.pop %v1591
          %v1593 = vmul.f32 %v1582, 1.442695
          %v1594 = vpow.pop %v1593
          %v1595 = vmul.f32 %v1583, 1.442695
          %v1596 = vpow.pop %v1595
          %v1597 = vmul.f32 %v1584, 1.442695
          %v1598 = vpow.pop %v1597
          %v1599 = vmul.f32 %v1585, 1.442695
          %v1600 = vpow.pop %v1599
          %v1601 = vmul.f32 %v1586, 1.442695
          %v1602 = vpow.pop %v1601
          %v1603 = vadd.f32 %v1588, 0.0
          %v1604 = vadd.f32 %v1590, 0.0
          %v1605 = vadd.f32 %v1592, 0.0
          %v1606 = vadd.f32 %v1594, 0.0
          %v1607 = vadd.f32 %v1596, 0.0
          %v1608 = vadd.f32 %v1598, 0.0
          %v1609 = vadd.f32 %v1600, 0.0
          %v1610 = vadd.f32 %v1602, 0.0
          %v1611 = vsub.f32 %v1371, %v1571
          %v1612 = vsub.f32 %v1372, %v1572
          %v1613 = vsub.f32 %v1373, %v1573
          %v1614 = vsub.f32 %v1374, %v1574
          %v1615 = vsub.f32 %v1375, %v1575
          %v1616 = vsub.f32 %v1376, %v1576
          %v1617 = vsub.f32 %v1377, %v1577
          %v1618 = vsub.f32 %v1378, %v1578
          %v1619 = vmul.f32 %v1611, 1.442695
          %v1620 = vpow.pop %v1619
          %v1621 = vmul.f32 %v1612, 1.442695
          %v1622 = vpow.pop %v1621
          %v1623 = vmul.f32 %v1613, 1.442695
          %v1624 = vpow.pop %v1623
          %v1625 = vmul.f32 %v1614, 1.442695
          %v1626 = vpow.pop %v1625
          %v1627 = vmul.f32 %v1615, 1.442695
          %v1628 = vpow.pop %v1627
          %v1629 = vmul.f32 %v1616, 1.442695
          %v1630 = vpow.pop %v1629
          %v1631 = vmul.f32 %v1617, 1.442695
          %v1632 = vpow.pop %v1631
          %v1633 = vmul.f32 %v1618, 1.442695
          %v1634 = vpow.pop %v1633
          %v1635 = vadd.f32 %v1603, %v1620
          %v1636 = vadd.f32 %v1604, %v1622
          %v1637 = vadd.f32 %v1605, %v1624
          %v1638 = vadd.f32 %v1606, %v1626
          %v1639 = vadd.f32 %v1607, %v1628
          %v1640 = vadd.f32 %v1608, %v1630
          %v1641 = vadd.f32 %v1609, %v1632
          %v1642 = vadd.f32 %v1610, %v1634
          %v1643 = vsub.f32 %v1403, %v1571
          %v1644 = vsub.f32 %v1404, %v1572
          %v1645 = vsub.f32 %v1405, %v1573
          %v1646 = vsub.f32 %v1406, %v1574
          %v1647 = vsub.f32 %v1407, %v1575
          %v1648 = vsub.f32 %v1408, %v1576
          %v1649 = vsub.f32 %v1409, %v1577
          %v1650 = vsub.f32 %v1410, %v1578
          %v1651 = vmul.f32 %v1643, 1.442695
          %v1652 = vpow.pop %v1651
          %v1653 = vmul.f32 %v1644, 1.442695
          %v1654 = vpow.pop %v1653
          %v1655 = vmul.f32 %v1645, 1.442695
          %v1656 = vpow.pop %v1655
          %v1657 = vmul.f32 %v1646, 1.442695
          %v1658 = vpow.pop %v1657
          %v1659 = vmul.f32 %v1647, 1.442695
          %v1660 = vpow.pop %v1659
          %v1661 = vmul.f32 %v1648, 1.442695
          %v1662 = vpow.pop %v1661
          %v1663 = vmul.f32 %v1649, 1.442695
          %v1664 = vpow.pop %v1663
          %v1665 = vmul.f32 %v1650, 1.442695
          %v1666 = vpow.pop %v1665
          %v1667 = vadd.f32 %v1635, %v1652
          %v1668 = vadd.f32 %v1636, %v1654
          %v1669 = vadd.f32 %v1637, %v1656
          %v1670 = vadd.f32 %v1638, %v1658
          %v1671 = vadd.f32 %v1639, %v1660
          %v1672 = vadd.f32 %v1640, %v1662
          %v1673 = vadd.f32 %v1641, %v1664
          %v1674 = vadd.f32 %v1642, %v1666
          %v1675 = vsub.f32 %v1435, %v1571
          %v1676 = vsub.f32 %v1436, %v1572
          %v1677 = vsub.f32 %v1437, %v1573
          %v1678 = vsub.f32 %v1438, %v1574
          %v1679 = vsub.f32 %v1439, %v1575
          %v1680 = vsub.f32 %v1440, %v1576
          %v1681 = vsub.f32 %v1441, %v1577
          %v1682 = vsub.f32 %v1442, %v1578
          %v1683 = vmul.f32 %v1675, 1.442695
          %v1684 = vpow.pop %v1683
          %v1685 = vmul.f32 %v1676, 1.442695
          %v1686 = vpow.pop %v1685
          %v1687 = vmul.f32 %v1677, 1.442695
          %v1688 = vpow.pop %v1687
          %v1689 = vmul.f32 %v1678, 1.442695
          %v1690 = vpow.pop %v1689
          %v1691 = vmul.f32 %v1679, 1.442695
          %v1692 = vpow.pop %v1691
          %v1693 = vmul.f32 %v1680, 1.442695
          %v1694 = vpow.pop %v1693
          %v1695 = vmul.f32 %v1681, 1.442695
          %v1696 = vpow.pop %v1695
          %v1697 = vmul.f32 %v1682, 1.442695
          %v1698 = vpow.pop %v1697
          %v1699 = vadd.f32 %v1667, %v1684
          %v1700 = vadd.f32 %v1668, %v1686
          %v1701 = vadd.f32 %v1669, %v1688
          %v1702 = vadd.f32 %v1670, %v1690
          %v1703 = vadd.f32 %v1671, %v1692
          %v1704 = vadd.f32 %v1672, %v1694
          %v1705 = vadd.f32 %v1673, %v1696
          %v1706 = vadd.f32 %v1674, %v1698
          %v1707 = vsub.f32 %v1467, %v1571
          %v1708 = vsub.f32 %v1468, %v1572
          %v1709 = vsub.f32 %v1469, %v1573
          %v1710 = vsub.f32 %v1470, %v1574
          %v1711 = vsub.f32 %v1471, %v1575
          %v1712 = vsub.f32 %v1472, %v1576
          %v1713 = vsub.f32 %v1473, %v1577
          %v1714 = vsub.f32 %v1474, %v1578
          %v1715 = vmul.f32 %v1707, 1.442695
          %v1716 = vpow.pop %v1715
          %v1717 = vmul.f32 %v1708, 1.442695
          %v1718 = vpow.pop %v1717
          %v1719 = vmul.f32 %v1709, 1.442695
          %v1720 = vpow.pop %v1719
          %v1721 = vmul.f32 %v1710, 1.442695
          %v1722 = vpow.pop %v1721
          %v1723 = vmul.f32 %v1711, 1.442695
          %v1724 = vpow.pop %v1723
          %v1725 = vmul.f32 %v1712, 1.442695
          %v1726 = vpow.pop %v1725
          %v1727 = vmul.f32 %v1713, 1.442695
          %v1728 = vpow.pop %v1727
          %v1729 = vmul.f32 %v1714, 1.442695
          %v1730 = vpow.pop %v1729
          %v1731 = vadd.f32 %v1699, %v1716
          %v1732 = vadd.f32 %v1700, %v1718
          %v1733 = vadd.f32 %v1701, %v1720
          %v1734 = vadd.f32 %v1702, %v1722
          %v1735 = vadd.f32 %v1703, %v1724
          %v1736 = vadd.f32 %v1704, %v1726
          %v1737 = vadd.f32 %v1705, %v1728
          %v1738 = vadd.f32 %v1706, %v1730
          %v1739 = vsub.f32 %v1499, %v1571
          %v1740 = vsub.f32 %v1500, %v1572
          %v1741 = vsub.f32 %v1501, %v1573
          %v1742 = vsub.f32 %v1502, %v1574
          %v1743 = vsub.f32 %v1503, %v1575
          %v1744 = vsub.f32 %v1504, %v1576
          %v1745 = vsub.f32 %v1505, %v1577
          %v1746 = vsub.f32 %v1506, %v1578
          %v1747 = vmul.f32 %v1739, 1.442695
          %v1748 = vpow.pop %v1747
          %v1749 = vmul.f32 %v1740, 1.442695
          %v1750 = vpow.pop %v1749
          %v1751 = vmul.f32 %v1741, 1.442695
          %v1752 = vpow.pop %v1751
          %v1753 = vmul.f32 %v1742, 1.442695
          %v1754 = vpow.pop %v1753
          %v1755 = vmul.f32 %v1743, 1.442695
          %v1756 = vpow.pop %v1755
          %v1757 = vmul.f32 %v1744, 1.442695
          %v1758 = vpow.pop %v1757
          %v1759 = vmul.f32 %v1745, 1.442695
          %v1760 = vpow.pop %v1759
          %v1761 = vmul.f32 %v1746, 1.442695
          %v1762 = vpow.pop %v1761
          %v1763 = vadd.f32 %v1731, %v1748
          %v1764 = vadd.f32 %v1732, %v1750
          %v1765 = vadd.f32 %v1733, %v1752
          %v1766 = vadd.f32 %v1734, %v1754
          %v1767 = vadd.f32 %v1735, %v1756
          %v1768 = vadd.f32 %v1736, %v1758
          %v1769 = vadd.f32 %v1737, %v1760
          %v1770 = vadd.f32 %v1738, %v1762
          %v1771 = vsub.f32 %v1531, %v1571
          %v1772 = vsub.f32 %v1532, %v1572
          %v1773 = vsub.f32 %v1533, %v1573
          %v1774 = vsub.f32 %v1534, %v1574
          %v1775 = vsub.f32 %v1535, %v1575
          %v1776 = vsub.f32 %v1536, %v1576
          %v1777 = vsub.f32 %v1537, %v1577
          %v1778 = vsub.f32 %v1538, %v1578
          %v1779 = vmul.f32 %v1771, 1.442695
          %v1780 = vpow.pop %v1779
          %v1781 = vmul.f32 %v1772, 1.442695
          %v1782 = vpow.pop %v1781
          %v1783 = vmul.f32 %v1773, 1.442695
          %v1784 = vpow.pop %v1783
          %v1785 = vmul.f32 %v1774, 1.442695
          %v1786 = vpow.pop %v1785
          %v1787 = vmul.f32 %v1775, 1.442695
          %v1788 = vpow.pop %v1787
          %v1789 = vmul.f32 %v1776, 1.442695
          %v1790 = vpow.pop %v1789
          %v1791 = vmul.f32 %v1777, 1.442695
          %v1792 = vpow.pop %v1791
          %v1793 = vmul.f32 %v1778, 1.442695
          %v1794 = vpow.pop %v1793
          %v1795 = vadd.f32 %v1763, %v1780
          %v1796 = vadd.f32 %v1764, %v1782
          %v1797 = vadd.f32 %v1765, %v1784
          %v1798 = vadd.f32 %v1766, %v1786
          %v1799 = vadd.f32 %v1767, %v1788
          %v1800 = vadd.f32 %v1768, %v1790
          %v1801 = vadd.f32 %v1769, %v1792
          %v1802 = vadd.f32 %v1770, %v1794
          %v1803 = vsub.f32 %v1563, %v1571
          %v1804 = vsub.f32 %v1564, %v1572
          %v1805 = vsub.f32 %v1565, %v1573
          %v1806 = vsub.f32 %v1566, %v1574
          %v1807 = vsub.f32 %v1567, %v1575
          %v1808 = vsub.f32 %v1568, %v1576
          %v1809 = vsub.f32 %v1569, %v1577
          %v1810 = vsub.f32 %v1570, %v1578
          %v1811 = vmul.f32 %v1803, 1.442695
          %v1812 = vpow.pop %v1811
          %v1813 = vmul.f32 %v1804, 1.442695
          %v1814 = vpow.pop %v1813
          %v1815 = vmul.f32 %v1805, 1.442695
          %v1816 = vpow.pop %v1815
          %v1817 = vmul.f32 %v1806, 1.442695
          %v1818 = vpow.pop %v1817
          %v1819 = vmul.f32 %v1807, 1.442695
          %v1820 = vpow.pop %v1819
          %v1821 = vmul.f32 %v1808, 1.442695
          %v1822 = vpow.pop %v1821
          %v1823 = vmul.f32 %v1809, 1.442695
          %v1824 = vpow.pop %v1823
          %v1825 = vmul.f32 %v1810, 1.442695
          %v1826 = vpow.pop %v1825
          %v1827 = vadd.f32 %v1795, %v1812
          %v1828 = vadd.f32 %v1796, %v1814
          %v1829 = vadd.f32 %v1797, %v1816
          %v1830 = vadd.f32 %v1798, %v1818
          %v1831 = vadd.f32 %v1799, %v1820
          %v1832 = vadd.f32 %v1800, %v1822
          %v1833 = vadd.f32 %v1801, %v1824
          %v1834 = vadd.f32 %v1802, %v1826
          %v1835 = vrcp.pop %v1827
          %v1836 = vmul.f32 1.0, %v1835
          %v1837 = vrcp.pop %v1828
          %v1838 = vmul.f32 1.0, %v1837
          %v1839 = vrcp.pop %v1829
          %v1840 = vmul.f32 1.0, %v1839
          %v1841 = vrcp.pop %v1830
          %v1842 = vmul.f32 1.0, %v1841
          %v1843 = vrcp.pop %v1831
          %v1844 = vmul.f32 1.0, %v1843
          %v1845 = vrcp.pop %v1832
          %v1846 = vmul.f32 1.0, %v1845
          %v1847 = vrcp.pop %v1833
          %v1848 = vmul.f32 1.0, %v1847
          %v1849 = vrcp.pop %v1834
          %v1850 = vmul.f32 1.0, %v1849
          %v1851 = vmul.f32 %v1588, %v1836
          %v1852 = vmul.f32 %v1590, %v1838
          %v1853 = vmul.f32 %v1592, %v1840
          %v1854 = vmul.f32 %v1594, %v1842
          %v1855 = vmul.f32 %v1596, %v1844
          %v1856 = vmul.f32 %v1598, %v1846
          %v1857 = vmul.f32 %v1600, %v1848
          %v1858 = vmul.f32 %v1602, %v1850
          %v1859 = vmul.f32 %v1851, %v1331
          %v1860 = vmul.f32 %v1852, %v1332
          %v1861 = vmul.f32 %v1853, %v1333
          %v1862 = vmul.f32 %v1854, %v1334
          %v1863 = vmul.f32 %v1855, %v1335
          %v1864 = vmul.f32 %v1856, %v1336
          %v1865 = vmul.f32 %v1857, %v1337
          %v1866 = vmul.f32 %v1858, %v1338
          %v1867 = vadd.f32 %v1859, 0.0
          %v1868 = vadd.f32 %v1860, 0.0
          %v1869 = vadd.f32 %v1861, 0.0
          %v1870 = vadd.f32 %v1862, 0.0
          %v1871 = vadd.f32 %v1863, 0.0
          %v1872 = vadd.f32 %v1864, 0.0
          %v1873 = vadd.f32 %v1865, 0.0
          %v1874 = vadd.f32 %v1866, 0.0
          %v1875 = vadd.f32 %v1859, %v1860
          %v1876 = vadd.f32 %v1875, %v1861
          %v1877 = vadd.f32 %v1876, %v1862
          %v1878 = vadd.f32 %v1877, %v1863
          %v1879 = vadd.f32 %v1878, %v1864
          %v1880 = vadd.f32 %v1879, %v1865
          %v1881 = vadd.f32 %v1880, %v1866
          %v1882 = vrot.slane %v1881, 4
          %v1883 = vadd.f32 %v1881, %v1882
          %v1884 = vrot.slane %v1883, 2
          %v1885 = vadd.f32 %v1883, %v1884
          %v1886 = vrot.slane %v1885, 1
          %v1887 = vadd.f32 %v1885, %v1886
          %v1888 = vmul.f32 %v1620, %v1836
          %v1889 = vmul.f32 %v1622, %v1838
          %v1890 = vmul.f32 %v1624, %v1840
          %v1891 = vmul.f32 %v1626, %v1842
          %v1892 = vmul.f32 %v1628, %v1844
          %v1893 = vmul.f32 %v1630, %v1846
          %v1894 = vmul.f32 %v1632, %v1848
          %v1895 = vmul.f32 %v1634, %v1850
          %v1896 = vmul.f32 %v1888, %v1355
          %v1897 = vmul.f32 %v1889, %v1356
          %v1898 = vmul.f32 %v1890, %v1357
          %v1899 = vmul.f32 %v1891, %v1358
          %v1900 = vmul.f32 %v1892, %v1359
          %v1901 = vmul.f32 %v1893, %v1360
          %v1902 = vmul.f32 %v1894, %v1361
          %v1903 = vmul.f32 %v1895, %v1362
          %v1904 = vadd.f32 %v1867, %v1896
          %v1905 = vadd.f32 %v1868, %v1897
          %v1906 = vadd.f32 %v1869, %v1898
          %v1907 = vadd.f32 %v1870, %v1899
          %v1908 = vadd.f32 %v1871, %v1900
          %v1909 = vadd.f32 %v1872, %v1901
          %v1910 = vadd.f32 %v1873, %v1902
          %v1911 = vadd.f32 %v1874, %v1903
          %v1912 = vadd.f32 %v1896, %v1897
          %v1913 = vadd.f32 %v1912, %v1898
          %v1914 = vadd.f32 %v1913, %v1899
          %v1915 = vadd.f32 %v1914, %v1900
          %v1916 = vadd.f32 %v1915, %v1901
          %v1917 = vadd.f32 %v1916, %v1902
          %v1918 = vadd.f32 %v1917, %v1903
          %v1919 = vrot.slane %v1918, 4
          %v1920 = vadd.f32 %v1918, %v1919
          %v1921 = vrot.slane %v1920, 2
          %v1922 = vadd.f32 %v1920, %v1921
          %v1923 = vrot.slane %v1922, 1
          %v1924 = vadd.f32 %v1922, %v1923
          %v1925 = vmul.f32 %v1652, %v1836
          %v1926 = vmul.f32 %v1654, %v1838
          %v1927 = vmul.f32 %v1656, %v1840
          %v1928 = vmul.f32 %v1658, %v1842
          %v1929 = vmul.f32 %v1660, %v1844
          %v1930 = vmul.f32 %v1662, %v1846
          %v1931 = vmul.f32 %v1664, %v1848
          %v1932 = vmul.f32 %v1666, %v1850
          %v1933 = vmul.f32 %v1925, %v1387
          %v1934 = vmul.f32 %v1926, %v1388
          %v1935 = vmul.f32 %v1927, %v1389
          %v1936 = vmul.f32 %v1928, %v1390
          %v1937 = vmul.f32 %v1929, %v1391
          %v1938 = vmul.f32 %v1930, %v1392
          %v1939 = vmul.f32 %v1931, %v1393
          %v1940 = vmul.f32 %v1932, %v1394
          %v1941 = vadd.f32 %v1904, %v1933
          %v1942 = vadd.f32 %v1905, %v1934
          %v1943 = vadd.f32 %v1906, %v1935
          %v1944 = vadd.f32 %v1907, %v1936
          %v1945 = vadd.f32 %v1908, %v1937
          %v1946 = vadd.f32 %v1909, %v1938
          %v1947 = vadd.f32 %v1910, %v1939
          %v1948 = vadd.f32 %v1911, %v1940
          %v1949 = vadd.f32 %v1933, %v1934
          %v1950 = vadd.f32 %v1949, %v1935
          %v1951 = vadd.f32 %v1950, %v1936
          %v1952 = vadd.f32 %v1951, %v1937
          %v1953 = vadd.f32 %v1952, %v1938
          %v1954 = vadd.f32 %v1953, %v1939
          %v1955 = vadd.f32 %v1954, %v1940
          %v1956 = vrot.slane %v1955, 4
          %v1957 = vadd.f32 %v1955, %v1956
          %v1958 = vrot.slane %v1957, 2
          %v1959 = vadd.f32 %v1957, %v1958
          %v1960 = vrot.slane %v1959, 1
          %v1961 = vadd.f32 %v1959, %v1960
          %v1962 = vmul.f32 %v1684, %v1836
          %v1963 = vmul.f32 %v1686, %v1838
          %v1964 = vmul.f32 %v1688, %v1840
          %v1965 = vmul.f32 %v1690, %v1842
          %v1966 = vmul.f32 %v1692, %v1844
          %v1967 = vmul.f32 %v1694, %v1846
          %v1968 = vmul.f32 %v1696, %v1848
          %v1969 = vmul.f32 %v1698, %v1850
          %v1970 = vmul.f32 %v1962, %v1419
          %v1971 = vmul.f32 %v1963, %v1420
          %v1972 = vmul.f32 %v1964, %v1421
          %v1973 = vmul.f32 %v1965, %v1422
          %v1974 = vmul.f32 %v1966, %v1423
          %v1975 = vmul.f32 %v1967, %v1424
          %v1976 = vmul.f32 %v1968, %v1425
          %v1977 = vmul.f32 %v1969, %v1426
          %v1978 = vadd.f32 %v1941, %v1970
          %v1979 = vadd.f32 %v1942, %v1971
          %v1980 = vadd.f32 %v1943, %v1972
          %v1981 = vadd.f32 %v1944, %v1973
          %v1982 = vadd.f32 %v1945, %v1974
          %v1983 = vadd.f32 %v1946, %v1975
          %v1984 = vadd.f32 %v1947, %v1976
          %v1985 = vadd.f32 %v1948, %v1977
          %v1986 = vadd.f32 %v1970, %v1971
          %v1987 = vadd.f32 %v1986, %v1972
          %v1988 = vadd.f32 %v1987, %v1973
          %v1989 = vadd.f32 %v1988, %v1974
          %v1990 = vadd.f32 %v1989, %v1975
          %v1991 = vadd.f32 %v1990, %v1976
          %v1992 = vadd.f32 %v1991, %v1977
          %v1993 = vrot.slane %v1992, 4
          %v1994 = vadd.f32 %v1992, %v1993
          %v1995 = vrot.slane %v1994, 2
          %v1996 = vadd.f32 %v1994, %v1995
          %v1997 = vrot.slane %v1996, 1
          %v1998 = vadd.f32 %v1996, %v1997
          %v1999 = vmul.f32 %v1716, %v1836
          %v2000 = vmul.f32 %v1718, %v1838
          %v2001 = vmul.f32 %v1720, %v1840
          %v2002 = vmul.f32 %v1722, %v1842
          %v2003 = vmul.f32 %v1724, %v1844
          %v2004 = vmul.f32 %v1726, %v1846
          %v2005 = vmul.f32 %v1728, %v1848
          %v2006 = vmul.f32 %v1730, %v1850
          %v2007 = vmul.f32 %v1999, %v1451
          %v2008 = vmul.f32 %v2000, %v1452
          %v2009 = vmul.f32 %v2001, %v1453
          %v2010 = vmul.f32 %v2002, %v1454
          %v2011 = vmul.f32 %v2003, %v1455
          %v2012 = vmul.f32 %v2004, %v1456
          %v2013 = vmul.f32 %v2005, %v1457
          %v2014 = vmul.f32 %v2006, %v1458
          %v2015 = vadd.f32 %v1978, %v2007
          %v2016 = vadd.f32 %v1979, %v2008
          %v2017 = vadd.f32 %v1980, %v2009
          %v2018 = vadd.f32 %v1981, %v2010
          %v2019 = vadd.f32 %v1982, %v2011
          %v2020 = vadd.f32 %v1983, %v2012
          %v2021 = vadd.f32 %v1984, %v2013
          %v2022 = vadd.f32 %v1985, %v2014
          %v2023 = vadd.f32 %v2007, %v2008
          %v2024 = vadd.f32 %v2023, %v2009
          %v2025 = vadd.f32 %v2024, %v2010
          %v2026 = vadd.f32 %v2025, %v2011
          %v2027 = vadd.f32 %v2026, %v2012
          %v2028 = vadd.f32 %v2027, %v2013
          %v2029 = vadd.f32 %v2028, %v2014
          %v2030 = vrot.slane %v2029, 4
          %v2031 = vadd.f32 %v2029, %v2030
          %v2032 = vrot.slane %v2031, 2
          %v2033 = vadd.f32 %v2031, %v2032
          %v2034 = vrot.slane %v2033, 1
          %v2035 = vadd.f32 %v2033, %v2034
          %v2036 = vmul.f32 %v1748, %v1836
          %v2037 = vmul.f32 %v1750, %v1838
          %v2038 = vmul.f32 %v1752, %v1840
          %v2039 = vmul.f32 %v1754, %v1842
          %v2040 = vmul.f32 %v1756, %v1844
          %v2041 = vmul.f32 %v1758, %v1846
          %v2042 = vmul.f32 %v1760, %v1848
          %v2043 = vmul.f32 %v1762, %v1850
          %v2044 = vmul.f32 %v2036, %v1483
          %v2045 = vmul.f32 %v2037, %v1484
          %v2046 = vmul.f32 %v2038, %v1485
          %v2047 = vmul.f32 %v2039, %v1486
          %v2048 = vmul.f32 %v2040, %v1487
          %v2049 = vmul.f32 %v2041, %v1488
          %v2050 = vmul.f32 %v2042, %v1489
          %v2051 = vmul.f32 %v2043, %v1490
          %v2052 = vadd.f32 %v2015, %v2044
          %v2053 = vadd.f32 %v2016, %v2045
          %v2054 = vadd.f32 %v2017, %v2046
          %v2055 = vadd.f32 %v2018, %v2047
          %v2056 = vadd.f32 %v2019, %v2048
          %v2057 = vadd.f32 %v2020, %v2049
          %v2058 = vadd.f32 %v2021, %v2050
          %v2059 = vadd.f32 %v2022, %v2051
          %v2060 = vadd.f32 %v2044, %v2045
          %v2061 = vadd.f32 %v2060, %v2046
          %v2062 = vadd.f32 %v2061, %v2047
          %v2063 = vadd.f32 %v2062, %v2048
          %v2064 = vadd.f32 %v2063, %v2049
          %v2065 = vadd.f32 %v2064, %v2050
          %v2066 = vadd.f32 %v2065, %v2051
          %v2067 = vrot.slane %v2066, 4
          %v2068 = vadd.f32 %v2066, %v2067
          %v2069 = vrot.slane %v2068, 2
          %v2070 = vadd.f32 %v2068, %v2069
          %v2071 = vrot.slane %v2070, 1
          %v2072 = vadd.f32 %v2070, %v2071
          %v2073 = vmul.f32 %v1780, %v1836
          %v2074 = vmul.f32 %v1782, %v1838
          %v2075 = vmul.f32 %v1784, %v1840
          %v2076 = vmul.f32 %v1786, %v1842
          %v2077 = vmul.f32 %v1788, %v1844
          %v2078 = vmul.f32 %v1790, %v1846
          %v2079 = vmul.f32 %v1792, %v1848
          %v2080 = vmul.f32 %v1794, %v1850
          %v2081 = vmul.f32 %v2073, %v1515
          %v2082 = vmul.f32 %v2074, %v1516
          %v2083 = vmul.f32 %v2075, %v1517
          %v2084 = vmul.f32 %v2076, %v1518
          %v2085 = vmul.f32 %v2077, %v1519
          %v2086 = vmul.f32 %v2078, %v1520
          %v2087 = vmul.f32 %v2079, %v1521
          %v2088 = vmul.f32 %v2080, %v1522
          %v2089 = vadd.f32 %v2052, %v2081
          %v2090 = vadd.f32 %v2053, %v2082
          %v2091 = vadd.f32 %v2054, %v2083
          %v2092 = vadd.f32 %v2055, %v2084
          %v2093 = vadd.f32 %v2056, %v2085
          %v2094 = vadd.f32 %v2057, %v2086
          %v2095 = vadd.f32 %v2058, %v2087
          %v2096 = vadd.f32 %v2059, %v2088
          %v2097 = vadd.f32 %v2081, %v2082
          %v2098 = vadd.f32 %v2097, %v2083
          %v2099 = vadd.f32 %v2098, %v2084
          %v2100 = vadd.f32 %v2099, %v2085
          %v2101 = vadd.f32 %v2100, %v2086
          %v2102 = vadd.f32 %v2101, %v2087
          %v2103 = vadd.f32 %v2102, %v2088
          %v2104 = vrot.slane %v2103, 4
          %v2105 = vadd.f32 %v2103, %v2104
          %v2106 = vrot.slane %v2105, 2
          %v2107 = vadd.f32 %v2105, %v2106
          %v2108 = vrot.slane %v2107, 1
          %v2109 = vadd.f32 %v2107, %v2108
          %v2110 = vmul.f32 %v1812, %v1836
          %v2111 = vmul.f32 %v1814, %v1838
          %v2112 = vmul.f32 %v1816, %v1840
          %v2113 = vmul.f32 %v1818, %v1842
          %v2114 = vmul.f32 %v1820, %v1844
          %v2115 = vmul.f32 %v1822, %v1846
          %v2116 = vmul.f32 %v1824, %v1848
          %v2117 = vmul.f32 %v1826, %v1850
          %v2118 = vmul.f32 %v2110, %v1547
          %v2119 = vmul.f32 %v2111, %v1548
          %v2120 = vmul.f32 %v2112, %v1549
          %v2121 = vmul.f32 %v2113, %v1550
          %v2122 = vmul.f32 %v2114, %v1551
          %v2123 = vmul.f32 %v2115, %v1552
          %v2124 = vmul.f32 %v2116, %v1553
          %v2125 = vmul.f32 %v2117, %v1554
          %v2126 = vadd.f32 %v2089, %v2118
          %v2127 = vadd.f32 %v2090, %v2119
          %v2128 = vadd.f32 %v2091, %v2120
          %v2129 = vadd.f32 %v2092, %v2121
          %v2130 = vadd.f32 %v2093, %v2122
          %v2131 = vadd.f32 %v2094, %v2123
          %v2132 = vadd.f32 %v2095, %v2124
          %v2133 = vadd.f32 %v2096, %v2125
          %v2134 = vadd.f32 %v2118, %v2119
          %v2135 = vadd.f32 %v2134, %v2120
          %v2136 = vadd.f32 %v2135, %v2121
          %v2137 = vadd.f32 %v2136, %v2122
          %v2138 = vadd.f32 %v2137, %v2123
          %v2139 = vadd.f32 %v2138, %v2124
          %v2140 = vadd.f32 %v2139, %v2125
          %v2141 = vrot.slane %v2140, 4
          %v2142 = vadd.f32 %v2140, %v2141
          %v2143 = vrot.slane %v2142, 2
          %v2144 = vadd.f32 %v2142, %v2143
          %v2145 = vrot.slane %v2144, 1
          %v2146 = vadd.f32 %v2144, %v2145
          %v2147 = vsel %vm1316, %v1887, %v1924
          %v2148 = vsel %vm1318, %v2147, %v1961
          %v2149 = vsel %vm1320, %v2148, %v1998
          %v2150 = vsel %vm1322, %v2149, %v2035
          %v2151 = vsel %vm1324, %v2150, %v2072
          %v2152 = vsel %vm1326, %v2151, %v2109
          %v2153 = vsel %vm1328, %v2152, %v2146
          %v2154 = vadd.f32 %v1330, %v2153
          %2155 = vxpose.xlu0.b32.start [1/16] %v1295, 128
          %2156 = vxpose.xlu0.b32.cont [2/16] %v1296, 128
          %2157 = vxpose.xlu0.b32.cont [3/16] %v1297, 128
          %2158 = vxpose.xlu0.b32.cont [4/16] %v1298, 128
          %2159 = vxpose.xlu0.b32.cont [5/16] %v1299, 128
          %2160 = vxpose.xlu0.b32.cont [6/16] %v1300, 128
          %2161 = vxpose.xlu0.b32.cont [7/16] %v1301, 128
          %2162 = vxpose.xlu0.b32.cont [8/16] %v1302, 128
          %2163 = vxpose.xlu0.b32.cont [9/16] %v2126, 128
          %2164 = vxpose.xlu0.b32.cont [10/16] %v2127, 128
          %2165 = vxpose.xlu0.b32.cont [11/16] %v2128, 128
          %2166 = vxpose.xlu0.b32.cont [12/16] %v2129, 128
          %2167 = vxpose.xlu0.b32.cont [13/16] %v2130, 128
          %2168 = vxpose.xlu0.b32.cont [14/16] %v2131, 128
          %2169 = vxpose.xlu0.b32.cont [15/16] %v2132, 128
          %2170 = vxpose.xlu0.b32.end [16/16] %v2133, 128
          %v2171 = vpop.trf.xlu0
          %v2172 = vpop.trf.xlu0
          %v2173 = vpop.trf.xlu0
          %v2174 = vpop.trf.xlu0
          %v2175 = vpop.trf.xlu0
          %v2176 = vpop.trf.xlu0
          %v2177 = vpop.trf.xlu0
          %v2178 = vpop.trf.xlu0
          %v2179 = vpop.trf.xlu0
          %v2180 = vpop.trf.xlu0
          %v2181 = vpop.trf.xlu0
          %v2182 = vpop.trf.xlu0
          %v2183 = vpop.trf.xlu0
          %v2184 = vpop.trf.xlu0
          %v2185 = vpop.trf.xlu0
          %v2186 = vpop.trf.xlu0
          %s2187 = smul.addr %s384, 8
          %s2188 = scalar_lea.vmem %s356, %s2187 [#allocation3]
          %2189 = vst [vmem:[%s2188] sm:$0xff] %v2171
          %2190 = vst [vmem:[%s2188 + $0x20] sm:$0xff] %v2172
          %2191 = vst [vmem:[%s2188 + $0x40] sm:$0xff] %v2173
          %2192 = vst [vmem:[%s2188 + $0x60] sm:$0xff] %v2174
          %2193 = vst [vmem:[%s2188 + $0x80] sm:$0xff] %v2175
          %2194 = vst [vmem:[%s2188 + $0xa0] sm:$0xff] %v2176
          %2195 = vst [vmem:[%s2188 + $0xc0] sm:$0xff] %v2177
          %2196 = vst [vmem:[%s2188 + $0xe0] sm:$0xff] %v2178
          %2197 = vst [vmem:[%s2188 + $0x100] sm:$0xff] %v2179
          %2198 = vst [vmem:[%s2188 + $0x120] sm:$0xff] %v2180
          %2199 = vst [vmem:[%s2188 + $0x140] sm:$0xff] %v2181
          %2200 = vst [vmem:[%s2188 + $0x160] sm:$0xff] %v2182
          %2201 = vst [vmem:[%s2188 + $0x180] sm:$0xff] %v2183
          %2202 = vst [vmem:[%s2188 + $0x1a0] sm:$0xff] %v2184
          %2203 = vst [vmem:[%s2188 + $0x1c0] sm:$0xff] %v2185
          %2204 = vst [vmem:[%s2188 + $0x1e0] sm:$0xff] %v2186
        $region64: #{encoding_forward.2} parent=50 // loop_footer
          %s381 = sadd.s32 1, %s377
        $region65: #{encoding_forward.2} parent=50 // loop_footer_branch
          %376 = sbr.rel target = $region61
        $region66: #{encoding_forward.2} parent=50 // loop_exit
          _
        %v2205 = vld [vmem:[%s368] sm:$0xff]
        %v2206 = vadd.f32 %v2205, %v382
        %2207 = vst [vmem:[%s368] sm:$0xff] %v2206
        %s2208 = sand.u32 %s108, 1
        %s2209 = sand.u32 %s108, 1
        %s2210 = smul.addr %s2209, 512
        %s2211 = scalar_lea.vmem [#allocation3], %s2210
        %p2212 = scmp.lt.s32.totalorder %s20, 1
        %s2213 = scalar_select %p2212, %s20, 1
        %s2214 = smul.addr %s2213, 8
        %s2215 = scalar_lea.vmem %s4, %s2214
        // Predicated region
        $region67: #{encoding_forward.2} parent=50 // pred_check
          %p2216 = pneg %p118
        $region68: #{encoding_forward.2} parent=50 // pred_check_branch
          %2218 = sbr.rel (%p2216) target = $region70
        $region69: #{encoding_forward.2} parent=50 // pred_region
          %s2219 = smul.u32 4, %s21
          %s2220 = smul.addr %s20, 128
          %s2221 = sadd.s32 %s2219, %s2220
          %s2222 = smul.addr %s2221, 8
          %s2223 = scalar_lea.vmem %s3, %s2222
          // Predicated region
          $region71: #{encoding_forward.2} parent=69 // pred_check
            _
          $region72: #{encoding_forward.2} parent=69 // pred_check_branch
            %2225 = sbr.rel (0) target = $region74
          $region73: #{encoding_forward.2} parent=69 // pred_region
            // Predicated region
            $region75: #{encoding_forward.2} parent=73 // pred_check
              _
            $region76: #{encoding_forward.2} parent=73 // pred_check_branch
              %2227 = sbr.rel (0) target = $region78
            $region77: #{encoding_forward.2} parent=73 // pred_region
              loop: start=0, step=1, limit=1
              $region79: #{encoding_forward.2} parent=77 // loop_pre_header
                _
              $region80: #{encoding_forward.2} parent=77 // loop_header
                %s2229 = sphi 0, %s2233
                %p2230 = scmp.ge.s32.totalorder %s2229, 1
                %s2234 = sphi %s2211, %s2211
                %s2235 = sphi %s2223, %s2223
              $region81: #{encoding_forward.2} parent=77 // loop_header_branch
                %2232 = sbr.rel (%p2230) target = $region85
              $region82: #{encoding_forward.2} parent=77 // loop_body
                %v2236 = vld [vmem:[%s2234] sm:$0xff]
                %2237 = vst [vmem:[%s2235] sm:$0xff] %v2236
                %v2238 = vld [vmem:[%s2234 + $0x8] sm:$0xff]
                %2239 = vst [vmem:[%s2235 + $0x8] sm:$0xff] %v2238
                %v2240 = vld [vmem:[%s2234 + $0x10] sm:$0xff]
                %2241 = vst [vmem:[%s2235 + $0x10] sm:$0xff] %v2240
                %v2242 = vld [vmem:[%s2234 + $0x18] sm:$0xff]
                %2243 = vst [vmem:[%s2235 + $0x18] sm:$0xff] %v2242
                %v2244 = vld [vmem:[%s2234 + $0x20] sm:$0xff]
                %2245 = vst [vmem:[%s2235 + $0x40] sm:$0xff] %v2244
                %v2246 = vld [vmem:[%s2234 + $0x28] sm:$0xff]
                %2247 = vst [vmem:[%s2235 + $0x48] sm:$0xff] %v2246
                %v2248 = vld [vmem:[%s2234 + $0x30] sm:$0xff]
                %2249 = vst [vmem:[%s2235 + $0x50] sm:$0xff] %v2248
                %v2250 = vld [vmem:[%s2234 + $0x38] sm:$0xff]
                %2251 = vst [vmem:[%s2235 + $0x58] sm:$0xff] %v2250
                %v2252 = vld [vmem:[%s2234 + $0x40] sm:$0xff]
                %2253 = vst [vmem:[%s2235 + $0x80] sm:$0xff] %v2252
                %v2254 = vld [vmem:[%s2234 + $0x48] sm:$0xff]
                %2255 = vst [vmem:[%s2235 + $0x88] sm:$0xff] %v2254
                %v2256 = vld [vmem:[%s2234 + $0x50] sm:$0xff]
                %2257 = vst [vmem:[%s2235 + $0x90] sm:$0xff] %v2256
                %v2258 = vld [vmem:[%s2234 + $0x58] sm:$0xff]
                %2259 = vst [vmem:[%s2235 + $0x98] sm:$0xff] %v2258
                %v2260 = vld [vmem:[%s2234 + $0x60] sm:$0xff]
                %2261 = vst [vmem:[%s2235 + $0xc0] sm:$0xff] %v2260
                %v2262 = vld [vmem:[%s2234 + $0x68] sm:$0xff]
                %2263 = vst [vmem:[%s2235 + $0xc8] sm:$0xff] %v2262
                %v2264 = vld [vmem:[%s2234 + $0x70] sm:$0xff]
                %2265 = vst [vmem:[%s2235 + $0xd0] sm:$0xff] %v2264
                %v2266 = vld [vmem:[%s2234 + $0x78] sm:$0xff]
                %2267 = vst [vmem:[%s2235 + $0xd8] sm:$0xff] %v2266
                %v2268 = vld [vmem:[%s2234 + $0x80] sm:$0xff]
                %2269 = vst [vmem:[%s2235 + $0x100] sm:$0xff] %v2268
                %v2270 = vld [vmem:[%s2234 + $0x88] sm:$0xff]
                %2271 = vst [vmem:[%s2235 + $0x108] sm:$0xff] %v2270
                %v2272 = vld [vmem:[%s2234 + $0x90] sm:$0xff]
                %2273 = vst [vmem:[%s2235 + $0x110] sm:$0xff] %v2272
                %v2274 = vld [vmem:[%s2234 + $0x98] sm:$0xff]
                %2275 = vst [vmem:[%s2235 + $0x118] sm:$0xff] %v2274
                %v2276 = vld [vmem:[%s2234 + $0xa0] sm:$0xff]
                %2277 = vst [vmem:[%s2235 + $0x140] sm:$0xff] %v2276
                %v2278 = vld [vmem:[%s2234 + $0xa8] sm:$0xff]
                %2279 = vst [vmem:[%s2235 + $0x148] sm:$0xff] %v2278
                %v2280 = vld [vmem:[%s2234 + $0xb0] sm:$0xff]
                %2281 = vst [vmem:[%s2235 + $0x150] sm:$0xff] %v2280
                %v2282 = vld [vmem:[%s2234 + $0xb8] sm:$0xff]
                %2283 = vst [vmem:[%s2235 + $0x158] sm:$0xff] %v2282
                %v2284 = vld [vmem:[%s2234 + $0xc0] sm:$0xff]
                %2285 = vst [vmem:[%s2235 + $0x180] sm:$0xff] %v2284
                %v2286 = vld [vmem:[%s2234 + $0xc8] sm:$0xff]
                %2287 = vst [vmem:[%s2235 + $0x188] sm:$0xff] %v2286
                %v2288 = vld [vmem:[%s2234 + $0xd0] sm:$0xff]
                %2289 = vst [vmem:[%s2235 + $0x190] sm:$0xff] %v2288
                %v2290 = vld [vmem:[%s2234 + $0xd8] sm:$0xff]
                %2291 = vst [vmem:[%s2235 + $0x198] sm:$0xff] %v2290
                %v2292 = vld [vmem:[%s2234 + $0xe0] sm:$0xff]
                %2293 = vst [vmem:[%s2235 + $0x1c0] sm:$0xff] %v2292
                %v2294 = vld [vmem:[%s2234 + $0xe8] sm:$0xff]
                %2295 = vst [vmem:[%s2235 + $0x1c8] sm:$0xff] %v2294
                %v2296 = vld [vmem:[%s2234 + $0xf0] sm:$0xff]
                %2297 = vst [vmem:[%s2235 + $0x1d0] sm:$0xff] %v2296
                %v2298 = vld [vmem:[%s2234 + $0xf8] sm:$0xff]
                %2299 = vst [vmem:[%s2235 + $0x1d8] sm:$0xff] %v2298
                %v2300 = vld [vmem:[%s2234 + $0x100] sm:$0xff]
                %2301 = vst [vmem:[%s2235 + $0x200] sm:$0xff] %v2300
                %v2302 = vld [vmem:[%s2234 + $0x108] sm:$0xff]
                %2303 = vst [vmem:[%s2235 + $0x208] sm:$0xff] %v2302
                %v2304 = vld [vmem:[%s2234 + $0x110] sm:$0xff]
                %2305 = vst [vmem:[%s2235 + $0x210] sm:$0xff] %v2304
                %v2306 = vld [vmem:[%s2234 + $0x118] sm:$0xff]
                %2307 = vst [vmem:[%s2235 + $0x218] sm:$0xff] %v2306
                %v2308 = vld [vmem:[%s2234 + $0x120] sm:$0xff]
                %2309 = vst [vmem:[%s2235 + $0x240] sm:$0xff] %v2308
                %v2310 = vld [vmem:[%s2234 + $0x128] sm:$0xff]
                %2311 = vst [vmem:[%s2235 + $0x248] sm:$0xff] %v2310
                %v2312 = vld [vmem:[%s2234 + $0x130] sm:$0xff]
                %2313 = vst [vmem:[%s2235 + $0x250] sm:$0xff] %v2312
                %v2314 = vld [vmem:[%s2234 + $0x138] sm:$0xff]
                %2315 = vst [vmem:[%s2235 + $0x258] sm:$0xff] %v2314
                %v2316 = vld [vmem:[%s2234 + $0x140] sm:$0xff]
                %2317 = vst [vmem:[%s2235 + $0x280] sm:$0xff] %v2316
                %v2318 = vld [vmem:[%s2234 + $0x148] sm:$0xff]
                %2319 = vst [vmem:[%s2235 + $0x288] sm:$0xff] %v2318
                %v2320 = vld [vmem:[%s2234 + $0x150] sm:$0xff]
                %2321 = vst [vmem:[%s2235 + $0x290] sm:$0xff] %v2320
                %v2322 = vld [vmem:[%s2234 + $0x158] sm:$0xff]
                %2323 = vst [vmem:[%s2235 + $0x298] sm:$0xff] %v2322
                %v2324 = vld [vmem:[%s2234 + $0x160] sm:$0xff]
                %2325 = vst [vmem:[%s2235 + $0x2c0] sm:$0xff] %v2324
                %v2326 = vld [vmem:[%s2234 + $0x168] sm:$0xff]
                %2327 = vst [vmem:[%s2235 + $0x2c8] sm:$0xff] %v2326
                %v2328 = vld [vmem:[%s2234 + $0x170] sm:$0xff]
                %2329 = vst [vmem:[%s2235 + $0x2d0] sm:$0xff] %v2328
                %v2330 = vld [vmem:[%s2234 + $0x178] sm:$0xff]
                %2331 = vst [vmem:[%s2235 + $0x2d8] sm:$0xff] %v2330
                %v2332 = vld [vmem:[%s2234 + $0x180] sm:$0xff]
                %2333 = vst [vmem:[%s2235 + $0x300] sm:$0xff] %v2332
                %v2334 = vld [vmem:[%s2234 + $0x188] sm:$0xff]
                %2335 = vst [vmem:[%s2235 + $0x308] sm:$0xff] %v2334
                %v2336 = vld [vmem:[%s2234 + $0x190] sm:$0xff]
                %2337 = vst [vmem:[%s2235 + $0x310] sm:$0xff] %v2336
                %v2338 = vld [vmem:[%s2234 + $0x198] sm:$0xff]
                %2339 = vst [vmem:[%s2235 + $0x318] sm:$0xff] %v2338
                %v2340 = vld [vmem:[%s2234 + $0x1a0] sm:$0xff]
                %2341 = vst [vmem:[%s2235 + $0x340] sm:$0xff] %v2340
                %v2342 = vld [vmem:[%s2234 + $0x1a8] sm:$0xff]
                %2343 = vst [vmem:[%s2235 + $0x348] sm:$0xff] %v2342
                %v2344 = vld [vmem:[%s2234 + $0x1b0] sm:$0xff]
                %2345 = vst [vmem:[%s2235 + $0x350] sm:$0xff] %v2344
                %v2346 = vld [vmem:[%s2234 + $0x1b8] sm:$0xff]
                %2347 = vst [vmem:[%s2235 + $0x358] sm:$0xff] %v2346
                %v2348 = vld [vmem:[%s2234 + $0x1c0] sm:$0xff]
                %2349 = vst [vmem:[%s2235 + $0x380] sm:$0xff] %v2348
                %v2350 = vld [vmem:[%s2234 + $0x1c8] sm:$0xff]
                %2351 = vst [vmem:[%s2235 + $0x388] sm:$0xff] %v2350
                %v2352 = vld [vmem:[%s2234 + $0x1d0] sm:$0xff]
                %2353 = vst [vmem:[%s2235 + $0x390] sm:$0xff] %v2352
                %v2354 = vld [vmem:[%s2234 + $0x1d8] sm:$0xff]
                %2355 = vst [vmem:[%s2235 + $0x398] sm:$0xff] %v2354
                %v2356 = vld [vmem:[%s2234 + $0x1e0] sm:$0xff]
                %2357 = vst [vmem:[%s2235 + $0x3c0] sm:$0xff] %v2356
                %v2358 = vld [vmem:[%s2234 + $0x1e8] sm:$0xff]
                %2359 = vst [vmem:[%s2235 + $0x3c8] sm:$0xff] %v2358
                %v2360 = vld [vmem:[%s2234 + $0x1f0] sm:$0xff]
                %2361 = vst [vmem:[%s2235 + $0x3d0] sm:$0xff] %v2360
                %v2362 = vld [vmem:[%s2234 + $0x1f8] sm:$0xff]
                %2363 = vst [vmem:[%s2235 + $0x3d8] sm:$0xff] %v2362
              $region83: #{encoding_forward.2} parent=77 // loop_footer
                %s2233 = sadd.s32 1, %s2229
              $region84: #{encoding_forward.2} parent=77 // loop_footer_branch
                %2228 = sbr.rel target = $region80
              $region85: #{encoding_forward.2} parent=77 // loop_exit
                _
            $region78: #{encoding_forward.2} parent=73 // pred_fallthru
              _
            // Predicated region
            $region86: #{encoding_forward.2} parent=73 // pred_check
              _
            $region87: #{encoding_forward.2} parent=73 // pred_check_branch
              %2365 = sbr.rel target = $region89
            $region88: #{encoding_forward.2} parent=73 // pred_region
              _
            $region89: #{encoding_forward.2} parent=73 // pred_fallthru
              _
          $region74: #{encoding_forward.2} parent=69 // pred_fallthru
            _
          %2366 = vnop
        $region70: #{encoding_forward.2} parent=50 // pred_fallthru
          _
        // Predicated region
        $region90: #{encoding_forward.2} parent=50 // pred_check
          %p2367 = pneg %p144
        $region91: #{encoding_forward.2} parent=50 // pred_check_branch
          %2369 = sbr.rel (%p2367) target = $region93
        $region92: #{encoding_forward.2} parent=50 // pred_region
          _
        $region93: #{encoding_forward.2} parent=50 // pred_fallthru
          _
      $region51: #{encoding_forward.2} parent=5 // pred_fallthru
        _
      %p2370 = scmp.le.s32.totalorder 2, %s11
      // Predicated region
      $region94: #{encoding_forward.2} parent=5 // pred_check
        %p2371 = pneg %p2370
      $region95: #{encoding_forward.2} parent=5 // pred_check_branch
        %2373 = sbr.rel (%p2371) target = $region97
      $region96: #{encoding_forward.2} parent=5 // pred_region
        %s2374 = ssub.s32 %s11, 2
        // Predicated region
        $region98: #{encoding_forward.2} parent=96 // pred_check
          %p2375 = pneg %p124
        $region99: #{encoding_forward.2} parent=96 // pred_check_branch
          %2377 = sbr.rel (%p2375) target = $region101
        $region100: #{encoding_forward.2} parent=96 // pred_region
          %s2378 = sand.u32 %s109, 1
          %s2379 = sand.u32 %s109, 1
          %s2380 = smul.addr %s2379, 512
          %s2381 = scalar_lea.vmem [#allocation3], %s2380
        $region101: #{encoding_forward.2} parent=96 // pred_fallthru
          _
        // Predicated region
        $region102: #{encoding_forward.2} parent=96 // pred_check
          %p2382 = pneg %p150
        $region103: #{encoding_forward.2} parent=96 // pred_check_branch
          %2384 = sbr.rel (%p2382) target = $region105
        $region104: #{encoding_forward.2} parent=96 // pred_region
          %p2385 = scmp.lt.s32.totalorder %s22, 1
          %s2386 = scalar_select %p2385, %s22, 1
          %s2387 = smul.addr %s2386, 8
          %s2388 = scalar_lea.vmem %s4, %s2387
        $region105: #{encoding_forward.2} parent=96 // pred_fallthru
          _
      $region97: #{encoding_forward.2} parent=5 // pred_fallthru
        _
    $region6: #{encoding_forward.2} parent=1 // loop_footer
      %s15 = sadd.s32 1, %s11
    $region7: #{encoding_forward.2} parent=1 // loop_footer_branch
      %10 = sbr.rel target = $region3
    $region8: #{encoding_forward.2} parent=1 // loop_exit
      _

// kernel: encoding_forward.3
$region0: #{encoding_forward.3}
  #allocation0 [shape = 'u32[]', space=smem, size = 0x4, offset = 0x4, fixed_abs, tag = 'smem constant byte address 0x4 - core index']
  #allocation1 [shape = 'u32[144,128]{1,0:T(1,128)}', space=vmem, size = 0x12000, scoped, tag = 'internal scratch']
  %s0 = inlined_call_operand.vmem [shape: f32[2,128,1024], index: 0, kind: input, shape index: {}]
  %s1 = inlined_call_operand.vmem [shape: f32[2,128,1], index: 1, kind: input, shape index: {}]
  %s2 = inlined_call_operand.vmem [shape: f32[2,128,1024], index: 2, kind: output, shape index: {}]
  %s3 = sld [smem:[#allocation0]]
  $region41: #{encoding_forward.3} parent=0
    _
  %s5 = ssub.s32 1, %s3
  %s6 = scalar_select 0, %s5, %s3
  loop: start=0, step=1, limit=4
  $region2: #{encoding_forward.3} parent=0 // loop_pre_header
    _
  $region3: #{encoding_forward.3} parent=0 // loop_header
    %s8 = sphi 0, %s12
    %p9 = scmp.ge.s32.totalorder %s8, 4
    %s15 = sphi 0, %s27
    %s16 = sphi 0, %s23
    %s17 = sphi 0, %s15
    %s18 = sphi 0, %s16
    %s19 = sphi 0, %s17
    %s20 = sphi 0, %s18
    %s32 = sphi 0, %s34
    %s35 = sphi 0, %s32
    %s36 = sphi 0, %s35
    %s52 = sphi 0, %s36
    %s58 = sphi 0, %s60
    %s61 = sphi 0, %s58
    %s62 = sphi 0, %s61
    %s78 = sphi 0, %s62
    %s86 = sphi 0, %s88
    %s89 = sphi 0, %s86
    %s90 = sphi 0, %s89
    %s106 = sphi 0, %s90
  $region4: #{encoding_forward.3} parent=0 // loop_header_branch
    %11 = sbr.rel (%p9) target = $region8
  $region5: #{encoding_forward.3} parent=0 // loop_body
    %s13 = ssub.s32 %s8, 1
    %s14 = ssub.s32 %s8, 2
    %s21 = sadd.s32 1, %s16
    %p22 = scmp.ge.s32.totalorder %s21, 1
    %s23 = scalar_select %p22, 0, %s21
    %s24 = sadd.s32 1, %s15
    %s25 = scalar_select %p22, %s24, %s15
    %p26 = scmp.ge.s32.totalorder %s25, 2
    %s27 = scalar_select %p26, 0, %s25
    %s28 = ssub.s32 %s15, %s27
    %s29 = ssub.s32 %s16, %s23
    %s30 = sor.u32 %s28, %s29
    %p31 = scmp.eq.s32.totalorder %s30, 0
    %s33 = sadd.s32 %s32, 1
    %s34 = scalar_select %p31, %s32, %s33
    %p37 = pneg %p31
    %p38 = scmp.eq.s32.totalorder %s8, 1
    %p39 = por %p37, %p38
    %p40 = scmp.ne.s32.totalorder %s32, %s35
    %p41 = scmp.eq.s32.totalorder %s8, 0
    %p42 = por %p40, %p41
    %p43 = scmp.ne.s32.totalorder %s32, %s35
    %p44 = scmp.eq.s32.totalorder %s13, 1
    %p45 = por %p43, %p44
    %p46 = scmp.ne.s32.totalorder %s35, %s36
    %p47 = scmp.eq.s32.totalorder %s13, 0
    %p48 = por %p46, %p47
    %p49 = scmp.ne.s32.totalorder %s35, %s36
    %p50 = scmp.eq.s32.totalorder %s14, 1
    %p51 = por %p49, %p50
    %p53 = scmp.ne.s32.totalorder %s36, %s52
    %p54 = scmp.eq.s32.totalorder %s14, 0
    %p55 = por %p53, %p54
    %s56 = ssub.s32 %s15, %s27
    %p57 = scmp.eq.s32.totalorder %s56, 0
    %s59 = sadd.s32 %s58, 1
    %s60 = scalar_select %p57, %s58, %s59
    %p63 = pneg %p57
    %p64 = scmp.eq.s32.totalorder %s8, 1
    %p65 = por %p63, %p64
    %p66 = scmp.ne.s32.totalorder %s58, %s61
    %p67 = scmp.eq.s32.totalorder %s8, 0
    %p68 = por %p66, %p67
    %p69 = scmp.ne.s32.totalorder %s58, %s61
    %p70 = scmp.eq.s32.totalorder %s13, 1
    %p71 = por %p69, %p70
    %p72 = scmp.ne.s32.totalorder %s61, %s62
    %p73 = scmp.eq.s32.totalorder %s13, 0
    %p74 = por %p72, %p73
    %p75 = scmp.ne.s32.totalorder %s61, %s62
    %p76 = scmp.eq.s32.totalorder %s14, 1
    %p77 = por %p75, %p76
    %p79 = scmp.ne.s32.totalorder %s62, %s78
    %p80 = scmp.eq.s32.totalorder %s14, 0
    %p81 = por %p79, %p80
    %s82 = ssub.s32 %s15, %s27
    %s83 = ssub.s32 %s16, %s23
    %s84 = sor.u32 %s82, %s83
    %p85 = scmp.eq.s32.totalorder %s84, 0
    %s87 = sadd.s32 %s86, 1
    %s88 = scalar_select %p85, %s86, %s87
    %p91 = pneg %p85
    %p92 = scmp.eq.s32.totalorder %s8, 1
    %p93 = por %p91, %p92
    %p94 = scmp.ne.s32.totalorder %s86, %s89
    %p95 = scmp.eq.s32.totalorder %s8, 0
    %p96 = por %p94, %p95
    %p97 = scmp.ne.s32.totalorder %s86, %s89
    %p98 = scmp.eq.s32.totalorder %s13, 1
    %p99 = por %p97, %p98
    %p100 = scmp.ne.s32.totalorder %s89, %s90
    %p101 = scmp.eq.s32.totalorder %s13, 0
    %p102 = por %p100, %p101
    %p103 = scmp.ne.s32.totalorder %s89, %s90
    %p104 = scmp.eq.s32.totalorder %s14, 1
    %p105 = por %p103, %p104
    %p107 = scmp.ne.s32.totalorder %s90, %s106
    %p108 = scmp.eq.s32.totalorder %s14, 0
    %p109 = por %p107, %p108
    %p110 = scmp.le.s32.totalorder 1, %s8
    %p111 = scmp.lt.s32.totalorder %s8, 3
    %p112 = pnand %p110, %p111
    %p113 = pneg %p112
    // Predicated region
    $region9: #{encoding_forward.3} parent=5 // pred_check
      _
    $region10: #{encoding_forward.3} parent=5 // pred_check_branch
      %115 = sbr.rel (%p112) target = $region12
    $region11: #{encoding_forward.3} parent=5 // pred_region
      %s116 = ssub.s32 %s8, 1
    $region12: #{encoding_forward.3} parent=5 // pred_fallthru
      _
    %p117 = scmp.lt.s32.totalorder %s8, 2
    // Predicated region
    $region13: #{encoding_forward.3} parent=5 // pred_check
      %p118 = pneg %p117
    $region14: #{encoding_forward.3} parent=5 // pred_check_branch
      %120 = sbr.rel (%p118) target = $region16
    $region15: #{encoding_forward.3} parent=5 // pred_region
      // Predicated region
      $region17: #{encoding_forward.3} parent=15 // pred_check
        %p121 = pneg %p42
      $region18: #{encoding_forward.3} parent=15 // pred_check_branch
        %123 = sbr.rel (%p121) target = $region20
      $region19: #{encoding_forward.3} parent=15 // pred_region
        %s124 = smul.u32 8, %s16
        %p125 = scmp.lt.s32.totalorder %s15, 1
        %s126 = scalar_select %p125, %s15, 1
        %p127 = scmp.lt.s32.totalorder %s124, 7
        %s128 = scalar_select %p127, %s124, 7
        %s129 = smul.addr %s126, 128
        %s130 = sadd.s32 %s128, %s129
        %s131 = smul.addr %s130, 8
        %s132 = scalar_lea.vmem %s0, %s131
        %s133 = smul.u32 8, %s16
      $region20: #{encoding_forward.3} parent=15 // pred_fallthru
        _
      // Predicated region
      $region21: #{encoding_forward.3} parent=15 // pred_check
        %p134 = pneg %p68
      $region22: #{encoding_forward.3} parent=15 // pred_check_branch
        %136 = sbr.rel (%p134) target = $region24
      $region23: #{encoding_forward.3} parent=15 // pred_region
        %p137 = scmp.lt.s32.totalorder %s15, 1
        %s138 = scalar_select %p137, %s15, 1
        %s139 = smul.addr %s138, 16
        %s140 = smul.addr %s139, 8
        %s141 = scalar_lea.vmem %s1, %s140
      $region24: #{encoding_forward.3} parent=15 // pred_fallthru
        _
    $region16: #{encoding_forward.3} parent=5 // pred_fallthru
      _
    %p142 = scmp.le.s32.totalorder 1, %s8
    %p143 = scmp.lt.s32.totalorder %s8, 3
    %p144 = pnand %p142, %p143
    %p145 = pneg %p144
    // Predicated region
    $region25: #{encoding_forward.3} parent=5 // pred_check
      _
    $region26: #{encoding_forward.3} parent=5 // pred_check_branch
      %147 = sbr.rel (%p144) target = $region28
    $region27: #{encoding_forward.3} parent=5 // pred_region
      %s148 = ssub.s32 %s8, 1
      %s149 = smul.u32 8, %s18
      %p150 = scmp.lt.s32.totalorder %s17, 1
      %s151 = scalar_select %p150, %s17, 1
      %p152 = scmp.lt.s32.totalorder %s149, 7
      %s153 = scalar_select %p152, %s149, 7
      %s154 = smul.addr %s151, 128
      %s155 = sadd.s32 %s153, %s154
      %s156 = smul.addr %s155, 8
      %s157 = scalar_lea.vmem %s0, %s156
      %p158 = pneg %p48
      %p159 = pneg %p45
      %p160 = scmp.lt.s32.totalorder %s17, 1
      %s161 = scalar_select %p160, %s17, 1
      %s162 = smul.addr %s161, 16
      %s163 = smul.addr %s162, 8
      %s164 = scalar_lea.vmem %s1, %s163
      %p165 = pneg %p74
      %p166 = pneg %p71
      %p167 = pneg %p102
      %p168 = pneg %p99
      %s169 = smul.u32 8, %s18
      %p170 = scmp.lt.s32.totalorder %s17, 1
      %s171 = scalar_select %p170, %s17, 1
      %p172 = scmp.lt.s32.totalorder %s169, 7
      %s173 = scalar_select %p172, %s169, 7
      %s174 = smul.addr %s171, 128
      %s175 = sadd.s32 %s173, %s174
      %s176 = smul.addr %s175, 8
      %s177 = scalar_lea.vmem %s2, %s176
      %s178 = smul.u32 8, %s18
      %p179 = scmp.lt.s32.totalorder %s17, 1
      %s180 = scalar_select %p179, %s17, 1
      %p181 = scmp.lt.s32.totalorder %s178, 7
      %s182 = scalar_select %p181, %s178, 7
      %s183 = smul.addr %s180, 128
      %s184 = sadd.s32 %s182, %s183
      %s185 = smul.addr %s184, 8
      %s186 = scalar_lea.vmem %s0, %s185
      %s187 = smul.u32 8, %s18
      %p188 = scmp.lt.s32.totalorder %s17, 1
      %s189 = scalar_select %p188, %s17, 1
      %s190 = smul.addr %s189, 16
      %s191 = smul.addr %s190, 8
      %s192 = scalar_lea.vmem %s1, %s191
      %s193 = smul.u32 8, %s18
      %p194 = scmp.lt.s32.totalorder %s17, 1
      %s195 = scalar_select %p194, %s17, 1
      %p196 = scmp.lt.s32.totalorder %s193, 7
      %s197 = scalar_select %p196, %s193, 7
      %s198 = smul.addr %s195, 128
      %s199 = sadd.s32 %s197, %s198
      %s200 = smul.addr %s199, 8
      %s201 = scalar_lea.vmem %s2, %s200
      %s202 = smul.u32 8, %s18
      %v203 = vld [vmem:[%s186] sm:$0xff]
      %v204 = vld [vmem:[%s186 + $0x8] sm:$0xff]
      %v205 = vld [vmem:[%s186 + $0x10] sm:$0xff]
      %v206 = vld [vmem:[%s186 + $0x18] sm:$0xff]
      %v207 = vld [vmem:[%s186 + $0x20] sm:$0xff]
      %v208 = vld [vmem:[%s186 + $0x28] sm:$0xff]
      %v209 = vld [vmem:[%s186 + $0x30] sm:$0xff]
      %v210 = vld [vmem:[%s186 + $0x38] sm:$0xff]
      %v211 = vld [vmem:[%s186 + $0x40] sm:$0xff]
      %v212 = vld [vmem:[%s186 + $0x48] sm:$0xff]
      %v213 = vld [vmem:[%s186 + $0x50] sm:$0xff]
      %v214 = vld [vmem:[%s186 + $0x58] sm:$0xff]
      %v215 = vld [vmem:[%s186 + $0x60] sm:$0xff]
      %v216 = vld [vmem:[%s186 + $0x68] sm:$0xff]
      %v217 = vld [vmem:[%s186 + $0x70] sm:$0xff]
      %v218 = vld [vmem:[%s186 + $0x78] sm:$0xff]
      %v219 = vld [vmem:[%s186 + $0x80] sm:$0xff]
      %v220 = vld [vmem:[%s186 + $0x88] sm:$0xff]
      %v221 = vld [vmem:[%s186 + $0x90] sm:$0xff]
      %v222 = vld [vmem:[%s186 + $0x98] sm:$0xff]
      %v223 = vld [vmem:[%s186 + $0xa0] sm:$0xff]
      %v224 = vld [vmem:[%s186 + $0xa8] sm:$0xff]
      %v225 = vld [vmem:[%s186 + $0xb0] sm:$0xff]
      %v226 = vld [vmem:[%s186 + $0xb8] sm:$0xff]
      %v227 = vld [vmem:[%s186 + $0xc0] sm:$0xff]
      %v228 = vld [vmem:[%s186 + $0xc8] sm:$0xff]
      %v229 = vld [vmem:[%s186 + $0xd0] sm:$0xff]
      %v230 = vld [vmem:[%s186 + $0xd8] sm:$0xff]
      %v231 = vld [vmem:[%s186 + $0xe0] sm:$0xff]
      %v232 = vld [vmem:[%s186 + $0xe8] sm:$0xff]
      %v233 = vld [vmem:[%s186 + $0xf0] sm:$0xff]
      %v234 = vld [vmem:[%s186 + $0xf8] sm:$0xff]
      %v235 = vld [vmem:[%s186 + $0x100] sm:$0xff]
      %v236 = vld [vmem:[%s186 + $0x108] sm:$0xff]
      %v237 = vld [vmem:[%s186 + $0x110] sm:$0xff]
      %v238 = vld [vmem:[%s186 + $0x118] sm:$0xff]
      %v239 = vld [vmem:[%s186 + $0x120] sm:$0xff]
      %v240 = vld [vmem:[%s186 + $0x128] sm:$0xff]
      %v241 = vld [vmem:[%s186 + $0x130] sm:$0xff]
      %v242 = vld [vmem:[%s186 + $0x138] sm:$0xff]
      %v243 = vld [vmem:[%s186 + $0x140] sm:$0xff]
      %v244 = vld [vmem:[%s186 + $0x148] sm:$0xff]
      %v245 = vld [vmem:[%s186 + $0x150] sm:$0xff]
      %v246 = vld [vmem:[%s186 + $0x158] sm:$0xff]
      %v247 = vld [vmem:[%s186 + $0x160] sm:$0xff]
      %v248 = vld [vmem:[%s186 + $0x168] sm:$0xff]
      %v249 = vld [vmem:[%s186 + $0x170] sm:$0xff]
      %v250 = vld [vmem:[%s186 + $0x178] sm:$0xff]
      %v251 = vld [vmem:[%s186 + $0x180] sm:$0xff]
      %v252 = vld [vmem:[%s186 + $0x188] sm:$0xff]
      %v253 = vld [vmem:[%s186 + $0x190] sm:$0xff]
      %v254 = vld [vmem:[%s186 + $0x198] sm:$0xff]
      %v255 = vld [vmem:[%s186 + $0x1a0] sm:$0xff]
      %v256 = vld [vmem:[%s186 + $0x1a8] sm:$0xff]
      %v257 = vld [vmem:[%s186 + $0x1b0] sm:$0xff]
      %v258 = vld [vmem:[%s186 + $0x1b8] sm:$0xff]
      %v259 = vld [vmem:[%s186 + $0x1c0] sm:$0xff]
      %v260 = vld [vmem:[%s186 + $0x1c8] sm:$0xff]
      %v261 = vld [vmem:[%s186 + $0x1d0] sm:$0xff]
      %v262 = vld [vmem:[%s186 + $0x1d8] sm:$0xff]
      %v263 = vld [vmem:[%s186 + $0x1e0] sm:$0xff]
      %v264 = vld [vmem:[%s186 + $0x1e8] sm:$0xff]
      %v265 = vld [vmem:[%s186 + $0x1f0] sm:$0xff]
      %v266 = vld [vmem:[%s186 + $0x1f8] sm:$0xff]
      %v267 = vld [vmem:[%s186 + $0x200] sm:$0xff]
      %v268 = vld [vmem:[%s186 + $0x208] sm:$0xff]
      %v269 = vld [vmem:[%s186 + $0x210] sm:$0xff]
      %v270 = vld [vmem:[%s186 + $0x218] sm:$0xff]
      %v271 = vld [vmem:[%s186 + $0x220] sm:$0xff]
      %v272 = vld [vmem:[%s186 + $0x228] sm:$0xff]
      %v273 = vld [vmem:[%s186 + $0x230] sm:$0xff]
      %v274 = vld [vmem:[%s186 + $0x238] sm:$0xff]
      %v275 = vld [vmem:[%s186 + $0x240] sm:$0xff]
      %v276 = vld [vmem:[%s186 + $0x248] sm:$0xff]
      %v277 = vld [vmem:[%s186 + $0x250] sm:$0xff]
      %v278 = vld [vmem:[%s186 + $0x258] sm:$0xff]
      %v279 = vld [vmem:[%s186 + $0x260] sm:$0xff]
      %v280 = vld [vmem:[%s186 + $0x268] sm:$0xff]
      %v281 = vld [vmem:[%s186 + $0x270] sm:$0xff]
      %v282 = vld [vmem:[%s186 + $0x278] sm:$0xff]
      %v283 = vld [vmem:[%s186 + $0x280] sm:$0xff]
      %v284 = vld [vmem:[%s186 + $0x288] sm:$0xff]
      %v285 = vld [vmem:[%s186 + $0x290] sm:$0xff]
      %v286 = vld [vmem:[%s186 + $0x298] sm:$0xff]
      %v287 = vld [vmem:[%s186 + $0x2a0] sm:$0xff]
      %v288 = vld [vmem:[%s186 + $0x2a8] sm:$0xff]
      %v289 = vld [vmem:[%s186 + $0x2b0] sm:$0xff]
      %v290 = vld [vmem:[%s186 + $0x2b8] sm:$0xff]
      %v291 = vld [vmem:[%s186 + $0x2c0] sm:$0xff]
      %v292 = vld [vmem:[%s186 + $0x2c8] sm:$0xff]
      %v293 = vld [vmem:[%s186 + $0x2d0] sm:$0xff]
      %v294 = vld [vmem:[%s186 + $0x2d8] sm:$0xff]
      %v295 = vld [vmem:[%s186 + $0x2e0] sm:$0xff]
      %v296 = vld [vmem:[%s186 + $0x2e8] sm:$0xff]
      %v297 = vld [vmem:[%s186 + $0x2f0] sm:$0xff]
      %v298 = vld [vmem:[%s186 + $0x2f8] sm:$0xff]
      %v299 = vld [vmem:[%s186 + $0x300] sm:$0xff]
      %v300 = vld [vmem:[%s186 + $0x308] sm:$0xff]
      %v301 = vld [vmem:[%s186 + $0x310] sm:$0xff]
      %v302 = vld [vmem:[%s186 + $0x318] sm:$0xff]
      %v303 = vld [vmem:[%s186 + $0x320] sm:$0xff]
      %v304 = vld [vmem:[%s186 + $0x328] sm:$0xff]
      %v305 = vld [vmem:[%s186 + $0x330] sm:$0xff]
      %v306 = vld [vmem:[%s186 + $0x338] sm:$0xff]
      %v307 = vld [vmem:[%s186 + $0x340] sm:$0xff]
      %v308 = vld [vmem:[%s186 + $0x348] sm:$0xff]
      %v309 = vld [vmem:[%s186 + $0x350] sm:$0xff]
      %v310 = vld [vmem:[%s186 + $0x358] sm:$0xff]
      %v311 = vld [vmem:[%s186 + $0x360] sm:$0xff]
      %v312 = vld [vmem:[%s186 + $0x368] sm:$0xff]
      %v313 = vld [vmem:[%s186 + $0x370] sm:$0xff]
      %v314 = vld [vmem:[%s186 + $0x378] sm:$0xff]
      %v315 = vld [vmem:[%s186 + $0x380] sm:$0xff]
      %v316 = vld [vmem:[%s186 + $0x388] sm:$0xff]
      %v317 = vld [vmem:[%s186 + $0x390] sm:$0xff]
      %v318 = vld [vmem:[%s186 + $0x398] sm:$0xff]
      %v319 = vld [vmem:[%s186 + $0x3a0] sm:$0xff]
      %v320 = vld [vmem:[%s186 + $0x3a8] sm:$0xff]
      %v321 = vld [vmem:[%s186 + $0x3b0] sm:$0xff]
      %v322 = vld [vmem:[%s186 + $0x3b8] sm:$0xff]
      %v323 = vld [vmem:[%s186 + $0x3c0] sm:$0xff]
      %v324 = vld [vmem:[%s186 + $0x3c8] sm:$0xff]
      %v325 = vld [vmem:[%s186 + $0x3d0] sm:$0xff]
      %v326 = vld [vmem:[%s186 + $0x3d8] sm:$0xff]
      %v327 = vld [vmem:[%s186 + $0x3e0] sm:$0xff]
      %v328 = vld [vmem:[%s186 + $0x3e8] sm:$0xff]
      %v329 = vld [vmem:[%s186 + $0x3f0] sm:$0xff]
      %v330 = vld [vmem:[%s186 + $0x3f8] sm:$0xff]
      %v331 = vld [vmem:[%s192] sm:$0xff]
      %v332 = vld [vmem:[%s192 + $0x8] sm:$0xff]
      %v333 = vld [vmem:[%s192 + $0x10] sm:$0xff]
      %v334 = vld [vmem:[%s192 + $0x18] sm:$0xff]
      %v335 = vld [vmem:[%s192 + $0x20] sm:$0xff]
      %v336 = vld [vmem:[%s192 + $0x28] sm:$0xff]
      %v337 = vld [vmem:[%s192 + $0x30] sm:$0xff]
      %v338 = vld [vmem:[%s192 + $0x38] sm:$0xff]
      %v339 = vld [vmem:[%s192 + $0x40] sm:$0xff]
      %v340 = vld [vmem:[%s192 + $0x48] sm:$0xff]
      %v341 = vld [vmem:[%s192 + $0x50] sm:$0xff]
      %v342 = vld [vmem:[%s192 + $0x58] sm:$0xff]
      %v343 = vld [vmem:[%s192 + $0x60] sm:$0xff]
      %v344 = vld [vmem:[%s192 + $0x68] sm:$0xff]
      %v345 = vld [vmem:[%s192 + $0x70] sm:$0xff]
      %v346 = vld [vmem:[%s192 + $0x78] sm:$0xff]
      %348 = vset.pattern.permute.xlu0 0
      %349 = vperm.xlu0 %348, %v331
      %v350 = vpop.permute.xlu0 %349
      %353 = vset.pattern.permute.xlu0 0
      %354 = vperm.xlu0 %353, %v332
      %v355 = vpop.permute.xlu0 %354
      %358 = vset.pattern.permute.xlu0 0
      %359 = vperm.xlu0 %358, %v333
      %v360 = vpop.permute.xlu0 %359
      %363 = vset.pattern.permute.xlu0 0
      %364 = vperm.xlu0 %363, %v334
      %v365 = vpop.permute.xlu0 %364
      %368 = vset.pattern.permute.xlu0 0
      %369 = vperm.xlu0 %368, %v335
      %v370 = vpop.permute.xlu0 %369
      %373 = vset.pattern.permute.xlu0 0
      %374 = vperm.xlu0 %373, %v336
      %v375 = vpop.permute.xlu0 %374
      %378 = vset.pattern.permute.xlu0 0
      %379 = vperm.xlu0 %378, %v337
      %v380 = vpop.permute.xlu0 %379
      %383 = vset.pattern.permute.xlu0 0
      %384 = vperm.xlu0 %383, %v338
      %v385 = vpop.permute.xlu0 %384
      %388 = vset.pattern.permute.xlu0 0
      %389 = vperm.xlu0 %388, %v339
      %v390 = vpop.permute.xlu0 %389
      %393 = vset.pattern.permute.xlu0 0
      %394 = vperm.xlu0 %393, %v340
      %v395 = vpop.permute.xlu0 %394
      %398 = vset.pattern.permute.xlu0 0
      %399 = vperm.xlu0 %398, %v341
      %v400 = vpop.permute.xlu0 %399
      %403 = vset.pattern.permute.xlu0 0
      %404 = vperm.xlu0 %403, %v342
      %v405 = vpop.permute.xlu0 %404
      %408 = vset.pattern.permute.xlu0 0
      %409 = vperm.xlu0 %408, %v343
      %v410 = vpop.permute.xlu0 %409
      %413 = vset.pattern.permute.xlu0 0
      %414 = vperm.xlu0 %413, %v344
      %v415 = vpop.permute.xlu0 %414
      %418 = vset.pattern.permute.xlu0 0
      %419 = vperm.xlu0 %418, %v345
      %v420 = vpop.permute.xlu0 %419
      %423 = vset.pattern.permute.xlu0 0
      %424 = vperm.xlu0 %423, %v346
      %v425 = vpop.permute.xlu0 %424
      %v427 = vmul.f32 %v203, %v350
      %v428 = vmul.f32 %v204, %v350
      %v429 = vmul.f32 %v205, %v350
      %v430 = vmul.f32 %v206, %v350
      %v431 = vmul.f32 %v207, %v350
      %v432 = vmul.f32 %v208, %v350
      %v433 = vmul.f32 %v209, %v350
      %v434 = vmul.f32 %v210, %v350
      %v435 = vmul.f32 %v211, %v355
      %v436 = vmul.f32 %v212, %v355
      %v437 = vmul.f32 %v213, %v355
      %v438 = vmul.f32 %v214, %v355
      %v439 = vmul.f32 %v215, %v355
      %v440 = vmul.f32 %v216, %v355
      %v441 = vmul.f32 %v217, %v355
      %v442 = vmul.f32 %v218, %v355
      %v443 = vmul.f32 %v219, %v360
      %v444 = vmul.f32 %v220, %v360
      %v445 = vmul.f32 %v221, %v360
      %v446 = vmul.f32 %v222, %v360
      %v447 = vmul.f32 %v223, %v360
      %v448 = vmul.f32 %v224, %v360
      %v449 = vmul.f32 %v225, %v360
      %v450 = vmul.f32 %v226, %v360
      %v451 = vmul.f32 %v227, %v365
      %v452 = vmul.f32 %v228, %v365
      %v453 = vmul.f32 %v229, %v365
      %v454 = vmul.f32 %v230, %v365
      %v455 = vmul.f32 %v231, %v365
      %v456 = vmul.f32 %v232, %v365
      %v457 = vmul.f32 %v233, %v365
      %v458 = vmul.f32 %v234, %v365
      %v459 = vmul.f32 %v235, %v370
      %v460 = vmul.f32 %v236, %v370
      %v461 = vmul.f32 %v237, %v370
      %v462 = vmul.f32 %v238, %v370
      %v463 = vmul.f32 %v239, %v370
      %v464 = vmul.f32 %v240, %v370
      %v465 = vmul.f32 %v241, %v370
      %v466 = vmul.f32 %v242, %v370
      %v467 = vmul.f32 %v243, %v375
      %v468 = vmul.f32 %v244, %v375
      %v469 = vmul.f32 %v245, %v375
      %v470 = vmul.f32 %v246, %v375
      %v471 = vmul.f32 %v247, %v375
      %v472 = vmul.f32 %v248, %v375
      %v473 = vmul.f32 %v249, %v375
      %v474 = vmul.f32 %v250, %v375
      %v475 = vmul.f32 %v251, %v380
      %v476 = vmul.f32 %v252, %v380
      %v477 = vmul.f32 %v253, %v380
      %v478 = vmul.f32 %v254, %v380
      %v479 = vmul.f32 %v255, %v380
      %v480 = vmul.f32 %v256, %v380
      %v481 = vmul.f32 %v257, %v380
      %v482 = vmul.f32 %v258, %v380
      %v483 = vmul.f32 %v259, %v385
      %v484 = vmul.f32 %v260, %v385
      %v485 = vmul.f32 %v261, %v385
      %v486 = vmul.f32 %v262, %v385
      %v487 = vmul.f32 %v263, %v385
      %v488 = vmul.f32 %v264, %v385
      %v489 = vmul.f32 %v265, %v385
      %v490 = vmul.f32 %v266, %v385
      %v491 = vmul.f32 %v267, %v390
      %v492 = vmul.f32 %v268, %v390
      %v493 = vmul.f32 %v269, %v390
      %v494 = vmul.f32 %v270, %v390
      %v495 = vmul.f32 %v271, %v390
      %v496 = vmul.f32 %v272, %v390
      %v497 = vmul.f32 %v273, %v390
      %v498 = vmul.f32 %v274, %v390
      %v499 = vmul.f32 %v275, %v395
      %v500 = vmul.f32 %v276, %v395
      %v501 = vmul.f32 %v277, %v395
      %v502 = vmul.f32 %v278, %v395
      %v503 = vmul.f32 %v279, %v395
      %v504 = vmul.f32 %v280, %v395
      %v505 = vmul.f32 %v281, %v395
      %v506 = vmul.f32 %v282, %v395
      %v507 = vmul.f32 %v283, %v400
      %v508 = vmul.f32 %v284, %v400
      %v509 = vmul.f32 %v285, %v400
      %v510 = vmul.f32 %v286, %v400
      %v511 = vmul.f32 %v287, %v400
      %v512 = vmul.f32 %v288, %v400
      %v513 = vmul.f32 %v289, %v400
      %v514 = vmul.f32 %v290, %v400
      %v515 = vmul.f32 %v291, %v405
      %v516 = vmul.f32 %v292, %v405
      %v517 = vmul.f32 %v293, %v405
      %v518 = vmul.f32 %v294, %v405
      %v519 = vmul.f32 %v295, %v405
      %v520 = vmul.f32 %v296, %v405
      %v521 = vmul.f32 %v297, %v405
      %v522 = vmul.f32 %v298, %v405
      %v523 = vmul.f32 %v299, %v410
      %v524 = vmul.f32 %v300, %v410
      %v525 = vmul.f32 %v301, %v410
      %v526 = vmul.f32 %v302, %v410
      %v527 = vmul.f32 %v303, %v410
      %v528 = vmul.f32 %v304, %v410
      %v529 = vmul.f32 %v305, %v410
      %v530 = vmul.f32 %v306, %v410
      %v531 = vmul.f32 %v307, %v415
      %v532 = vmul.f32 %v308, %v415
      %v533 = vmul.f32 %v309, %v415
      %v534 = vmul.f32 %v310, %v415
      %v535 = vmul.f32 %v311, %v415
      %v536 = vmul.f32 %v312, %v415
      %v537 = vmul.f32 %v313, %v415
      %v538 = vmul.f32 %v314, %v415
      %v539 = vmul.f32 %v315, %v420
      %v540 = vmul.f32 %v316, %v420
      %v541 = vmul.f32 %v317, %v420
      %v542 = vmul.f32 %v318, %v420
      %v543 = vmul.f32 %v319, %v420
      %v544 = vmul.f32 %v320, %v420
      %v545 = vmul.f32 %v321, %v420
      %v546 = vmul.f32 %v322, %v420
      %v547 = vmul.f32 %v323, %v425
      %v548 = vmul.f32 %v324, %v425
      %v549 = vmul.f32 %v325, %v425
      %v550 = vmul.f32 %v326, %v425
      %v551 = vmul.f32 %v327, %v425
      %v552 = vmul.f32 %v328, %v425
      %v553 = vmul.f32 %v329, %v425
      %v554 = vmul.f32 %v330, %v425
      %v555 = vmax.f32 %v427, 0.0
      %v556 = vmax.f32 %v428, 0.0
      %v557 = vmax.f32 %v429, 0.0
      %v558 = vmax.f32 %v430, 0.0
      %v559 = vmax.f32 %v431, 0.0
      %v560 = vmax.f32 %v432, 0.0
      %v561 = vmax.f32 %v433, 0.0
      %v562 = vmax.f32 %v434, 0.0
      %v563 = vmax.f32 %v435, 0.0
      %v564 = vmax.f32 %v436, 0.0
      %v565 = vmax.f32 %v437, 0.0
      %v566 = vmax.f32 %v438, 0.0
      %v567 = vmax.f32 %v439, 0.0
      %v568 = vmax.f32 %v440, 0.0
      %v569 = vmax.f32 %v441, 0.0
      %v570 = vmax.f32 %v442, 0.0
      %v571 = vmax.f32 %v443, 0.0
      %v572 = vmax.f32 %v444, 0.0
      %v573 = vmax.f32 %v445, 0.0
      %v574 = vmax.f32 %v446, 0.0
      %v575 = vmax.f32 %v447, 0.0
      %v576 = vmax.f32 %v448, 0.0
      %v577 = vmax.f32 %v449, 0.0
      %v578 = vmax.f32 %v450, 0.0
      %v579 = vmax.f32 %v451, 0.0
      %v580 = vmax.f32 %v452, 0.0
      %v581 = vmax.f32 %v453, 0.0
      %v582 = vmax.f32 %v454, 0.0
      %v583 = vmax.f32 %v455, 0.0
      %v584 = vmax.f32 %v456, 0.0
      %v585 = vmax.f32 %v457, 0.0
      %v586 = vmax.f32 %v458, 0.0
      %v587 = vmax.f32 %v459, 0.0
      %v588 = vmax.f32 %v460, 0.0
      %v589 = vmax.f32 %v461, 0.0
      %v590 = vmax.f32 %v462, 0.0
      %v591 = vmax.f32 %v463, 0.0
      %v592 = vmax.f32 %v464, 0.0
      %v593 = vmax.f32 %v465, 0.0
      %v594 = vmax.f32 %v466, 0.0
      %v595 = vmax.f32 %v467, 0.0
      %v596 = vmax.f32 %v468, 0.0
      %v597 = vmax.f32 %v469, 0.0
      %v598 = vmax.f32 %v470, 0.0
      %v599 = vmax.f32 %v471, 0.0
      %v600 = vmax.f32 %v472, 0.0
      %v601 = vmax.f32 %v473, 0.0
      %v602 = vmax.f32 %v474, 0.0
      %v603 = vmax.f32 %v475, 0.0
      %v604 = vmax.f32 %v476, 0.0
      %v605 = vmax.f32 %v477, 0.0
      %v606 = vmax.f32 %v478, 0.0
      %v607 = vmax.f32 %v479, 0.0
      %v608 = vmax.f32 %v480, 0.0
      %v609 = vmax.f32 %v481, 0.0
      %v610 = vmax.f32 %v482, 0.0
      %v611 = vmax.f32 %v483, 0.0
      %v612 = vmax.f32 %v484, 0.0
      %v613 = vmax.f32 %v485, 0.0
      %v614 = vmax.f32 %v486, 0.0
      %v615 = vmax.f32 %v487, 0.0
      %v616 = vmax.f32 %v488, 0.0
      %v617 = vmax.f32 %v489, 0.0
      %v618 = vmax.f32 %v490, 0.0
      %v619 = vmax.f32 %v491, 0.0
      %v620 = vmax.f32 %v492, 0.0
      %v621 = vmax.f32 %v493, 0.0
      %v622 = vmax.f32 %v494, 0.0
      %v623 = vmax.f32 %v495, 0.0
      %v624 = vmax.f32 %v496, 0.0
      %v625 = vmax.f32 %v497, 0.0
      %v626 = vmax.f32 %v498, 0.0
      %v627 = vmax.f32 %v499, 0.0
      %v628 = vmax.f32 %v500, 0.0
      %v629 = vmax.f32 %v501, 0.0
      %v630 = vmax.f32 %v502, 0.0
      %v631 = vmax.f32 %v503, 0.0
      %v632 = vmax.f32 %v504, 0.0
      %v633 = vmax.f32 %v505, 0.0
      %v634 = vmax.f32 %v506, 0.0
      %v635 = vmax.f32 %v507, 0.0
      %v636 = vmax.f32 %v508, 0.0
      %v637 = vmax.f32 %v509, 0.0
      %v638 = vmax.f32 %v510, 0.0
      %v639 = vmax.f32 %v511, 0.0
      %v640 = vmax.f32 %v512, 0.0
      %v641 = vmax.f32 %v513, 0.0
      %v642 = vmax.f32 %v514, 0.0
      %v643 = vmax.f32 %v515, 0.0
      %v644 = vmax.f32 %v516, 0.0
      %v645 = vmax.f32 %v517, 0.0
      %v646 = vmax.f32 %v518, 0.0
      %v647 = vmax.f32 %v519, 0.0
      %v648 = vmax.f32 %v520, 0.0
      %v649 = vmax.f32 %v521, 0.0
      %v650 = vmax.f32 %v522, 0.0
      %v651 = vmax.f32 %v523, 0.0
      %v652 = vmax.f32 %v524, 0.0
      %v653 = vmax.f32 %v525, 0.0
      %v654 = vmax.f32 %v526, 0.0
      %v655 = vmax.f32 %v527, 0.0
      %v656 = vmax.f32 %v528, 0.0
      %v657 = vmax.f32 %v529, 0.0
      %v658 = vmax.f32 %v530, 0.0
      %v659 = vmax.f32 %v531, 0.0
      %v660 = vmax.f32 %v532, 0.0
      %v661 = vmax.f32 %v533, 0.0
      %v662 = vmax.f32 %v534, 0.0
      %v663 = vmax.f32 %v535, 0.0
      %v664 = vmax.f32 %v536, 0.0
      %v665 = vmax.f32 %v537, 0.0
      %v666 = vmax.f32 %v538, 0.0
      %v667 = vmax.f32 %v539, 0.0
      %v668 = vmax.f32 %v540, 0.0
      %v669 = vmax.f32 %v541, 0.0
      %v670 = vmax.f32 %v542, 0.0
      %v671 = vmax.f32 %v543, 0.0
      %v672 = vmax.f32 %v544, 0.0
      %v673 = vmax.f32 %v545, 0.0
      %v674 = vmax.f32 %v546, 0.0
      %v675 = vmax.f32 %v547, 0.0
      %v676 = vmax.f32 %v548, 0.0
      %v677 = vmax.f32 %v549, 0.0
      %v678 = vmax.f32 %v550, 0.0
      %v679 = vmax.f32 %v551, 0.0
      %v680 = vmax.f32 %v552, 0.0
      %v681 = vmax.f32 %v553, 0.0
      %v682 = vmax.f32 %v554, 0.0
      %683 = vst [vmem:[%s201] sm:$0xff] %v555
      %684 = vst [vmem:[%s201 + $0x8] sm:$0xff] %v556
      %685 = vst [vmem:[%s201 + $0x10] sm:$0xff] %v557
      %686 = vst [vmem:[%s201 + $0x18] sm:$0xff] %v558
      %687 = vst [vmem:[%s201 + $0x20] sm:$0xff] %v559
      %688 = vst [vmem:[%s201 + $0x28] sm:$0xff] %v560
      %689 = vst [vmem:[%s201 + $0x30] sm:$0xff] %v561
      %690 = vst [vmem:[%s201 + $0x38] sm:$0xff] %v562
      %691 = vst [vmem:[%s201 + $0x40] sm:$0xff] %v563
      %692 = vst [vmem:[%s201 + $0x48] sm:$0xff] %v564
      %693 = vst [vmem:[%s201 + $0x50] sm:$0xff] %v565
      %694 = vst [vmem:[%s201 + $0x58] sm:$0xff] %v566
      %695 = vst [vmem:[%s201 + $0x60] sm:$0xff] %v567
      %696 = vst [vmem:[%s201 + $0x68] sm:$0xff] %v568
      %697 = vst [vmem:[%s201 + $0x70] sm:$0xff] %v569
      %698 = vst [vmem:[%s201 + $0x78] sm:$0xff] %v570
      %699 = vst [vmem:[%s201 + $0x80] sm:$0xff] %v571
      %700 = vst [vmem:[%s201 + $0x88] sm:$0xff] %v572
      %701 = vst [vmem:[%s201 + $0x90] sm:$0xff] %v573
      %702 = vst [vmem:[%s201 + $0x98] sm:$0xff] %v574
      %703 = vst [vmem:[%s201 + $0xa0] sm:$0xff] %v575
      %704 = vst [vmem:[%s201 + $0xa8] sm:$0xff] %v576
      %705 = vst [vmem:[%s201 + $0xb0] sm:$0xff] %v577
      %706 = vst [vmem:[%s201 + $0xb8] sm:$0xff] %v578
      %707 = vst [vmem:[%s201 + $0xc0] sm:$0xff] %v579
      %708 = vst [vmem:[%s201 + $0xc8] sm:$0xff] %v580
      %709 = vst [vmem:[%s201 + $0xd0] sm:$0xff] %v581
      %710 = vst [vmem:[%s201 + $0xd8] sm:$0xff] %v582
      %711 = vst [vmem:[%s201 + $0xe0] sm:$0xff] %v583
      %712 = vst [vmem:[%s201 + $0xe8] sm:$0xff] %v584
      %713 = vst [vmem:[%s201 + $0xf0] sm:$0xff] %v585
      %714 = vst [vmem:[%s201 + $0xf8] sm:$0xff] %v586
      %715 = vst [vmem:[%s201 + $0x100] sm:$0xff] %v587
      %716 = vst [vmem:[%s201 + $0x108] sm:$0xff] %v588
      %717 = vst [vmem:[%s201 + $0x110] sm:$0xff] %v589
      %718 = vst [vmem:[%s201 + $0x118] sm:$0xff] %v590
      %719 = vst [vmem:[%s201 + $0x120] sm:$0xff] %v591
      %720 = vst [vmem:[%s201 + $0x128] sm:$0xff] %v592
      %721 = vst [vmem:[%s201 + $0x130] sm:$0xff] %v593
      %722 = vst [vmem:[%s201 + $0x138] sm:$0xff] %v594
      %723 = vst [vmem:[%s201 + $0x140] sm:$0xff] %v595
      %724 = vst [vmem:[%s201 + $0x148] sm:$0xff] %v596
      %725 = vst [vmem:[%s201 + $0x150] sm:$0xff] %v597
      %726 = vst [vmem:[%s201 + $0x158] sm:$0xff] %v598
      %727 = vst [vmem:[%s201 + $0x160] sm:$0xff] %v599
      %728 = vst [vmem:[%s201 + $0x168] sm:$0xff] %v600
      %729 = vst [vmem:[%s201 + $0x170] sm:$0xff] %v601
      %730 = vst [vmem:[%s201 + $0x178] sm:$0xff] %v602
      %731 = vst [vmem:[%s201 + $0x180] sm:$0xff] %v603
      %732 = vst [vmem:[%s201 + $0x188] sm:$0xff] %v604
      %733 = vst [vmem:[%s201 + $0x190] sm:$0xff] %v605
      %734 = vst [vmem:[%s201 + $0x198] sm:$0xff] %v606
      %735 = vst [vmem:[%s201 + $0x1a0] sm:$0xff] %v607
      %736 = vst [vmem:[%s201 + $0x1a8] sm:$0xff] %v608
      %737 = vst [vmem:[%s201 + $0x1b0] sm:$0xff] %v609
      %738 = vst [vmem:[%s201 + $0x1b8] sm:$0xff] %v610
      %739 = vst [vmem:[%s201 + $0x1c0] sm:$0xff] %v611
      %740 = vst [vmem:[%s201 + $0x1c8] sm:$0xff] %v612
      %741 = vst [vmem:[%s201 + $0x1d0] sm:$0xff] %v613
      %742 = vst [vmem:[%s201 + $0x1d8] sm:$0xff] %v614
      %743 = vst [vmem:[%s201 + $0x1e0] sm:$0xff] %v615
      %744 = vst [vmem:[%s201 + $0x1e8] sm:$0xff] %v616
      %745 = vst [vmem:[%s201 + $0x1f0] sm:$0xff] %v617
      %746 = vst [vmem:[%s201 + $0x1f8] sm:$0xff] %v618
      %747 = vst [vmem:[%s201 + $0x200] sm:$0xff] %v619
      %748 = vst [vmem:[%s201 + $0x208] sm:$0xff] %v620
      %749 = vst [vmem:[%s201 + $0x210] sm:$0xff] %v621
      %750 = vst [vmem:[%s201 + $0x218] sm:$0xff] %v622
      %751 = vst [vmem:[%s201 + $0x220] sm:$0xff] %v623
      %752 = vst [vmem:[%s201 + $0x228] sm:$0xff] %v624
      %753 = vst [vmem:[%s201 + $0x230] sm:$0xff] %v625
      %754 = vst [vmem:[%s201 + $0x238] sm:$0xff] %v626
      %755 = vst [vmem:[%s201 + $0x240] sm:$0xff] %v627
      %756 = vst [vmem:[%s201 + $0x248] sm:$0xff] %v628
      %757 = vst [vmem:[%s201 + $0x250] sm:$0xff] %v629
      %758 = vst [vmem:[%s201 + $0x258] sm:$0xff] %v630
      %759 = vst [vmem:[%s201 + $0x260] sm:$0xff] %v631
      %760 = vst [vmem:[%s201 + $0x268] sm:$0xff] %v632
      %761 = vst [vmem:[%s201 + $0x270] sm:$0xff] %v633
      %762 = vst [vmem:[%s201 + $0x278] sm:$0xff] %v634
      %763 = vst [vmem:[%s201 + $0x280] sm:$0xff] %v635
      %764 = vst [vmem:[%s201 + $0x288] sm:$0xff] %v636
      %765 = vst [vmem:[%s201 + $0x290] sm:$0xff] %v637
      %766 = vst [vmem:[%s201 + $0x298] sm:$0xff] %v638
      %767 = vst [vmem:[%s201 + $0x2a0] sm:$0xff] %v639
      %768 = vst [vmem:[%s201 + $0x2a8] sm:$0xff] %v640
      %769 = vst [vmem:[%s201 + $0x2b0] sm:$0xff] %v641
      %770 = vst [vmem:[%s201 + $0x2b8] sm:$0xff] %v642
      %771 = vst [vmem:[%s201 + $0x2c0] sm:$0xff] %v643
      %772 = vst [vmem:[%s201 + $0x2c8] sm:$0xff] %v644
      %773 = vst [vmem:[%s201 + $0x2d0] sm:$0xff] %v645
      %774 = vst [vmem:[%s201 + $0x2d8] sm:$0xff] %v646
      %775 = vst [vmem:[%s201 + $0x2e0] sm:$0xff] %v647
      %776 = vst [vmem:[%s201 + $0x2e8] sm:$0xff] %v648
      %777 = vst [vmem:[%s201 + $0x2f0] sm:$0xff] %v649
      %778 = vst [vmem:[%s201 + $0x2f8] sm:$0xff] %v650
      %779 = vst [vmem:[%s201 + $0x300] sm:$0xff] %v651
      %780 = vst [vmem:[%s201 + $0x308] sm:$0xff] %v652
      %781 = vst [vmem:[%s201 + $0x310] sm:$0xff] %v653
      %782 = vst [vmem:[%s201 + $0x318] sm:$0xff] %v654
      %783 = vst [vmem:[%s201 + $0x320] sm:$0xff] %v655
      %784 = vst [vmem:[%s201 + $0x328] sm:$0xff] %v656
      %785 = vst [vmem:[%s201 + $0x330] sm:$0xff] %v657
      %786 = vst [vmem:[%s201 + $0x338] sm:$0xff] %v658
      %787 = vst [vmem:[%s201 + $0x340] sm:$0xff] %v659
      %788 = vst [vmem:[%s201 + $0x348] sm:$0xff] %v660
      %789 = vst [vmem:[%s201 + $0x350] sm:$0xff] %v661
      %790 = vst [vmem:[%s201 + $0x358] sm:$0xff] %v662
      %791 = vst [vmem:[%s201 + $0x360] sm:$0xff] %v663
      %792 = vst [vmem:[%s201 + $0x368] sm:$0xff] %v664
      %793 = vst [vmem:[%s201 + $0x370] sm:$0xff] %v665
      %794 = vst [vmem:[%s201 + $0x378] sm:$0xff] %v666
      %795 = vst [vmem:[%s201 + $0x380] sm:$0xff] %v667
      %796 = vst [vmem:[%s201 + $0x388] sm:$0xff] %v668
      %797 = vst [vmem:[%s201 + $0x390] sm:$0xff] %v669
      %798 = vst [vmem:[%s201 + $0x398] sm:$0xff] %v670
      %799 = vst [vmem:[%s201 + $0x3a0] sm:$0xff] %v671
      %800 = vst [vmem:[%s201 + $0x3a8] sm:$0xff] %v672
      %801 = vst [vmem:[%s201 + $0x3b0] sm:$0xff] %v673
      %802 = vst [vmem:[%s201 + $0x3b8] sm:$0xff] %v674
      %803 = vst [vmem:[%s201 + $0x3c0] sm:$0xff] %v675
      %804 = vst [vmem:[%s201 + $0x3c8] sm:$0xff] %v676
      %805 = vst [vmem:[%s201 + $0x3d0] sm:$0xff] %v677
      %806 = vst [vmem:[%s201 + $0x3d8] sm:$0xff] %v678
      %807 = vst [vmem:[%s201 + $0x3e0] sm:$0xff] %v679
      %808 = vst [vmem:[%s201 + $0x3e8] sm:$0xff] %v680
      %809 = vst [vmem:[%s201 + $0x3f0] sm:$0xff] %v681
      %810 = vst [vmem:[%s201 + $0x3f8] sm:$0xff] %v682
      %s811 = smul.u32 8, %s18
      %p812 = scmp.lt.s32.totalorder %s17, 1
      %s813 = scalar_select %p812, %s17, 1
      %p814 = scmp.lt.s32.totalorder %s811, 7
      %s815 = scalar_select %p814, %s811, 7
      %s816 = smul.addr %s813, 128
      %s817 = sadd.s32 %s815, %s816
      %s818 = smul.addr %s817, 8
      %s819 = scalar_lea.vmem %s2, %s818
      // Predicated region
      $region29: #{encoding_forward.3} parent=27 // pred_check
        %p820 = pneg %p99
      $region30: #{encoding_forward.3} parent=27 // pred_check_branch
        %822 = sbr.rel (%p820) target = $region32
      $region31: #{encoding_forward.3} parent=27 // pred_region
        %s823 = smul.u32 8, %s18
      $region32: #{encoding_forward.3} parent=27 // pred_fallthru
        _
    $region28: #{encoding_forward.3} parent=5 // pred_fallthru
      _
    %p824 = scmp.le.s32.totalorder 2, %s8
    // Predicated region
    $region33: #{encoding_forward.3} parent=5 // pred_check
      %p825 = pneg %p824
    $region34: #{encoding_forward.3} parent=5 // pred_check_branch
      %827 = sbr.rel (%p825) target = $region36
    $region35: #{encoding_forward.3} parent=5 // pred_region
      %s828 = ssub.s32 %s8, 2
      // Predicated region
      $region37: #{encoding_forward.3} parent=35 // pred_check
        %p829 = pneg %p105
      $region38: #{encoding_forward.3} parent=35 // pred_check_branch
        %831 = sbr.rel (%p829) target = $region40
      $region39: #{encoding_forward.3} parent=35 // pred_region
        %s832 = smul.u32 8, %s20
        %p833 = scmp.lt.s32.totalorder %s19, 1
        %s834 = scalar_select %p833, %s19, 1
        %p835 = scmp.lt.s32.totalorder %s832, 7
        %s836 = scalar_select %p835, %s832, 7
        %s837 = smul.addr %s834, 128
        %s838 = sadd.s32 %s836, %s837
        %s839 = smul.addr %s838, 8
        %s840 = scalar_lea.vmem %s2, %s839
      $region40: #{encoding_forward.3} parent=35 // pred_fallthru
        _
    $region36: #{encoding_forward.3} parent=5 // pred_fallthru
      _
  $region6: #{encoding_forward.3} parent=0 // loop_footer
    %s12 = sadd.s32 1, %s8
  $region7: #{encoding_forward.3} parent=0 // loop_footer_branch
    %7 = sbr.rel target = $region3
  $region8: #{encoding_forward.3} parent=0 // loop_exit
    _

</llo_original>
